<compile_context>
chip_gen: v6e
topology: v6e:2x2x1
jax: 0.10.0
libtpu: 0.0.40
codegen_flags: <defaults>
</compile_context>

<pallas_src>
import jax
import jax.numpy as jnp
from jax import lax
from jax.experimental import pallas as pl
from jax.experimental.pallas import tpu as pltpu


# ----------------------------------------------------------------------------
# Fused per-layer kernel (projection + bidirectional recurrence [+ epilogue])
# ----------------------------------------------------------------------------
def _make_fused_bigru_kernel(T, B, H, unroll, with_epilogue):
    """Builds the fused kernel for one bidirectional GRU layer.

    Refs (all 2-D; rows are the t-major (time, batch) flatten):
      x_ref    (T*B, 2D) : [x_t | x_{T-1-t}] feature concat
      wih_ref  (2D, 6H)  : block input-projection weights; columns gate-major,
                           direction-minor: [r_f r_r z_f z_r n_f n_r]
      bgi_ref  (1, 6H)   : b_ih (+ b_hh folded for the r/z gates)
      whh_ref  (2H, 6H)  : block-diagonal recurrent weights (same column layout)
      bhn_ref  (1, 2H)   : [b_hn_fwd | b_hn_rev] (applied under the reset gate)
      [wlin_ref (2H, O), blin_ref (1, O)]   when with_epilogue
      out_ref  (T*B, 2H) or (T*B, O)
      gi_ref   (T*B, 6H) VMEM scratch      : hoisted input projection
      [hseq_ref (T*B, 2H) VMEM scratch]    when with_epilogue
    """
    H2, H4 = 2 * H, 4 * H

    def kernel(*refs):
        if with_epilogue:
            (x_ref, wih_ref, bgi_ref, whh_ref, bhn_ref, wlin_ref, blin_ref,
             out_ref, gi_ref, hseq_ref) = refs
        else:
            (x_ref, wih_ref, bgi_ref, whh_ref, bhn_ref,
             out_ref, gi_ref) = refs
            hseq_ref = out_ref

        # 1) Hoisted time-parallel input projection: one MXU matmul for both
        #    directions and all three gates.  Reverse-direction columns come out
        #    already time-flipped because x_ref carries [x_t | x_{T-1-t}].
        gi_ref[...] = (
            jnp.dot(x_ref[...], wih_ref[...], preferred_element_type=jnp.float32)
            + bgi_ref[...]
        ).astype(gi_ref.dtype)

        whh = whh_ref[...]
        bhn = bhn_ref[...]

        # 2) Sequential bidirectional recurrence: one block-diagonal
        #    (B, 2H) @ (2H, 6H) MXU push and a single gi slab load per step.
        def step(s, h):
            g = gi_ref[pl.ds(s * B, B), :]                               # (B, 6H)
            gh = jnp.dot(h, whh, preferred_element_type=jnp.float32)    # (B, 6H)
            rz = jax.nn.sigmoid(g[:, :H4] + gh[:, :H4])                 # (B, 4H)
            r = rz[:, :H2]                                               # [r_f|r_r]
            z = rz[:, H2:]                                               # [z_f|z_r]
            n = jnp.tanh(g[:, H4:] + r * (gh[:, H4:] + bhn))             # (B, 2H)
            h_new = (1.0 - z) * n + z * h                                # (B, 2H)
            # forward half -> time s ; reverse half -> time T-1-s.
            hseq_ref[pl.ds(s * B, B), :H] = h_new[:, :H].astype(hseq_ref.dtype)
            hseq_ref[pl.ds((T - 1 - s) * B, B), H:] = (
                h_new[:, H:].astype(hseq_ref.dtype))
            return h_new

        lax.fori_loop(0, T, step, jnp.zeros((B, H2), jnp.float32),
                      unroll=unroll)

        # 3) Optional fused epilogue on the VMEM-resident GRU output:
        #    LeakyReLU(0.1) -> Linear -> LeakyReLU(0.1).
        if with_epilogue:
            hid = hseq_ref[...]
            hid = jnp.where(hid >= 0, hid, 0.1 * hid)
            y = jnp.dot(hid, wlin_ref[...], preferred_element_type=jnp.float32)
            y = y + blin_ref[...]
            out_ref[...] = jnp.where(y >= 0, y, 0.1 * y).astype(out_ref.dtype)

    return kernel


# ----------------------------------------------------------------------------
# Pallas wrappers
# ----------------------------------------------------------------------------
def _full_block(shape):
    n = len(shape)
    return pl.BlockSpec(shape, lambda i: (0,) * n)


def pack_bigru_layer(dir_params):
    """Pack raw per-direction GRU params into the fused kernel layout."""
    (wih_f, whh_f, bih_f, bhh_f) = dir_params[0]
    (wih_r, whh_r, bih_r, bhh_r) = dir_params[1]
    D = wih_f.shape[1]
    H = whh_f.shape[-1]
    # Input weights: rows 0:D consume x_t (forward), rows D:2D consume x_{T-1-t}
    # (reverse).  Columns gate-major, direction-minor: [r_f r_r z_f z_r n_f n_r].
    zDH = jnp.zeros((D, H), jnp.float32)
    top = jnp.concatenate([wih_f[0], zDH, wih_f[1], zDH, wih_f[2], zDH], axis=1)
    bot = jnp.concatenate([zDH, wih_r[0], zDH, wih_r[1], zDH, wih_r[2]], axis=1)
    wih_big = jnp.concatenate([top, bot], axis=0)                 # (2D, 6H)
    bgi = jnp.concatenate(
        [bih_f[0] + bhh_f[0], bih_r[0] + bhh_r[0],                # r: fold b_ih+b_hh
         bih_f[1] + bhh_f[1], bih_r[1] + bhh_r[1],                # z: fold b_ih+b_hh
         bih_f[2], bih_r[2]],                                     # n: b_ih only
        axis=1)                                                   # (1, 6H)
    zH = jnp.zeros((H, H), jnp.float32)
    topw = jnp.concatenate([whh_f[0], zH, whh_f[1], zH, whh_f[2], zH], axis=1)
    botw = jnp.concatenate([zH, whh_r[0], zH, whh_r[1], zH, whh_r[2]], axis=1)
    whh_big = jnp.concatenate([topw, botw], axis=0)               # (2H, 6H)
    bhn = jnp.concatenate([bhh_f[2], bhh_r[2]], axis=1)           # (1, 2H)
    return wih_big, bgi, whh_big, bhn


def bigru_layer_pallas(seq, packed, epilogue=None, unroll=8):
    """One fused bidirectional GRU layer.

    seq: (T, B, D) time-major input.  Returns the t-major flattened output:
    (T*B, 2H) float32, or (T*B, O) if `epilogue=(w_lin, b_lin)` fuses the
    LeakyReLU -> Linear -> LeakyReLU head into the same kernel.
    """
    wih_big, bgi, whh_big, bhn = packed
    T, B, D = seq.shape
    H6 = whh_big.shape[1]
    H = H6 // 6
    H2 = 2 * H

    # Feed [x_t | x_{T-1-t}] so the reverse direction's projection comes out of
    # the fused matmul already time-flipped (single gi slab per recurrence step).
    x_bidir = jnp.concatenate([seq, seq[::-1]], axis=-1).reshape(T * B, 2 * D)

    operands = [x_bidir, wih_big, bgi, whh_big, bhn]
    scratch = [pltpu.VMEM((T * B, H6), jnp.float32)]
    if epilogue is not None:
        w_lin, b_lin = epilogue
        out_cols = w_lin.shape[1]
        operands += [w_lin, b_lin]
        scratch.append(pltpu.VMEM((T * B, H2), jnp.float32))
    else:
        out_cols = H2
    out_shape = (T * B, out_cols)

    kernel = _make_fused_bigru_kernel(
        T, B, H, unroll=min(int(T), int(unroll)),
        with_epilogue=epilogue is not None)

    # VMEM budget: BlockSpec double-buffers inputs/outputs; scratch is single.
    in_elems = sum(int(op.size) for op in operands)
    scratch_elems = T * B * H6 + (T * B * H2 if epilogue is not None else 0)
    vmem_need = 4 * (2 * in_elems + 2 * T * B * out_cols + scratch_elems)
    vmem_limit = int(min(max(2 * vmem_need, 32 * 1024 * 1024), 64 * 1024 * 1024))

    flops = 2 * T * B * (2 * D) * H6 + 2 * T * B * H2 * H6
    if epilogue is not None:
        flops += 2 * T * B * H2 * out_cols
    transcendentals = T * B * H6
    bytes_accessed = 4 * (in_elems + T * B * out_cols)

    return pl.pallas_call(
        kernel,
        out_shape=jax.ShapeDtypeStruct(out_shape, jnp.float32),
        grid=(1,),
        in_specs=[_full_block(op.shape) for op in operands],
        out_specs=_full_block(out_shape),
        scratch_shapes=scratch,
        compiler_params=pltpu.CompilerParams(
            dimension_semantics=("arbitrary",),
            vmem_limit_bytes=vmem_limit),
        cost_estimate=pl.CostEstimate(
            flops=int(flops), transcendentals=int(transcendentals),
            bytes_accessed=int(bytes_accessed)),
    )(*operands)


# ----------------------------------------------------------------------------
# Model: parameter init + forward (glue in plain JAX)
# ----------------------------------------------------------------------------
def init_params(key, input_size, hidden_size, output_size, num_layers):
    params = {"layers": []}
    k = key
    stdv = float(1.0 / (hidden_size ** 0.5))
    for l in range(num_layers):
        in_l = input_size if l == 0 else 2 * hidden_size
        dirs = []
        for _d in range(2):  # forward, reverse
            k, k1, k2, k3, k4 = jax.random.split(k, 5)
            wih = jax.random.uniform(k1, (3, in_l, hidden_size), jnp.float32, -stdv, stdv)
            whh = jax.random.uniform(k2, (3, hidden_size, hidden_size), jnp.float32, -stdv, stdv)
            bih = jax.random.uniform(k3, (3, 1, hidden_size), jnp.float32, -stdv, stdv)
            bhh = jax.random.uniform(k4, (3, 1, hidden_size), jnp.float32, -stdv, stdv)
            dirs.append((wih, whh, bih, bhh))
        params["layers"].append(dirs)
    k, kw, kb = jax.random.split(k, 3)
    ls = float(1.0 / ((2 * hidden_size) ** 0.5))
    params["w_lin"] = jax.random.uniform(kw, (2 * hidden_size, output_size), jnp.float32, -ls, ls)
    params["b_lin"] = jax.random.uniform(kb, (1, output_size), jnp.float32, -ls, ls)
    return params


def temporal_lstm_forward(x, params):
    """x: (n_batch, t, c) -> (n_batch, t, output_size). Matches PyTorch forward."""
    n_batch, t, _c = x.shape
    num_layers = len(params["layers"])
    seq = jnp.transpose(x, (1, 0, 2))  # (T, B, C) time-major, like permute(1,0,2)
    flat = None
    for li, dirs in enumerate(params["layers"]):
        packed = pack_bigru_layer(dirs)
        last = li == num_layers - 1
        flat = bigru_layer_pallas(
            seq, packed,
            epilogue=(params["w_lin"], params["b_lin"]) if last else None)
        if not last:
            seq = flat.reshape(t, n_batch, -1)  # (T, B, 2H) for the next layer
    # PyTorch: .view(n_batch*t, 2H) on the (t, n_batch, ...) contiguous tensor,
    # then .view(n_batch, t, -1) — the t-major flatten quirk is preserved here.
    return flat.reshape(n_batch, t, -1)


# ----------------------------------------------------------------------------
# Pure-JAX reference (same math, lax.scan) for a correctness check
# ----------------------------------------------------------------------------
def _gru_cell_ref(x_t, h, wih, whh, bih, bhh):
    gi = jnp.einsum("bd,gdh->gbh", x_t, wih) + bih
    gh = jnp.einsum("bh,ghk->gbk", h, whh) + bhh
    r = jax.nn.sigmoid(gi[0] + gh[0])
    z = jax.nn.sigmoid(gi[1] + gh[1])
    n = jnp.tanh(gi[2] + r * gh[2])
    return (1.0 - z) * n + z * h


def _gru_dir_ref(seq, wih, whh, bih, bhh, reverse):
    T, B, _D = seq.shape
    H = whh.shape[-1]
    xs = seq[::-1] if reverse else seq

    def step(h, x_t):
        h_new = _gru_cell_ref(x_t, h, wih, whh, bih, bhh)
        return h_new, h_new

    _, ys = jax.lax.scan(step, jnp.zeros((B, H), jnp.float32), xs)
    return ys[::-1] if reverse else ys


def temporal_lstm_ref(x, params):
    n_batch, t, _c = x.shape
    two_h = params["w_lin"].shape[0]
    seq = jnp.transpose(x, (1, 0, 2))
    for dirs in params["layers"]:
        outs = [_gru_dir_ref(seq, *w, reverse=(d == 1)) for d, w in enumerate(dirs)]
        seq = jnp.concatenate(outs, axis=-1)
    flat = seq.reshape(n_batch * t, two_h)
    flat = jnp.where(flat >= 0, flat, 0.1 * flat)
    y = flat @ params["w_lin"] + params["b_lin"]
    y = jnp.where(y >= 0, y, 0.1 * y)
    return y.reshape(n_batch, t, -1)


# ----------------------------------------------------------------------------
if __name__ == "__main__":
    n_batch, t, c = 2, 8, 16          # (batch, seq, input_size)
    hidden_size, output_size, num_layers = 32, 16, 2

    params = init_params(jax.random.PRNGKey(0), c, hidden_size, output_size, num_layers)
    x = jax.random.normal(jax.random.PRNGKey(1), (n_batch, t, c), jnp.float32)

    fwd = jax.jit(temporal_lstm_forward)
    y = jax.block_until_ready(fwd(x, params))

    assert y.shape == (n_batch, t, output_size), y.shape

    y_ref = temporal_lstm_ref(x, params)
    assert jnp.allclose(y, y_ref, rtol=2e-3, atol=2e-3), (
        float(jnp.max(jnp.abs(y - y_ref)))
    )

    print("KERNEL_OK")
</pallas_src>

<mosaic_0001>
module attributes {stable_mosaic.version = 11 : i64} {
  func.func @kernel(%arg0: i32, %arg1: memref<16x32xf32, #tpu.memory_space<vmem>>, %arg2: memref<32x192xf32, #tpu.memory_space<vmem>>, %arg3: memref<1x192xf32, #tpu.memory_space<vmem>>, %arg4: memref<64x192xf32, #tpu.memory_space<vmem>>, %arg5: memref<1x64xf32, #tpu.memory_space<vmem>>, %arg6: memref<16x64xf32, #tpu.memory_space<vmem>>, %arg7: memref<16x192xf32, #tpu.memory_space<vmem>>) attributes {dimension_semantics = [#tpu.dimension_semantics<arbitrary>], iteration_bounds = array<i64: 1>, scalar_prefetch = 0 : i64, scratch_operands = 1 : i64, tpu.core_type = #tpu.core_type<tc>, window_params = [{pipeline_mode = #tpu.pipeline_mode<synchronous>, transform_indices = @transform_0, window_bounds = array<i64: 16, 32>}, {pipeline_mode = #tpu.pipeline_mode<synchronous>, transform_indices = @transform_1, window_bounds = array<i64: 32, 192>}, {pipeline_mode = #tpu.pipeline_mode<synchronous>, transform_indices = @transform_2, window_bounds = array<i64: 1, 192>}, {pipeline_mode = #tpu.pipeline_mode<synchronous>, transform_indices = @transform_3, window_bounds = array<i64: 64, 192>}, {pipeline_mode = #tpu.pipeline_mode<synchronous>, transform_indices = @transform_4, window_bounds = array<i64: 1, 64>}, {pipeline_mode = #tpu.pipeline_mode<synchronous>, transform_indices = @transform_5, window_bounds = array<i64: 16, 64>}]} {
    %c0 = arith.constant 0 : index
    %c0_0 = arith.constant 0 : index
    %0 = vector.load %arg1[%c0, %c0_0] : memref<16x32xf32, #tpu.memory_space<vmem>>, vector<16x32xf32>
    %c0_1 = arith.constant 0 : index
    %c0_2 = arith.constant 0 : index
    %1 = vector.load %arg2[%c0_1, %c0_2] : memref<32x192xf32, #tpu.memory_space<vmem>>, vector<32x192xf32>
    %cst = arith.constant dense<0.000000e+00> : vector<16x192xf32>
    %2 = tpu.matmul %0, %1, %cst {dimension_numbers = #tpu.dot_dimension_numbers<[1], [0], [0], [1], [0, 0, 1, 1], [], []>} : vector<16x32xf32>, vector<32x192xf32>, vector<16x192xf32> -> vector<16x192xf32>
    %c0_3 = arith.constant 0 : index
    %c0_4 = arith.constant 0 : index
    %3 = vector.load %arg3[%c0_3, %c0_4] : memref<1x192xf32, #tpu.memory_space<vmem>>, vector<1x192xf32>
    %4 = vector.broadcast %3 : vector<1x192xf32> to vector<16x192xf32>
    %5 = arith.addf %2, %4 : vector<16x192xf32>
    %c0_5 = arith.constant 0 : index
    %c0_6 = arith.constant 0 : index
    %6 = vector.load %arg7[%c0_5, %c0_6] : memref<16x192xf32, #tpu.memory_space<vmem>>, vector<16x192xf32>
    tpu.vector_store %arg7[%c0_5, %c0_6], %5 {strides = array<i32>} : memref<16x192xf32, #tpu.memory_space<vmem>>, vector<16x192xf32>,
    %c0_7 = arith.constant 0 : index
    %c0_8 = arith.constant 0 : index
    %7 = vector.load %arg4[%c0_7, %c0_8] : memref<64x192xf32, #tpu.memory_space<vmem>>, vector<64x192xf32>
    %c0_9 = arith.constant 0 : index
    %c0_10 = arith.constant 0 : index
    %8 = vector.load %arg5[%c0_9, %c0_10] : memref<1x64xf32, #tpu.memory_space<vmem>>, vector<1x64xf32>
    %cst_11 = arith.constant 0.000000e+00 : f32
    %9 = vector.broadcast %cst_11 : f32 to vector<2x64xf32>
    %c0_i32 = arith.constant 0 : i32
    %c2_i32 = arith.constant 2 : i32
    %10 = arith.muli %c0_i32, %c2_i32 : i32
    %11 = arith.index_cast %10 : i32 to index
    %c0_12 = arith.constant 0 : index
    %12 = vector.load %arg7[%11, %c0_12] : memref<16x192xf32, #tpu.memory_space<vmem>>, vector<2x192xf32>
    %cst_13 = arith.constant dense<0.000000e+00> : vector<2x192xf32>
    %13 = tpu.matmul %9, %7, %cst_13 {dimension_numbers = #tpu.dot_dimension_numbers<[1], [0], [0], [1], [0, 0, 1, 1], [], []>} : vector<2x64xf32>, vector<64x192xf32>, vector<2x192xf32> -> vector<2x192xf32>
    %14 = vector.extract_strided_slice %12 {offsets = [0, 0], sizes = [2, 128], strides = [1, 1]} : vector<2x192xf32> to vector<2x128xf32>
    %15 = vector.extract_strided_slice %13 {offsets = [0, 0], sizes = [2, 128], strides = [1, 1]} : vector<2x192xf32> to vector<2x128xf32>
    %16 = arith.addf %14, %15 : vector<2x128xf32>
    %17 = arith.negf %16 : vector<2x128xf32>
    %18 = math.exp %17 : vector<2x128xf32>
    %cst_14 = arith.constant 1.000000e+00 : f32
    %19 = vector.broadcast %cst_14 : f32 to vector<2x128xf32>
    %20 = arith.addf %19, %18 : vector<2x128xf32>
    %21 = arith.divf %19, %20 : vector<2x128xf32>
    %22 = vector.extract_strided_slice %21 {offsets = [0, 0], sizes = [2, 64], strides = [1, 1]} : vector<2x128xf32> to vector<2x64xf32>
    %23 = vector.extract_strided_slice %21 {offsets = [0, 64], sizes = [2, 64], strides = [1, 1]} : vector<2x128xf32> to vector<2x64xf32>
    %24 = vector.extract_strided_slice %12 {offsets = [0, 128], sizes = [2, 64], strides = [1, 1]} : vector<2x192xf32> to vector<2x64xf32>
    %25 = vector.extract_strided_slice %13 {offsets = [0, 128], sizes = [2, 64], strides = [1, 1]} : vector<2x192xf32> to vector<2x64xf32>
    %26 = vector.broadcast %8 : vector<1x64xf32> to vector<2x64xf32>
    %27 = arith.addf %25, %26 : vector<2x64xf32>
    %28 = arith.mulf %22, %27 : vector<2x64xf32>
    %29 = arith.addf %24, %28 : vector<2x64xf32>
    %30 = math.tanh %29 : vector<2x64xf32>
    %cst_15 = arith.constant 1.000000e+00 : f32
    %31 = vector.broadcast %cst_15 : f32 to vector<2x64xf32>
    %32 = arith.subf %31, %23 : vector<2x64xf32>
    %33 = arith.mulf %32, %30 : vector<2x64xf32>
    %34 = arith.mulf %23, %9 : vector<2x64xf32>
    %35 = arith.addf %33, %34 : vector<2x64xf32>
    %36 = vector.extract_strided_slice %35 {offsets = [0, 0], sizes = [2, 32], strides = [1, 1]} : vector<2x64xf32> to vector<2x32xf32>
    %c2_i32_16 = arith.constant 2 : i32
    %37 = arith.muli %c0_i32, %c2_i32_16 : i32
    %38 = arith.index_cast %37 : i32 to index
    %c0_17 = arith.constant 0 : index
    %39 = vector.load %arg6[%38, %c0_17] : memref<16x64xf32, #tpu.memory_space<vmem>>, vector<2x32xf32>
    tpu.vector_store %arg6[%38, %c0_17], %36 {strides = array<i32>} : memref<16x64xf32, #tpu.memory_space<vmem>>, vector<2x32xf32>,
    %40 = vector.extract_strided_slice %35 {offsets = [0, 32], sizes = [2, 32], strides = [1, 1]} : vector<2x64xf32> to vector<2x32xf32>
    %c7_i32 = arith.constant 7 : i32
    %41 = arith.subi %c7_i32, %c0_i32 : i32
    %c2_i32_18 = arith.constant 2 : i32
    %42 = arith.muli %41, %c2_i32_18 : i32
    %43 = arith.index_cast %42 : i32 to index
    %c32 = arith.constant 32 : index
    %44 = vector.load %arg6[%43, %c32] : memref<16x64xf32, #tpu.memory_space<vmem>>, vector<2x32xf32>
    tpu.vector_store %arg6[%43, %c32], %40 {strides = array<i32>} : memref<16x64xf32, #tpu.memory_space<vmem>>, vector<2x32xf32>,
    %c1_i32 = arith.constant 1 : i32
    %c2_i32_19 = arith.constant 2 : i32
    %45 = arith.muli %c1_i32, %c2_i32_19 : i32
    %46 = arith.index_cast %45 : i32 to index
    %c0_20 = arith.constant 0 : index
    %47 = vector.load %arg7[%46, %c0_20] : memref<16x192xf32, #tpu.memory_space<vmem>>, vector<2x192xf32>
    %cst_21 = arith.constant dense<0.000000e+00> : vector<2x192xf32>
    %48 = tpu.matmul %35, %7, %cst_21 {dimension_numbers = #tpu.dot_dimension_numbers<[1], [0], [0], [1], [0, 0, 1, 1], [], []>} : vector<2x64xf32>, vector<64x192xf32>, vector<2x192xf32> -> vector<2x192xf32>
    %49 = vector.extract_strided_slice %47 {offsets = [0, 0], sizes = [2, 128], strides = [1, 1]} : vector<2x192xf32> to vector<2x128xf32>
    %50 = vector.extract_strided_slice %48 {offsets = [0, 0], sizes = [2, 128], strides = [1, 1]} : vector<2x192xf32> to vector<2x128xf32>
    %51 = arith.addf %49, %50 : vector<2x128xf32>
    %52 = arith.negf %51 : vector<2x128xf32>
    %53 = math.exp %52 : vector<2x128xf32>
    %cst_22 = arith.constant 1.000000e+00 : f32
    %54 = vector.broadcast %cst_22 : f32 to vector<2x128xf32>
    %55 = arith.addf %54, %53 : vector<2x128xf32>
    %56 = arith.divf %54, %55 : vector<2x128xf32>
    %57 = vector.extract_strided_slice %56 {offsets = [0, 0], sizes = [2, 64], strides = [1, 1]} : vector<2x128xf32> to vector<2x64xf32>
    %58 = vector.extract_strided_slice %56 {offsets = [0, 64], sizes = [2, 64], strides = [1, 1]} : vector<2x128xf32> to vector<2x64xf32>
    %59 = vector.extract_strided_slice %47 {offsets = [0, 128], sizes = [2, 64], strides = [1, 1]} : vector<2x192xf32> to vector<2x64xf32>
    %60 = vector.extract_strided_slice %48 {offsets = [0, 128], sizes = [2, 64], strides = [1, 1]} : vector<2x192xf32> to vector<2x64xf32>
    %61 = vector.broadcast %8 : vector<1x64xf32> to vector<2x64xf32>
    %62 = arith.addf %60, %61 : vector<2x64xf32>
    %63 = arith.mulf %57, %62 : vector<2x64xf32>
    %64 = arith.addf %59, %63 : vector<2x64xf32>
    %65 = math.tanh %64 : vector<2x64xf32>
    %cst_23 = arith.constant 1.000000e+00 : f32
    %66 = vector.broadcast %cst_23 : f32 to vector<2x64xf32>
    %67 = arith.subf %66, %58 : vector<2x64xf32>
    %68 = arith.mulf %67, %65 : vector<2x64xf32>
    %69 = arith.mulf %58, %35 : vector<2x64xf32>
    %70 = arith.addf %68, %69 : vector<2x64xf32>
    %71 = vector.extract_strided_slice %70 {offsets = [0, 0], sizes = [2, 32], strides = [1, 1]} : vector<2x64xf32> to vector<2x32xf32>
    %c2_i32_24 = arith.constant 2 : i32
    %72 = arith.muli %c1_i32, %c2_i32_24 : i32
    %73 = arith.index_cast %72 : i32 to index
    %c0_25 = arith.constant 0 : index
    %74 = vector.load %arg6[%73, %c0_25] : memref<16x64xf32, #tpu.memory_space<vmem>>, vector<2x32xf32>
    tpu.vector_store %arg6[%73, %c0_25], %71 {strides = array<i32>} : memref<16x64xf32, #tpu.memory_space<vmem>>, vector<2x32xf32>,
    %75 = vector.extract_strided_slice %70 {offsets = [0, 32], sizes = [2, 32], strides = [1, 1]} : vector<2x64xf32> to vector<2x32xf32>
    %c7_i32_26 = arith.constant 7 : i32
    %76 = arith.subi %c7_i32_26, %c1_i32 : i32
    %c2_i32_27 = arith.constant 2 : i32
    %77 = arith.muli %76, %c2_i32_27 : i32
    %78 = arith.index_cast %77 : i32 to index
    %c32_28 = arith.constant 32 : index
    %79 = vector.load %arg6[%78, %c32_28] : memref<16x64xf32, #tpu.memory_space<vmem>>, vector<2x32xf32>
    tpu.vector_store %arg6[%78, %c32_28], %75 {strides = array<i32>} : memref<16x64xf32, #tpu.memory_space<vmem>>, vector<2x32xf32>,
    %c2_i32_29 = arith.constant 2 : i32
    %c2_i32_30 = arith.constant 2 : i32
    %80 = arith.muli %c2_i32_29, %c2_i32_30 : i32
    %81 = arith.index_cast %80 : i32 to index
    %c0_31 = arith.constant 0 : index
    %82 = vector.load %arg7[%81, %c0_31] : memref<16x192xf32, #tpu.memory_space<vmem>>, vector<2x192xf32>
    %cst_32 = arith.constant dense<0.000000e+00> : vector<2x192xf32>
    %83 = tpu.matmul %70, %7, %cst_32 {dimension_numbers = #tpu.dot_dimension_numbers<[1], [0], [0], [1], [0, 0, 1, 1], [], []>} : vector<2x64xf32>, vector<64x192xf32>, vector<2x192xf32> -> vector<2x192xf32>
    %84 = vector.extract_strided_slice %82 {offsets = [0, 0], sizes = [2, 128], strides = [1, 1]} : vector<2x192xf32> to vector<2x128xf32>
    %85 = vector.extract_strided_slice %83 {offsets = [0, 0], sizes = [2, 128], strides = [1, 1]} : vector<2x192xf32> to vector<2x128xf32>
    %86 = arith.addf %84, %85 : vector<2x128xf32>
    %87 = arith.negf %86 : vector<2x128xf32>
    %88 = math.exp %87 : vector<2x128xf32>
    %cst_33 = arith.constant 1.000000e+00 : f32
    %89 = vector.broadcast %cst_33 : f32 to vector<2x128xf32>
    %90 = arith.addf %89, %88 : vector<2x128xf32>
    %91 = arith.divf %89, %90 : vector<2x128xf32>
    %92 = vector.extract_strided_slice %91 {offsets = [0, 0], sizes = [2, 64], strides = [1, 1]} : vector<2x128xf32> to vector<2x64xf32>
    %93 = vector.extract_strided_slice %91 {offsets = [0, 64], sizes = [2, 64], strides = [1, 1]} : vector<2x128xf32> to vector<2x64xf32>
    %94 = vector.extract_strided_slice %82 {offsets = [0, 128], sizes = [2, 64], strides = [1, 1]} : vector<2x192xf32> to vector<2x64xf32>
    %95 = vector.extract_strided_slice %83 {offsets = [0, 128], sizes = [2, 64], strides = [1, 1]} : vector<2x192xf32> to vector<2x64xf32>
    %96 = vector.broadcast %8 : vector<1x64xf32> to vector<2x64xf32>
    %97 = arith.addf %95, %96 : vector<2x64xf32>
    %98 = arith.mulf %92, %97 : vector<2x64xf32>
    %99 = arith.addf %94, %98 : vector<2x64xf32>
    %100 = math.tanh %99 : vector<2x64xf32>
    %cst_34 = arith.constant 1.000000e+00 : f32
    %101 = vector.broadcast %cst_34 : f32 to vector<2x64xf32>
    %102 = arith.subf %101, %93 : vector<2x64xf32>
    %103 = arith.mulf %102, %100 : vector<2x64xf32>
    %104 = arith.mulf %93, %70 : vector<2x64xf32>
    %105 = arith.addf %103, %104 : vector<2x64xf32>
    %106 = vector.extract_strided_slice %105 {offsets = [0, 0], sizes = [2, 32], strides = [1, 1]} : vector<2x64xf32> to vector<2x32xf32>
    %c2_i32_35 = arith.constant 2 : i32
    %107 = arith.muli %c2_i32_29, %c2_i32_35 : i32
    %108 = arith.index_cast %107 : i32 to index
    %c0_36 = arith.constant 0 : index
    %109 = vector.load %arg6[%108, %c0_36] : memref<16x64xf32, #tpu.memory_space<vmem>>, vector<2x32xf32>
    tpu.vector_store %arg6[%108, %c0_36], %106 {strides = array<i32>} : memref<16x64xf32, #tpu.memory_space<vmem>>, vector<2x32xf32>,
    %110 = vector.extract_strided_slice %105 {offsets = [0, 32], sizes = [2, 32], strides = [1, 1]} : vector<2x64xf32> to vector<2x32xf32>
    %c7_i32_37 = arith.constant 7 : i32
    %111 = arith.subi %c7_i32_37, %c2_i32_29 : i32
    %c2_i32_38 = arith.constant 2 : i32
    %112 = arith.muli %111, %c2_i32_38 : i32
    %113 = arith.index_cast %112 : i32 to index
    %c32_39 = arith.constant 32 : index
    %114 = vector.load %arg6[%113, %c32_39] : memref<16x64xf32, #tpu.memory_space<vmem>>, vector<2x32xf32>
    tpu.vector_store %arg6[%113, %c32_39], %110 {strides = array<i32>} : memref<16x64xf32, #tpu.memory_space<vmem>>, vector<2x32xf32>,
    %c3_i32 = arith.constant 3 : i32
    %c2_i32_40 = arith.constant 2 : i32
    %115 = arith.muli %c3_i32, %c2_i32_40 : i32
    %116 = arith.index_cast %115 : i32 to index
    %c0_41 = arith.constant 0 : index
    %117 = vector.load %arg7[%116, %c0_41] : memref<16x192xf32, #tpu.memory_space<vmem>>, vector<2x192xf32>
    %cst_42 = arith.constant dense<0.000000e+00> : vector<2x192xf32>
    %118 = tpu.matmul %105, %7, %cst_42 {dimension_numbers = #tpu.dot_dimension_numbers<[1], [0], [0], [1], [0, 0, 1, 1], [], []>} : vector<2x64xf32>, vector<64x192xf32>, vector<2x192xf32> -> vector<2x192xf32>
    %119 = vector.extract_strided_slice %117 {offsets = [0, 0], sizes = [2, 128], strides = [1, 1]} : vector<2x192xf32> to vector<2x128xf32>
    %120 = vector.extract_strided_slice %118 {offsets = [0, 0], sizes = [2, 128], strides = [1, 1]} : vector<2x192xf32> to vector<2x128xf32>
    %121 = arith.addf %119, %120 : vector<2x128xf32>
    %122 = arith.negf %121 : vector<2x128xf32>
    %123 = math.exp %122 : vector<2x128xf32>
    %cst_43 = arith.constant 1.000000e+00 : f32
    %124 = vector.broadcast %cst_43 : f32 to vector<2x128xf32>
    %125 = arith.addf %124, %123 : vector<2x128xf32>
    %126 = arith.divf %124, %125 : vector<2x128xf32>
    %127 = vector.extract_strided_slice %126 {offsets = [0, 0], sizes = [2, 64], strides = [1, 1]} : vector<2x128xf32> to vector<2x64xf32>
    %128 = vector.extract_strided_slice %126 {offsets = [0, 64], sizes = [2, 64], strides = [1, 1]} : vector<2x128xf32> to vector<2x64xf32>
    %129 = vector.extract_strided_slice %117 {offsets = [0, 128], sizes = [2, 64], strides = [1, 1]} : vector<2x192xf32> to vector<2x64xf32>
    %130 = vector.extract_strided_slice %118 {offsets = [0, 128], sizes = [2, 64], strides = [1, 1]} : vector<2x192xf32> to vector<2x64xf32>
    %131 = vector.broadcast %8 : vector<1x64xf32> to vector<2x64xf32>
    %132 = arith.addf %130, %131 : vector<2x64xf32>
    %133 = arith.mulf %127, %132 : vector<2x64xf32>
    %134 = arith.addf %129, %133 : vector<2x64xf32>
    %135 = math.tanh %134 : vector<2x64xf32>
    %cst_44 = arith.constant 1.000000e+00 : f32
    %136 = vector.broadcast %cst_44 : f32 to vector<2x64xf32>
    %137 = arith.subf %136, %128 : vector<2x64xf32>
    %138 = arith.mulf %137, %135 : vector<2x64xf32>
    %139 = arith.mulf %128, %105 : vector<2x64xf32>
    %140 = arith.addf %138, %139 : vector<2x64xf32>
    %141 = vector.extract_strided_slice %140 {offsets = [0, 0], sizes = [2, 32], strides = [1, 1]} : vector<2x64xf32> to vector<2x32xf32>
    %c2_i32_45 = arith.constant 2 : i32
    %142 = arith.muli %c3_i32, %c2_i32_45 : i32
    %143 = arith.index_cast %142 : i32 to index
    %c0_46 = arith.constant 0 : index
    %144 = vector.load %arg6[%143, %c0_46] : memref<16x64xf32, #tpu.memory_space<vmem>>, vector<2x32xf32>
    tpu.vector_store %arg6[%143, %c0_46], %141 {strides = array<i32>} : memref<16x64xf32, #tpu.memory_space<vmem>>, vector<2x32xf32>,
    %145 = vector.extract_strided_slice %140 {offsets = [0, 32], sizes = [2, 32], strides = [1, 1]} : vector<2x64xf32> to vector<2x32xf32>
    %c7_i32_47 = arith.constant 7 : i32
    %146 = arith.subi %c7_i32_47, %c3_i32 : i32
    %c2_i32_48 = arith.constant 2 : i32
    %147 = arith.muli %146, %c2_i32_48 : i32
    %148 = arith.index_cast %147 : i32 to index
    %c32_49 = arith.constant 32 : index
    %149 = vector.load %arg6[%148, %c32_49] : memref<16x64xf32, #tpu.memory_space<vmem>>, vector<2x32xf32>
    tpu.vector_store %arg6[%148, %c32_49], %145 {strides = array<i32>} : memref<16x64xf32, #tpu.memory_space<vmem>>, vector<2x32xf32>,
    %c4_i32 = arith.constant 4 : i32
    %c2_i32_50 = arith.constant 2 : i32
    %150 = arith.muli %c4_i32, %c2_i32_50 : i32
    %151 = arith.index_cast %150 : i32 to index
    %c0_51 = arith.constant 0 : index
    %152 = vector.load %arg7[%151, %c0_51] : memref<16x192xf32, #tpu.memory_space<vmem>>, vector<2x192xf32>
    %cst_52 = arith.constant dense<0.000000e+00> : vector<2x192xf32>
    %153 = tpu.matmul %140, %7, %cst_52 {dimension_numbers = #tpu.dot_dimension_numbers<[1], [0], [0], [1], [0, 0, 1, 1], [], []>} : vector<2x64xf32>, vector<64x192xf32>, vector<2x192xf32> -> vector<2x192xf32>
    %154 = vector.extract_strided_slice %152 {offsets = [0, 0], sizes = [2, 128], strides = [1, 1]} : vector<2x192xf32> to vector<2x128xf32>
    %155 = vector.extract_strided_slice %153 {offsets = [0, 0], sizes = [2, 128], strides = [1, 1]} : vector<2x192xf32> to vector<2x128xf32>
    %156 = arith.addf %154, %155 : vector<2x128xf32>
    %157 = arith.negf %156 : vector<2x128xf32>
    %158 = math.exp %157 : vector<2x128xf32>
    %cst_53 = arith.constant 1.000000e+00 : f32
    %159 = vector.broadcast %cst_53 : f32 to vector<2x128xf32>
    %160 = arith.addf %159, %158 : vector<2x128xf32>
    %161 = arith.divf %159, %160 : vector<2x128xf32>
    %162 = vector.extract_strided_slice %161 {offsets = [0, 0], sizes = [2, 64], strides = [1, 1]} : vector<2x128xf32> to vector<2x64xf32>
    %163 = vector.extract_strided_slice %161 {offsets = [0, 64], sizes = [2, 64], strides = [1, 1]} : vector<2x128xf32> to vector<2x64xf32>
    %164 = vector.extract_strided_slice %152 {offsets = [0, 128], sizes = [2, 64], strides = [1, 1]} : vector<2x192xf32> to vector<2x64xf32>
    %165 = vector.extract_strided_slice %153 {offsets = [0, 128], sizes = [2, 64], strides = [1, 1]} : vector<2x192xf32> to vector<2x64xf32>
    %166 = vector.broadcast %8 : vector<1x64xf32> to vector<2x64xf32>
    %167 = arith.addf %165, %166 : vector<2x64xf32>
    %168 = arith.mulf %162, %167 : vector<2x64xf32>
    %169 = arith.addf %164, %168 : vector<2x64xf32>
    %170 = math.tanh %169 : vector<2x64xf32>
    %cst_54 = arith.constant 1.000000e+00 : f32
    %171 = vector.broadcast %cst_54 : f32 to vector<2x64xf32>
    %172 = arith.subf %171, %163 : vector<2x64xf32>
    %173 = arith.mulf %172, %170 : vector<2x64xf32>
    %174 = arith.mulf %163, %140 : vector<2x64xf32>
    %175 = arith.addf %173, %174 : vector<2x64xf32>
    %176 = vector.extract_strided_slice %175 {offsets = [0, 0], sizes = [2, 32], strides = [1, 1]} : vector<2x64xf32> to vector<2x32xf32>
    %c2_i32_55 = arith.constant 2 : i32
    %177 = arith.muli %c4_i32, %c2_i32_55 : i32
    %178 = arith.index_cast %177 : i32 to index
    %c0_56 = arith.constant 0 : index
    %179 = vector.load %arg6[%178, %c0_56] : memref<16x64xf32, #tpu.memory_space<vmem>>, vector<2x32xf32>
    tpu.vector_store %arg6[%178, %c0_56], %176 {strides = array<i32>} : memref<16x64xf32, #tpu.memory_space<vmem>>, vector<2x32xf32>,
    %180 = vector.extract_strided_slice %175 {offsets = [0, 32], sizes = [2, 32], strides = [1, 1]} : vector<2x64xf32> to vector<2x32xf32>
    %c7_i32_57 = arith.constant 7 : i32
    %181 = arith.subi %c7_i32_57, %c4_i32 : i32
    %c2_i32_58 = arith.constant 2 : i32
    %182 = arith.muli %181, %c2_i32_58 : i32
    %183 = arith.index_cast %182 : i32 to index
    %c32_59 = arith.constant 32 : index
    %184 = vector.load %arg6[%183, %c32_59] : memref<16x64xf32, #tpu.memory_space<vmem>>, vector<2x32xf32>
    tpu.vector_store %arg6[%183, %c32_59], %180 {strides = array<i32>} : memref<16x64xf32, #tpu.memory_space<vmem>>, vector<2x32xf32>,
    %c5_i32 = arith.constant 5 : i32
    %c2_i32_60 = arith.constant 2 : i32
    %185 = arith.muli %c5_i32, %c2_i32_60 : i32
    %186 = arith.index_cast %185 : i32 to index
    %c0_61 = arith.constant 0 : index
    %187 = vector.load %arg7[%186, %c0_61] : memref<16x192xf32, #tpu.memory_space<vmem>>, vector<2x192xf32>
    %cst_62 = arith.constant dense<0.000000e+00> : vector<2x192xf32>
    %188 = tpu.matmul %175, %7, %cst_62 {dimension_numbers = #tpu.dot_dimension_numbers<[1], [0], [0], [1], [0, 0, 1, 1], [], []>} : vector<2x64xf32>, vector<64x192xf32>, vector<2x192xf32> -> vector<2x192xf32>
    %189 = vector.extract_strided_slice %187 {offsets = [0, 0], sizes = [2, 128], strides = [1, 1]} : vector<2x192xf32> to vector<2x128xf32>
    %190 = vector.extract_strided_slice %188 {offsets = [0, 0], sizes = [2, 128], strides = [1, 1]} : vector<2x192xf32> to vector<2x128xf32>
    %191 = arith.addf %189, %190 : vector<2x128xf32>
    %192 = arith.negf %191 : vector<2x128xf32>
    %193 = math.exp %192 : vector<2x128xf32>
    %cst_63 = arith.constant 1.000000e+00 : f32
    %194 = vector.broadcast %cst_63 : f32 to vector<2x128xf32>
    %195 = arith.addf %194, %193 : vector<2x128xf32>
    %196 = arith.divf %194, %195 : vector<2x128xf32>
    %197 = vector.extract_strided_slice %196 {offsets = [0, 0], sizes = [2, 64], strides = [1, 1]} : vector<2x128xf32> to vector<2x64xf32>
    %198 = vector.extract_strided_slice %196 {offsets = [0, 64], sizes = [2, 64], strides = [1, 1]} : vector<2x128xf32> to vector<2x64xf32>
    %199 = vector.extract_strided_slice %187 {offsets = [0, 128], sizes = [2, 64], strides = [1, 1]} : vector<2x192xf32> to vector<2x64xf32>
    %200 = vector.extract_strided_slice %188 {offsets = [0, 128], sizes = [2, 64], strides = [1, 1]} : vector<2x192xf32> to vector<2x64xf32>
    %201 = vector.broadcast %8 : vector<1x64xf32> to vector<2x64xf32>
    %202 = arith.addf %200, %201 : vector<2x64xf32>
    %203 = arith.mulf %197, %202 : vector<2x64xf32>
    %204 = arith.addf %199, %203 : vector<2x64xf32>
    %205 = math.tanh %204 : vector<2x64xf32>
    %cst_64 = arith.constant 1.000000e+00 : f32
    %206 = vector.broadcast %cst_64 : f32 to vector<2x64xf32>
    %207 = arith.subf %206, %198 : vector<2x64xf32>
    %208 = arith.mulf %207, %205 : vector<2x64xf32>
    %209 = arith.mulf %198, %175 : vector<2x64xf32>
    %210 = arith.addf %208, %209 : vector<2x64xf32>
    %211 = vector.extract_strided_slice %210 {offsets = [0, 0], sizes = [2, 32], strides = [1, 1]} : vector<2x64xf32> to vector<2x32xf32>
    %c2_i32_65 = arith.constant 2 : i32
    %212 = arith.muli %c5_i32, %c2_i32_65 : i32
    %213 = arith.index_cast %212 : i32 to index
    %c0_66 = arith.constant 0 : index
    %214 = vector.load %arg6[%213, %c0_66] : memref<16x64xf32, #tpu.memory_space<vmem>>, vector<2x32xf32>
    tpu.vector_store %arg6[%213, %c0_66], %211 {strides = array<i32>} : memref<16x64xf32, #tpu.memory_space<vmem>>, vector<2x32xf32>,
    %215 = vector.extract_strided_slice %210 {offsets = [0, 32], sizes = [2, 32], strides = [1, 1]} : vector<2x64xf32> to vector<2x32xf32>
    %c7_i32_67 = arith.constant 7 : i32
    %216 = arith.subi %c7_i32_67, %c5_i32 : i32
    %c2_i32_68 = arith.constant 2 : i32
    %217 = arith.muli %216, %c2_i32_68 : i32
    %218 = arith.index_cast %217 : i32 to index
    %c32_69 = arith.constant 32 : index
    %219 = vector.load %arg6[%218, %c32_69] : memref<16x64xf32, #tpu.memory_space<vmem>>, vector<2x32xf32>
    tpu.vector_store %arg6[%218, %c32_69], %215 {strides = array<i32>} : memref<16x64xf32, #tpu.memory_space<vmem>>, vector<2x32xf32>,
    %c6_i32 = arith.constant 6 : i32
    %c2_i32_70 = arith.constant 2 : i32
    %220 = arith.muli %c6_i32, %c2_i32_70 : i32
    %221 = arith.index_cast %220 : i32 to index
    %c0_71 = arith.constant 0 : index
    %222 = vector.load %arg7[%221, %c0_71] : memref<16x192xf32, #tpu.memory_space<vmem>>, vector<2x192xf32>
    %cst_72 = arith.constant dense<0.000000e+00> : vector<2x192xf32>
    %223 = tpu.matmul %210, %7, %cst_72 {dimension_numbers = #tpu.dot_dimension_numbers<[1], [0], [0], [1], [0, 0, 1, 1], [], []>} : vector<2x64xf32>, vector<64x192xf32>, vector<2x192xf32> -> vector<2x192xf32>
    %224 = vector.extract_strided_slice %222 {offsets = [0, 0], sizes = [2, 128], strides = [1, 1]} : vector<2x192xf32> to vector<2x128xf32>
    %225 = vector.extract_strided_slice %223 {offsets = [0, 0], sizes = [2, 128], strides = [1, 1]} : vector<2x192xf32> to vector<2x128xf32>
    %226 = arith.addf %224, %225 : vector<2x128xf32>
    %227 = arith.negf %226 : vector<2x128xf32>
    %228 = math.exp %227 : vector<2x128xf32>
    %cst_73 = arith.constant 1.000000e+00 : f32
    %229 = vector.broadcast %cst_73 : f32 to vector<2x128xf32>
    %230 = arith.addf %229, %228 : vector<2x128xf32>
    %231 = arith.divf %229, %230 : vector<2x128xf32>
    %232 = vector.extract_strided_slice %231 {offsets = [0, 0], sizes = [2, 64], strides = [1, 1]} : vector<2x128xf32> to vector<2x64xf32>
    %233 = vector.extract_strided_slice %231 {offsets = [0, 64], sizes = [2, 64], strides = [1, 1]} : vector<2x128xf32> to vector<2x64xf32>
    %234 = vector.extract_strided_slice %222 {offsets = [0, 128], sizes = [2, 64], strides = [1, 1]} : vector<2x192xf32> to vector<2x64xf32>
    %235 = vector.extract_strided_slice %223 {offsets = [0, 128], sizes = [2, 64], strides = [1, 1]} : vector<2x192xf32> to vector<2x64xf32>
    %236 = vector.broadcast %8 : vector<1x64xf32> to vector<2x64xf32>
    %237 = arith.addf %235, %236 : vector<2x64xf32>
    %238 = arith.mulf %232, %237 : vector<2x64xf32>
    %239 = arith.addf %234, %238 : vector<2x64xf32>
    %240 = math.tanh %239 : vector<2x64xf32>
    %cst_74 = arith.constant 1.000000e+00 : f32
    %241 = vector.broadcast %cst_74 : f32 to vector<2x64xf32>
    %242 = arith.subf %241, %233 : vector<2x64xf32>
    %243 = arith.mulf %242, %240 : vector<2x64xf32>
    %244 = arith.mulf %233, %210 : vector<2x64xf32>
    %245 = arith.addf %243, %244 : vector<2x64xf32>
    %246 = vector.extract_strided_slice %245 {offsets = [0, 0], sizes = [2, 32], strides = [1, 1]} : vector<2x64xf32> to vector<2x32xf32>
    %c2_i32_75 = arith.constant 2 : i32
    %247 = arith.muli %c6_i32, %c2_i32_75 : i32
    %248 = arith.index_cast %247 : i32 to index
    %c0_76 = arith.constant 0 : index
    %249 = vector.load %arg6[%248, %c0_76] : memref<16x64xf32, #tpu.memory_space<vmem>>, vector<2x32xf32>
    tpu.vector_store %arg6[%248, %c0_76], %246 {strides = array<i32>} : memref<16x64xf32, #tpu.memory_space<vmem>>, vector<2x32xf32>,
    %250 = vector.extract_strided_slice %245 {offsets = [0, 32], sizes = [2, 32], strides = [1, 1]} : vector<2x64xf32> to vector<2x32xf32>
    %c7_i32_77 = arith.constant 7 : i32
    %251 = arith.subi %c7_i32_77, %c6_i32 : i32
    %c2_i32_78 = arith.constant 2 : i32
    %252 = arith.muli %251, %c2_i32_78 : i32
    %253 = arith.index_cast %252 : i32 to index
    %c32_79 = arith.constant 32 : index
    %254 = vector.load %arg6[%253, %c32_79] : memref<16x64xf32, #tpu.memory_space<vmem>>, vector<2x32xf32>
    tpu.vector_store %arg6[%253, %c32_79], %250 {strides = array<i32>} : memref<16x64xf32, #tpu.memory_space<vmem>>, vector<2x32xf32>,
    %c7_i32_80 = arith.constant 7 : i32
    %c2_i32_81 = arith.constant 2 : i32
    %255 = arith.muli %c7_i32_80, %c2_i32_81 : i32
    %256 = arith.index_cast %255 : i32 to index
    %c0_82 = arith.constant 0 : index
    %257 = vector.load %arg7[%256, %c0_82] : memref<16x192xf32, #tpu.memory_space<vmem>>, vector<2x192xf32>
    %cst_83 = arith.constant dense<0.000000e+00> : vector<2x192xf32>
    %258 = tpu.matmul %245, %7, %cst_83 {dimension_numbers = #tpu.dot_dimension_numbers<[1], [0], [0], [1], [0, 0, 1, 1], [], []>} : vector<2x64xf32>, vector<64x192xf32>, vector<2x192xf32> -> vector<2x192xf32>
    %259 = vector.extract_strided_slice %257 {offsets = [0, 0], sizes = [2, 128], strides = [1, 1]} : vector<2x192xf32> to vector<2x128xf32>
    %260 = vector.extract_strided_slice %258 {offsets = [0, 0], sizes = [2, 128], strides = [1, 1]} : vector<2x192xf32> to vector<2x128xf32>
    %261 = arith.addf %259, %260 : vector<2x128xf32>
    %262 = arith.negf %261 : vector<2x128xf32>
    %263 = math.exp %262 : vector<2x128xf32>
    %cst_84 = arith.constant 1.000000e+00 : f32
    %264 = vector.broadcast %cst_84 : f32 to vector<2x128xf32>
    %265 = arith.addf %264, %263 : vector<2x128xf32>
    %266 = arith.divf %264, %265 : vector<2x128xf32>
    %267 = vector.extract_strided_slice %266 {offsets = [0, 0], sizes = [2, 64], strides = [1, 1]} : vector<2x128xf32> to vector<2x64xf32>
    %268 = vector.extract_strided_slice %266 {offsets = [0, 64], sizes = [2, 64], strides = [1, 1]} : vector<2x128xf32> to vector<2x64xf32>
    %269 = vector.extract_strided_slice %257 {offsets = [0, 128], sizes = [2, 64], strides = [1, 1]} : vector<2x192xf32> to vector<2x64xf32>
    %270 = vector.extract_strided_slice %258 {offsets = [0, 128], sizes = [2, 64], strides = [1, 1]} : vector<2x192xf32> to vector<2x64xf32>
    %271 = vector.broadcast %8 : vector<1x64xf32> to vector<2x64xf32>
    %272 = arith.addf %270, %271 : vector<2x64xf32>
    %273 = arith.mulf %267, %272 : vector<2x64xf32>
    %274 = arith.addf %269, %273 : vector<2x64xf32>
    %275 = math.tanh %274 : vector<2x64xf32>
    %cst_85 = arith.constant 1.000000e+00 : f32
    %276 = vector.broadcast %cst_85 : f32 to vector<2x64xf32>
    %277 = arith.subf %276, %268 : vector<2x64xf32>
    %278 = arith.mulf %277, %275 : vector<2x64xf32>
    %279 = arith.mulf %268, %245 : vector<2x64xf32>
    %280 = arith.addf %278, %279 : vector<2x64xf32>
    %281 = vector.extract_strided_slice %280 {offsets = [0, 0], sizes = [2, 32], strides = [1, 1]} : vector<2x64xf32> to vector<2x32xf32>
    %c2_i32_86 = arith.constant 2 : i32
    %282 = arith.muli %c7_i32_80, %c2_i32_86 : i32
    %283 = arith.index_cast %282 : i32 to index
    %c0_87 = arith.constant 0 : index
    %284 = vector.load %arg6[%283, %c0_87] : memref<16x64xf32, #tpu.memory_space<vmem>>, vector<2x32xf32>
    tpu.vector_store %arg6[%283, %c0_87], %281 {strides = array<i32>} : memref<16x64xf32, #tpu.memory_space<vmem>>, vector<2x32xf32>,
    %285 = vector.extract_strided_slice %280 {offsets = [0, 32], sizes = [2, 32], strides = [1, 1]} : vector<2x64xf32> to vector<2x32xf32>
    %c7_i32_88 = arith.constant 7 : i32
    %286 = arith.subi %c7_i32_88, %c7_i32_80 : i32
    %c2_i32_89 = arith.constant 2 : i32
    %287 = arith.muli %286, %c2_i32_89 : i32
    %288 = arith.index_cast %287 : i32 to index
    %c32_90 = arith.constant 32 : index
    %289 = vector.load %arg6[%288, %c32_90] : memref<16x64xf32, #tpu.memory_space<vmem>>, vector<2x32xf32>
    tpu.vector_store %arg6[%288, %c32_90], %285 {strides = array<i32>} : memref<16x64xf32, #tpu.memory_space<vmem>>, vector<2x32xf32>,
    %c8_i32 = arith.constant 8 : i32
    return
  }
  func.func @transform_0(%arg0: i32) -> (i32, i32) {
    %c0_i32 = arith.constant 0 : i32
    %c0_i32_0 = arith.constant 0 : i32
    %c0_i32_1 = arith.constant 0 : i32
    return %c0_i32, %c0_i32_0 : i32, i32
  }
  func.func @transform_1(%arg0: i32) -> (i32, i32) {
    %c0_i32 = arith.constant 0 : i32
    %c0_i32_0 = arith.constant 0 : i32
    %c0_i32_1 = arith.constant 0 : i32
    return %c0_i32, %c0_i32_0 : i32, i32
  }
  func.func @transform_2(%arg0: i32) -> (i32, i32) {
    %c0_i32 = arith.constant 0 : i32
    %c0_i32_0 = arith.constant 0 : i32
    %c0_i32_1 = arith.constant 0 : i32
    return %c0_i32, %c0_i32_0 : i32, i32
  }
  func.func @transform_3(%arg0: i32) -> (i32, i32) {
    %c0_i32 = arith.constant 0 : i32
    %c0_i32_0 = arith.constant 0 : i32
    %c0_i32_1 = arith.constant 0 : i32
    return %c0_i32, %c0_i32_0 : i32, i32
  }
  func.func @transform_4(%arg0: i32) -> (i32, i32) {
    %c0_i32 = arith.constant 0 : i32
    %c0_i32_0 = arith.constant 0 : i32
    %c0_i32_1 = arith.constant 0 : i32
    return %c0_i32, %c0_i32_0 : i32, i32
  }
  func.func @transform_5(%arg0: i32) -> (i32, i32) {
    %c0_i32 = arith.constant 0 : i32
    %c0_i32_0 = arith.constant 0 : i32
    %c0_i32_1 = arith.constant 0 : i32
    return %c0_i32, %c0_i32_0 : i32, i32
  }
}

module attributes {stable_mosaic.version = 11 : i64} {
  func.func @kernel(%arg0: i32, %arg1: memref<16x128xf32, #tpu.memory_space<vmem>>, %arg2: memref<128x192xf32, #tpu.memory_space<vmem>>, %arg3: memref<1x192xf32, #tpu.memory_space<vmem>>, %arg4: memref<64x192xf32, #tpu.memory_space<vmem>>, %arg5: memref<1x64xf32, #tpu.memory_space<vmem>>, %arg6: memref<64x16xf32, #tpu.memory_space<vmem>>, %arg7: memref<1x16xf32, #tpu.memory_space<vmem>>, %arg8: memref<16x16xf32, #tpu.memory_space<vmem>>, %arg9: memref<16x192xf32, #tpu.memory_space<vmem>>, %arg10: memref<16x64xf32, #tpu.memory_space<vmem>>) attributes {dimension_semantics = [#tpu.dimension_semantics<arbitrary>], iteration_bounds = array<i64: 1>, scalar_prefetch = 0 : i64, scratch_operands = 2 : i64, tpu.core_type = #tpu.core_type<tc>, window_params = [{pipeline_mode = #tpu.pipeline_mode<synchronous>, transform_indices = @transform_0, window_bounds = array<i64: 16, 128>}, {pipeline_mode = #tpu.pipeline_mode<synchronous>, transform_indices = @transform_1, window_bounds = array<i64: 128, 192>}, {pipeline_mode = #tpu.pipeline_mode<synchronous>, transform_indices = @transform_2, window_bounds = array<i64: 1, 192>}, {pipeline_mode = #tpu.pipeline_mode<synchronous>, transform_indices = @transform_3, window_bounds = array<i64: 64, 192>}, {pipeline_mode = #tpu.pipeline_mode<synchronous>, transform_indices = @transform_4, window_bounds = array<i64: 1, 64>}, {pipeline_mode = #tpu.pipeline_mode<synchronous>, transform_indices = @transform_5, window_bounds = array<i64: 64, 16>}, {pipeline_mode = #tpu.pipeline_mode<synchronous>, transform_indices = @transform_6, window_bounds = array<i64: 1, 16>}, {pipeline_mode = #tpu.pipeline_mode<synchronous>, transform_indices = @transform_7, window_bounds = array<i64: 16, 16>}]} {
    %c0 = arith.constant 0 : index
    %c0_0 = arith.constant 0 : index
    %0 = vector.load %arg1[%c0, %c0_0] : memref<16x128xf32, #tpu.memory_space<vmem>>, vector<16x128xf32>
    %c0_1 = arith.constant 0 : index
    %c0_2 = arith.constant 0 : index
    %1 = vector.load %arg2[%c0_1, %c0_2] : memref<128x192xf32, #tpu.memory_space<vmem>>, vector<128x192xf32>
    %cst = arith.constant dense<0.000000e+00> : vector<16x192xf32>
    %2 = tpu.matmul %0, %1, %cst {dimension_numbers = #tpu.dot_dimension_numbers<[1], [0], [0], [1], [0, 0, 1, 1], [], []>} : vector<16x128xf32>, vector<128x192xf32>, vector<16x192xf32> -> vector<16x192xf32>
    %c0_3 = arith.constant 0 : index
    %c0_4 = arith.constant 0 : index
    %3 = vector.load %arg3[%c0_3, %c0_4] : memref<1x192xf32, #tpu.memory_space<vmem>>, vector<1x192xf32>
    %4 = vector.broadcast %3 : vector<1x192xf32> to vector<16x192xf32>
    %5 = arith.addf %2, %4 : vector<16x192xf32>
    %c0_5 = arith.constant 0 : index
    %c0_6 = arith.constant 0 : index
    %6 = vector.load %arg9[%c0_5, %c0_6] : memref<16x192xf32, #tpu.memory_space<vmem>>, vector<16x192xf32>
    tpu.vector_store %arg9[%c0_5, %c0_6], %5 {strides = array<i32>} : memref<16x192xf32, #tpu.memory_space<vmem>>, vector<16x192xf32>,
    %c0_7 = arith.constant 0 : index
    %c0_8 = arith.constant 0 : index
    %7 = vector.load %arg4[%c0_7, %c0_8] : memref<64x192xf32, #tpu.memory_space<vmem>>, vector<64x192xf32>
    %c0_9 = arith.constant 0 : index
    %c0_10 = arith.constant 0 : index
    %8 = vector.load %arg5[%c0_9, %c0_10] : memref<1x64xf32, #tpu.memory_space<vmem>>, vector<1x64xf32>
    %cst_11 = arith.constant 0.000000e+00 : f32
    %9 = vector.broadcast %cst_11 : f32 to vector<2x64xf32>
    %c0_i32 = arith.constant 0 : i32
    %c2_i32 = arith.constant 2 : i32
    %10 = arith.muli %c0_i32, %c2_i32 : i32
    %11 = arith.index_cast %10 : i32 to index
    %c0_12 = arith.constant 0 : index
    %12 = vector.load %arg9[%11, %c0_12] : memref<16x192xf32, #tpu.memory_space<vmem>>, vector<2x192xf32>
    %cst_13 = arith.constant dense<0.000000e+00> : vector<2x192xf32>
    %13 = tpu.matmul %9, %7, %cst_13 {dimension_numbers = #tpu.dot_dimension_numbers<[1], [0], [0], [1], [0, 0, 1, 1], [], []>} : vector<2x64xf32>, vector<64x192xf32>, vector<2x192xf32> -> vector<2x192xf32>
    %14 = vector.extract_strided_slice %12 {offsets = [0, 0], sizes = [2, 128], strides = [1, 1]} : vector<2x192xf32> to vector<2x128xf32>
    %15 = vector.extract_strided_slice %13 {offsets = [0, 0], sizes = [2, 128], strides = [1, 1]} : vector<2x192xf32> to vector<2x128xf32>
    %16 = arith.addf %14, %15 : vector<2x128xf32>
    %17 = arith.negf %16 : vector<2x128xf32>
    %18 = math.exp %17 : vector<2x128xf32>
    %cst_14 = arith.constant 1.000000e+00 : f32
    %19 = vector.broadcast %cst_14 : f32 to vector<2x128xf32>
    %20 = arith.addf %19, %18 : vector<2x128xf32>
    %21 = arith.divf %19, %20 : vector<2x128xf32>
    %22 = vector.extract_strided_slice %21 {offsets = [0, 0], sizes = [2, 64], strides = [1, 1]} : vector<2x128xf32> to vector<2x64xf32>
    %23 = vector.extract_strided_slice %21 {offsets = [0, 64], sizes = [2, 64], strides = [1, 1]} : vector<2x128xf32> to vector<2x64xf32>
    %24 = vector.extract_strided_slice %12 {offsets = [0, 128], sizes = [2, 64], strides = [1, 1]} : vector<2x192xf32> to vector<2x64xf32>
    %25 = vector.extract_strided_slice %13 {offsets = [0, 128], sizes = [2, 64], strides = [1, 1]} : vector<2x192xf32> to vector<2x64xf32>
    %26 = vector.broadcast %8 : vector<1x64xf32> to vector<2x64xf32>
    %27 = arith.addf %25, %26 : vector<2x64xf32>
    %28 = arith.mulf %22, %27 : vector<2x64xf32>
    %29 = arith.addf %24, %28 : vector<2x64xf32>
    %30 = math.tanh %29 : vector<2x64xf32>
    %cst_15 = arith.constant 1.000000e+00 : f32
    %31 = vector.broadcast %cst_15 : f32 to vector<2x64xf32>
    %32 = arith.subf %31, %23 : vector<2x64xf32>
    %33 = arith.mulf %32, %30 : vector<2x64xf32>
    %34 = arith.mulf %23, %9 : vector<2x64xf32>
    %35 = arith.addf %33, %34 : vector<2x64xf32>
    %36 = vector.extract_strided_slice %35 {offsets = [0, 0], sizes = [2, 32], strides = [1, 1]} : vector<2x64xf32> to vector<2x32xf32>
    %c2_i32_16 = arith.constant 2 : i32
    %37 = arith.muli %c0_i32, %c2_i32_16 : i32
    %38 = arith.index_cast %37 : i32 to index
    %c0_17 = arith.constant 0 : index
    %39 = vector.load %arg10[%38, %c0_17] : memref<16x64xf32, #tpu.memory_space<vmem>>, vector<2x32xf32>
    tpu.vector_store %arg10[%38, %c0_17], %36 {strides = array<i32>} : memref<16x64xf32, #tpu.memory_space<vmem>>, vector<2x32xf32>,
    %40 = vector.extract_strided_slice %35 {offsets = [0, 32], sizes = [2, 32], strides = [1, 1]} : vector<2x64xf32> to vector<2x32xf32>
    %c7_i32 = arith.constant 7 : i32
    %41 = arith.subi %c7_i32, %c0_i32 : i32
    %c2_i32_18 = arith.constant 2 : i32
    %42 = arith.muli %41, %c2_i32_18 : i32
    %43 = arith.index_cast %42 : i32 to index
    %c32 = arith.constant 32 : index
    %44 = vector.load %arg10[%43, %c32] : memref<16x64xf32, #tpu.memory_space<vmem>>, vector<2x32xf32>
    tpu.vector_store %arg10[%43, %c32], %40 {strides = array<i32>} : memref<16x64xf32, #tpu.memory_space<vmem>>, vector<2x32xf32>,
    %c1_i32 = arith.constant 1 : i32
    %c2_i32_19 = arith.constant 2 : i32
    %45 = arith.muli %c1_i32, %c2_i32_19 : i32
    %46 = arith.index_cast %45 : i32 to index
    %c0_20 = arith.constant 0 : index
    %47 = vector.load %arg9[%46, %c0_20] : memref<16x192xf32, #tpu.memory_space<vmem>>, vector<2x192xf32>
    %cst_21 = arith.constant dense<0.000000e+00> : vector<2x192xf32>
    %48 = tpu.matmul %35, %7, %cst_21 {dimension_numbers = #tpu.dot_dimension_numbers<[1], [0], [0], [1], [0, 0, 1, 1], [], []>} : vector<2x64xf32>, vector<64x192xf32>, vector<2x192xf32> -> vector<2x192xf32>
    %49 = vector.extract_strided_slice %47 {offsets = [0, 0], sizes = [2, 128], strides = [1, 1]} : vector<2x192xf32> to vector<2x128xf32>
    %50 = vector.extract_strided_slice %48 {offsets = [0, 0], sizes = [2, 128], strides = [1, 1]} : vector<2x192xf32> to vector<2x128xf32>
    %51 = arith.addf %49, %50 : vector<2x128xf32>
    %52 = arith.negf %51 : vector<2x128xf32>
    %53 = math.exp %52 : vector<2x128xf32>
    %cst_22 = arith.constant 1.000000e+00 : f32
    %54 = vector.broadcast %cst_22 : f32 to vector<2x128xf32>
    %55 = arith.addf %54, %53 : vector<2x128xf32>
    %56 = arith.divf %54, %55 : vector<2x128xf32>
    %57 = vector.extract_strided_slice %56 {offsets = [0, 0], sizes = [2, 64], strides = [1, 1]} : vector<2x128xf32> to vector<2x64xf32>
    %58 = vector.extract_strided_slice %56 {offsets = [0, 64], sizes = [2, 64], strides = [1, 1]} : vector<2x128xf32> to vector<2x64xf32>
    %59 = vector.extract_strided_slice %47 {offsets = [0, 128], sizes = [2, 64], strides = [1, 1]} : vector<2x192xf32> to vector<2x64xf32>
    %60 = vector.extract_strided_slice %48 {offsets = [0, 128], sizes = [2, 64], strides = [1, 1]} : vector<2x192xf32> to vector<2x64xf32>
    %61 = vector.broadcast %8 : vector<1x64xf32> to vector<2x64xf32>
    %62 = arith.addf %60, %61 : vector<2x64xf32>
    %63 = arith.mulf %57, %62 : vector<2x64xf32>
    %64 = arith.addf %59, %63 : vector<2x64xf32>
    %65 = math.tanh %64 : vector<2x64xf32>
    %cst_23 = arith.constant 1.000000e+00 : f32
    %66 = vector.broadcast %cst_23 : f32 to vector<2x64xf32>
    %67 = arith.subf %66, %58 : vector<2x64xf32>
    %68 = arith.mulf %67, %65 : vector<2x64xf32>
    %69 = arith.mulf %58, %35 : vector<2x64xf32>
    %70 = arith.addf %68, %69 : vector<2x64xf32>
    %71 = vector.extract_strided_slice %70 {offsets = [0, 0], sizes = [2, 32], strides = [1, 1]} : vector<2x64xf32> to vector<2x32xf32>
    %c2_i32_24 = arith.constant 2 : i32
    %72 = arith.muli %c1_i32, %c2_i32_24 : i32
    %73 = arith.index_cast %72 : i32 to index
    %c0_25 = arith.constant 0 : index
    %74 = vector.load %arg10[%73, %c0_25] : memref<16x64xf32, #tpu.memory_space<vmem>>, vector<2x32xf32>
    tpu.vector_store %arg10[%73, %c0_25], %71 {strides = array<i32>} : memref<16x64xf32, #tpu.memory_space<vmem>>, vector<2x32xf32>,
    %75 = vector.extract_strided_slice %70 {offsets = [0, 32], sizes = [2, 32], strides = [1, 1]} : vector<2x64xf32> to vector<2x32xf32>
    %c7_i32_26 = arith.constant 7 : i32
    %76 = arith.subi %c7_i32_26, %c1_i32 : i32
    %c2_i32_27 = arith.constant 2 : i32
    %77 = arith.muli %76, %c2_i32_27 : i32
    %78 = arith.index_cast %77 : i32 to index
    %c32_28 = arith.constant 32 : index
    %79 = vector.load %arg10[%78, %c32_28] : memref<16x64xf32, #tpu.memory_space<vmem>>, vector<2x32xf32>
    tpu.vector_store %arg10[%78, %c32_28], %75 {strides = array<i32>} : memref<16x64xf32, #tpu.memory_space<vmem>>, vector<2x32xf32>,
    %c2_i32_29 = arith.constant 2 : i32
    %c2_i32_30 = arith.constant 2 : i32
    %80 = arith.muli %c2_i32_29, %c2_i32_30 : i32
    %81 = arith.index_cast %80 : i32 to index
    %c0_31 = arith.constant 0 : index
    %82 = vector.load %arg9[%81, %c0_31] : memref<16x192xf32, #tpu.memory_space<vmem>>, vector<2x192xf32>
    %cst_32 = arith.constant dense<0.000000e+00> : vector<2x192xf32>
    %83 = tpu.matmul %70, %7, %cst_32 {dimension_numbers = #tpu.dot_dimension_numbers<[1], [0], [0], [1], [0, 0, 1, 1], [], []>} : vector<2x64xf32>, vector<64x192xf32>, vector<2x192xf32> -> vector<2x192xf32>
    %84 = vector.extract_strided_slice %82 {offsets = [0, 0], sizes = [2, 128], strides = [1, 1]} : vector<2x192xf32> to vector<2x128xf32>
    %85 = vector.extract_strided_slice %83 {offsets = [0, 0], sizes = [2, 128], strides = [1, 1]} : vector<2x192xf32> to vector<2x128xf32>
    %86 = arith.addf %84, %85 : vector<2x128xf32>
    %87 = arith.negf %86 : vector<2x128xf32>
    %88 = math.exp %87 : vector<2x128xf32>
    %cst_33 = arith.constant 1.000000e+00 : f32
    %89 = vector.broadcast %cst_33 : f32 to vector<2x128xf32>
    %90 = arith.addf %89, %88 : vector<2x128xf32>
    %91 = arith.divf %89, %90 : vector<2x128xf32>
    %92 = vector.extract_strided_slice %91 {offsets = [0, 0], sizes = [2, 64], strides = [1, 1]} : vector<2x128xf32> to vector<2x64xf32>
    %93 = vector.extract_strided_slice %91 {offsets = [0, 64], sizes = [2, 64], strides = [1, 1]} : vector<2x128xf32> to vector<2x64xf32>
    %94 = vector.extract_strided_slice %82 {offsets = [0, 128], sizes = [2, 64], strides = [1, 1]} : vector<2x192xf32> to vector<2x64xf32>
    %95 = vector.extract_strided_slice %83 {offsets = [0, 128], sizes = [2, 64], strides = [1, 1]} : vector<2x192xf32> to vector<2x64xf32>
    %96 = vector.broadcast %8 : vector<1x64xf32> to vector<2x64xf32>
    %97 = arith.addf %95, %96 : vector<2x64xf32>
    %98 = arith.mulf %92, %97 : vector<2x64xf32>
    %99 = arith.addf %94, %98 : vector<2x64xf32>
    %100 = math.tanh %99 : vector<2x64xf32>
    %cst_34 = arith.constant 1.000000e+00 : f32
    %101 = vector.broadcast %cst_34 : f32 to vector<2x64xf32>
    %102 = arith.subf %101, %93 : vector<2x64xf32>
    %103 = arith.mulf %102, %100 : vector<2x64xf32>
    %104 = arith.mulf %93, %70 : vector<2x64xf32>
    %105 = arith.addf %103, %104 : vector<2x64xf32>
    %106 = vector.extract_strided_slice %105 {offsets = [0, 0], sizes = [2, 32], strides = [1, 1]} : vector<2x64xf32> to vector<2x32xf32>
    %c2_i32_35 = arith.constant 2 : i32
    %107 = arith.muli %c2_i32_29, %c2_i32_35 : i32
    %108 = arith.index_cast %107 : i32 to index
    %c0_36 = arith.constant 0 : index
    %109 = vector.load %arg10[%108, %c0_36] : memref<16x64xf32, #tpu.memory_space<vmem>>, vector<2x32xf32>
    tpu.vector_store %arg10[%108, %c0_36], %106 {strides = array<i32>} : memref<16x64xf32, #tpu.memory_space<vmem>>, vector<2x32xf32>,
    %110 = vector.extract_strided_slice %105 {offsets = [0, 32], sizes = [2, 32], strides = [1, 1]} : vector<2x64xf32> to vector<2x32xf32>
    %c7_i32_37 = arith.constant 7 : i32
    %111 = arith.subi %c7_i32_37, %c2_i32_29 : i32
    %c2_i32_38 = arith.constant 2 : i32
    %112 = arith.muli %111, %c2_i32_38 : i32
    %113 = arith.index_cast %112 : i32 to index
    %c32_39 = arith.constant 32 : index
    %114 = vector.load %arg10[%113, %c32_39] : memref<16x64xf32, #tpu.memory_space<vmem>>, vector<2x32xf32>
    tpu.vector_store %arg10[%113, %c32_39], %110 {strides = array<i32>} : memref<16x64xf32, #tpu.memory_space<vmem>>, vector<2x32xf32>,
    %c3_i32 = arith.constant 3 : i32
    %c2_i32_40 = arith.constant 2 : i32
    %115 = arith.muli %c3_i32, %c2_i32_40 : i32
    %116 = arith.index_cast %115 : i32 to index
    %c0_41 = arith.constant 0 : index
    %117 = vector.load %arg9[%116, %c0_41] : memref<16x192xf32, #tpu.memory_space<vmem>>, vector<2x192xf32>
    %cst_42 = arith.constant dense<0.000000e+00> : vector<2x192xf32>
    %118 = tpu.matmul %105, %7, %cst_42 {dimension_numbers = #tpu.dot_dimension_numbers<[1], [0], [0], [1], [0, 0, 1, 1], [], []>} : vector<2x64xf32>, vector<64x192xf32>, vector<2x192xf32> -> vector<2x192xf32>
    %119 = vector.extract_strided_slice %117 {offsets = [0, 0], sizes = [2, 128], strides = [1, 1]} : vector<2x192xf32> to vector<2x128xf32>
    %120 = vector.extract_strided_slice %118 {offsets = [0, 0], sizes = [2, 128], strides = [1, 1]} : vector<2x192xf32> to vector<2x128xf32>
    %121 = arith.addf %119, %120 : vector<2x128xf32>
    %122 = arith.negf %121 : vector<2x128xf32>
    %123 = math.exp %122 : vector<2x128xf32>
    %cst_43 = arith.constant 1.000000e+00 : f32
    %124 = vector.broadcast %cst_43 : f32 to vector<2x128xf32>
    %125 = arith.addf %124, %123 : vector<2x128xf32>
    %126 = arith.divf %124, %125 : vector<2x128xf32>
    %127 = vector.extract_strided_slice %126 {offsets = [0, 0], sizes = [2, 64], strides = [1, 1]} : vector<2x128xf32> to vector<2x64xf32>
    %128 = vector.extract_strided_slice %126 {offsets = [0, 64], sizes = [2, 64], strides = [1, 1]} : vector<2x128xf32> to vector<2x64xf32>
    %129 = vector.extract_strided_slice %117 {offsets = [0, 128], sizes = [2, 64], strides = [1, 1]} : vector<2x192xf32> to vector<2x64xf32>
    %130 = vector.extract_strided_slice %118 {offsets = [0, 128], sizes = [2, 64], strides = [1, 1]} : vector<2x192xf32> to vector<2x64xf32>
    %131 = vector.broadcast %8 : vector<1x64xf32> to vector<2x64xf32>
    %132 = arith.addf %130, %131 : vector<2x64xf32>
    %133 = arith.mulf %127, %132 : vector<2x64xf32>
    %134 = arith.addf %129, %133 : vector<2x64xf32>
    %135 = math.tanh %134 : vector<2x64xf32>
    %cst_44 = arith.constant 1.000000e+00 : f32
    %136 = vector.broadcast %cst_44 : f32 to vector<2x64xf32>
    %137 = arith.subf %136, %128 : vector<2x64xf32>
    %138 = arith.mulf %137, %135 : vector<2x64xf32>
    %139 = arith.mulf %128, %105 : vector<2x64xf32>
    %140 = arith.addf %138, %139 : vector<2x64xf32>
    %141 = vector.extract_strided_slice %140 {offsets = [0, 0], sizes = [2, 32], strides = [1, 1]} : vector<2x64xf32> to vector<2x32xf32>
    %c2_i32_45 = arith.constant 2 : i32
    %142 = arith.muli %c3_i32, %c2_i32_45 : i32
    %143 = arith.index_cast %142 : i32 to index
    %c0_46 = arith.constant 0 : index
    %144 = vector.load %arg10[%143, %c0_46] : memref<16x64xf32, #tpu.memory_space<vmem>>, vector<2x32xf32>
    tpu.vector_store %arg10[%143, %c0_46], %141 {strides = array<i32>} : memref<16x64xf32, #tpu.memory_space<vmem>>, vector<2x32xf32>,
    %145 = vector.extract_strided_slice %140 {offsets = [0, 32], sizes = [2, 32], strides = [1, 1]} : vector<2x64xf32> to vector<2x32xf32>
    %c7_i32_47 = arith.constant 7 : i32
    %146 = arith.subi %c7_i32_47, %c3_i32 : i32
    %c2_i32_48 = arith.constant 2 : i32
    %147 = arith.muli %146, %c2_i32_48 : i32
    %148 = arith.index_cast %147 : i32 to index
    %c32_49 = arith.constant 32 : index
    %149 = vector.load %arg10[%148, %c32_49] : memref<16x64xf32, #tpu.memory_space<vmem>>, vector<2x32xf32>
    tpu.vector_store %arg10[%148, %c32_49], %145 {strides = array<i32>} : memref<16x64xf32, #tpu.memory_space<vmem>>, vector<2x32xf32>,
    %c4_i32 = arith.constant 4 : i32
    %c2_i32_50 = arith.constant 2 : i32
    %150 = arith.muli %c4_i32, %c2_i32_50 : i32
    %151 = arith.index_cast %150 : i32 to index
    %c0_51 = arith.constant 0 : index
    %152 = vector.load %arg9[%151, %c0_51] : memref<16x192xf32, #tpu.memory_space<vmem>>, vector<2x192xf32>
    %cst_52 = arith.constant dense<0.000000e+00> : vector<2x192xf32>
    %153 = tpu.matmul %140, %7, %cst_52 {dimension_numbers = #tpu.dot_dimension_numbers<[1], [0], [0], [1], [0, 0, 1, 1], [], []>} : vector<2x64xf32>, vector<64x192xf32>, vector<2x192xf32> -> vector<2x192xf32>
    %154 = vector.extract_strided_slice %152 {offsets = [0, 0], sizes = [2, 128], strides = [1, 1]} : vector<2x192xf32> to vector<2x128xf32>
    %155 = vector.extract_strided_slice %153 {offsets = [0, 0], sizes = [2, 128], strides = [1, 1]} : vector<2x192xf32> to vector<2x128xf32>
    %156 = arith.addf %154, %155 : vector<2x128xf32>
    %157 = arith.negf %156 : vector<2x128xf32>
    %158 = math.exp %157 : vector<2x128xf32>
    %cst_53 = arith.constant 1.000000e+00 : f32
    %159 = vector.broadcast %cst_53 : f32 to vector<2x128xf32>
    %160 = arith.addf %159, %158 : vector<2x128xf32>
    %161 = arith.divf %159, %160 : vector<2x128xf32>
    %162 = vector.extract_strided_slice %161 {offsets = [0, 0], sizes = [2, 64], strides = [1, 1]} : vector<2x128xf32> to vector<2x64xf32>
    %163 = vector.extract_strided_slice %161 {offsets = [0, 64], sizes = [2, 64], strides = [1, 1]} : vector<2x128xf32> to vector<2x64xf32>
    %164 = vector.extract_strided_slice %152 {offsets = [0, 128], sizes = [2, 64], strides = [1, 1]} : vector<2x192xf32> to vector<2x64xf32>
    %165 = vector.extract_strided_slice %153 {offsets = [0, 128], sizes = [2, 64], strides = [1, 1]} : vector<2x192xf32> to vector<2x64xf32>
    %166 = vector.broadcast %8 : vector<1x64xf32> to vector<2x64xf32>
    %167 = arith.addf %165, %166 : vector<2x64xf32>
    %168 = arith.mulf %162, %167 : vector<2x64xf32>
    %169 = arith.addf %164, %168 : vector<2x64xf32>
    %170 = math.tanh %169 : vector<2x64xf32>
    %cst_54 = arith.constant 1.000000e+00 : f32
    %171 = vector.broadcast %cst_54 : f32 to vector<2x64xf32>
    %172 = arith.subf %171, %163 : vector<2x64xf32>
    %173 = arith.mulf %172, %170 : vector<2x64xf32>
    %174 = arith.mulf %163, %140 : vector<2x64xf32>
    %175 = arith.addf %173, %174 : vector<2x64xf32>
    %176 = vector.extract_strided_slice %175 {offsets = [0, 0], sizes = [2, 32], strides = [1, 1]} : vector<2x64xf32> to vector<2x32xf32>
    %c2_i32_55 = arith.constant 2 : i32
    %177 = arith.muli %c4_i32, %c2_i32_55 : i32
    %178 = arith.index_cast %177 : i32 to index
    %c0_56 = arith.constant 0 : index
    %179 = vector.load %arg10[%178, %c0_56] : memref<16x64xf32, #tpu.memory_space<vmem>>, vector<2x32xf32>
    tpu.vector_store %arg10[%178, %c0_56], %176 {strides = array<i32>} : memref<16x64xf32, #tpu.memory_space<vmem>>, vector<2x32xf32>,
    %180 = vector.extract_strided_slice %175 {offsets = [0, 32], sizes = [2, 32], strides = [1, 1]} : vector<2x64xf32> to vector<2x32xf32>
    %c7_i32_57 = arith.constant 7 : i32
    %181 = arith.subi %c7_i32_57, %c4_i32 : i32
    %c2_i32_58 = arith.constant 2 : i32
    %182 = arith.muli %181, %c2_i32_58 : i32
    %183 = arith.index_cast %182 : i32 to index
    %c32_59 = arith.constant 32 : index
    %184 = vector.load %arg10[%183, %c32_59] : memref<16x64xf32, #tpu.memory_space<vmem>>, vector<2x32xf32>
    tpu.vector_store %arg10[%183, %c32_59], %180 {strides = array<i32>} : memref<16x64xf32, #tpu.memory_space<vmem>>, vector<2x32xf32>,
    %c5_i32 = arith.constant 5 : i32
    %c2_i32_60 = arith.constant 2 : i32
    %185 = arith.muli %c5_i32, %c2_i32_60 : i32
    %186 = arith.index_cast %185 : i32 to index
    %c0_61 = arith.constant 0 : index
    %187 = vector.load %arg9[%186, %c0_61] : memref<16x192xf32, #tpu.memory_space<vmem>>, vector<2x192xf32>
    %cst_62 = arith.constant dense<0.000000e+00> : vector<2x192xf32>
    %188 = tpu.matmul %175, %7, %cst_62 {dimension_numbers = #tpu.dot_dimension_numbers<[1], [0], [0], [1], [0, 0, 1, 1], [], []>} : vector<2x64xf32>, vector<64x192xf32>, vector<2x192xf32> -> vector<2x192xf32>
    %189 = vector.extract_strided_slice %187 {offsets = [0, 0], sizes = [2, 128], strides = [1, 1]} : vector<2x192xf32> to vector<2x128xf32>
    %190 = vector.extract_strided_slice %188 {offsets = [0, 0], sizes = [2, 128], strides = [1, 1]} : vector<2x192xf32> to vector<2x128xf32>
    %191 = arith.addf %189, %190 : vector<2x128xf32>
    %192 = arith.negf %191 : vector<2x128xf32>
    %193 = math.exp %192 : vector<2x128xf32>
    %cst_63 = arith.constant 1.000000e+00 : f32
    %194 = vector.broadcast %cst_63 : f32 to vector<2x128xf32>
    %195 = arith.addf %194, %193 : vector<2x128xf32>
    %196 = arith.divf %194, %195 : vector<2x128xf32>
    %197 = vector.extract_strided_slice %196 {offsets = [0, 0], sizes = [2, 64], strides = [1, 1]} : vector<2x128xf32> to vector<2x64xf32>
    %198 = vector.extract_strided_slice %196 {offsets = [0, 64], sizes = [2, 64], strides = [1, 1]} : vector<2x128xf32> to vector<2x64xf32>
    %199 = vector.extract_strided_slice %187 {offsets = [0, 128], sizes = [2, 64], strides = [1, 1]} : vector<2x192xf32> to vector<2x64xf32>
    %200 = vector.extract_strided_slice %188 {offsets = [0, 128], sizes = [2, 64], strides = [1, 1]} : vector<2x192xf32> to vector<2x64xf32>
    %201 = vector.broadcast %8 : vector<1x64xf32> to vector<2x64xf32>
    %202 = arith.addf %200, %201 : vector<2x64xf32>
    %203 = arith.mulf %197, %202 : vector<2x64xf32>
    %204 = arith.addf %199, %203 : vector<2x64xf32>
    %205 = math.tanh %204 : vector<2x64xf32>
    %cst_64 = arith.constant 1.000000e+00 : f32
    %206 = vector.broadcast %cst_64 : f32 to vector<2x64xf32>
    %207 = arith.subf %206, %198 : vector<2x64xf32>
    %208 = arith.mulf %207, %205 : vector<2x64xf32>
    %209 = arith.mulf %198, %175 : vector<2x64xf32>
    %210 = arith.addf %208, %209 : vector<2x64xf32>
    %211 = vector.extract_strided_slice %210 {offsets = [0, 0], sizes = [2, 32], strides = [1, 1]} : vector<2x64xf32> to vector<2x32xf32>
    %c2_i32_65 = arith.constant 2 : i32
    %212 = arith.muli %c5_i32, %c2_i32_65 : i32
    %213 = arith.index_cast %212 : i32 to index
    %c0_66 = arith.constant 0 : index
    %214 = vector.load %arg10[%213, %c0_66] : memref<16x64xf32, #tpu.memory_space<vmem>>, vector<2x32xf32>
    tpu.vector_store %arg10[%213, %c0_66], %211 {strides = array<i32>} : memref<16x64xf32, #tpu.memory_space<vmem>>, vector<2x32xf32>,
    %215 = vector.extract_strided_slice %210 {offsets = [0, 32], sizes = [2, 32], strides = [1, 1]} : vector<2x64xf32> to vector<2x32xf32>
    %c7_i32_67 = arith.constant 7 : i32
    %216 = arith.subi %c7_i32_67, %c5_i32 : i32
    %c2_i32_68 = arith.constant 2 : i32
    %217 = arith.muli %216, %c2_i32_68 : i32
    %218 = arith.index_cast %217 : i32 to index
    %c32_69 = arith.constant 32 : index
    %219 = vector.load %arg10[%218, %c32_69] : memref<16x64xf32, #tpu.memory_space<vmem>>, vector<2x32xf32>
    tpu.vector_store %arg10[%218, %c32_69], %215 {strides = array<i32>} : memref<16x64xf32, #tpu.memory_space<vmem>>, vector<2x32xf32>,
    %c6_i32 = arith.constant 6 : i32
    %c2_i32_70 = arith.constant 2 : i32
    %220 = arith.muli %c6_i32, %c2_i32_70 : i32
    %221 = arith.index_cast %220 : i32 to index
    %c0_71 = arith.constant 0 : index
    %222 = vector.load %arg9[%221, %c0_71] : memref<16x192xf32, #tpu.memory_space<vmem>>, vector<2x192xf32>
    %cst_72 = arith.constant dense<0.000000e+00> : vector<2x192xf32>
    %223 = tpu.matmul %210, %7, %cst_72 {dimension_numbers = #tpu.dot_dimension_numbers<[1], [0], [0], [1], [0, 0, 1, 1], [], []>} : vector<2x64xf32>, vector<64x192xf32>, vector<2x192xf32> -> vector<2x192xf32>
    %224 = vector.extract_strided_slice %222 {offsets = [0, 0], sizes = [2, 128], strides = [1, 1]} : vector<2x192xf32> to vector<2x128xf32>
    %225 = vector.extract_strided_slice %223 {offsets = [0, 0], sizes = [2, 128], strides = [1, 1]} : vector<2x192xf32> to vector<2x128xf32>
    %226 = arith.addf %224, %225 : vector<2x128xf32>
    %227 = arith.negf %226 : vector<2x128xf32>
    %228 = math.exp %227 : vector<2x128xf32>
    %cst_73 = arith.constant 1.000000e+00 : f32
    %229 = vector.broadcast %cst_73 : f32 to vector<2x128xf32>
    %230 = arith.addf %229, %228 : vector<2x128xf32>
    %231 = arith.divf %229, %230 : vector<2x128xf32>
    %232 = vector.extract_strided_slice %231 {offsets = [0, 0], sizes = [2, 64], strides = [1, 1]} : vector<2x128xf32> to vector<2x64xf32>
    %233 = vector.extract_strided_slice %231 {offsets = [0, 64], sizes = [2, 64], strides = [1, 1]} : vector<2x128xf32> to vector<2x64xf32>
    %234 = vector.extract_strided_slice %222 {offsets = [0, 128], sizes = [2, 64], strides = [1, 1]} : vector<2x192xf32> to vector<2x64xf32>
    %235 = vector.extract_strided_slice %223 {offsets = [0, 128], sizes = [2, 64], strides = [1, 1]} : vector<2x192xf32> to vector<2x64xf32>
    %236 = vector.broadcast %8 : vector<1x64xf32> to vector<2x64xf32>
    %237 = arith.addf %235, %236 : vector<2x64xf32>
    %238 = arith.mulf %232, %237 : vector<2x64xf32>
    %239 = arith.addf %234, %238 : vector<2x64xf32>
    %240 = math.tanh %239 : vector<2x64xf32>
    %cst_74 = arith.constant 1.000000e+00 : f32
    %241 = vector.broadcast %cst_74 : f32 to vector<2x64xf32>
    %242 = arith.subf %241, %233 : vector<2x64xf32>
    %243 = arith.mulf %242, %240 : vector<2x64xf32>
    %244 = arith.mulf %233, %210 : vector<2x64xf32>
    %245 = arith.addf %243, %244 : vector<2x64xf32>
    %246 = vector.extract_strided_slice %245 {offsets = [0, 0], sizes = [2, 32], strides = [1, 1]} : vector<2x64xf32> to vector<2x32xf32>
    %c2_i32_75 = arith.constant 2 : i32
    %247 = arith.muli %c6_i32, %c2_i32_75 : i32
    %248 = arith.index_cast %247 : i32 to index
    %c0_76 = arith.constant 0 : index
    %249 = vector.load %arg10[%248, %c0_76] : memref<16x64xf32, #tpu.memory_space<vmem>>, vector<2x32xf32>
    tpu.vector_store %arg10[%248, %c0_76], %246 {strides = array<i32>} : memref<16x64xf32, #tpu.memory_space<vmem>>, vector<2x32xf32>,
    %250 = vector.extract_strided_slice %245 {offsets = [0, 32], sizes = [2, 32], strides = [1, 1]} : vector<2x64xf32> to vector<2x32xf32>
    %c7_i32_77 = arith.constant 7 : i32
    %251 = arith.subi %c7_i32_77, %c6_i32 : i32
    %c2_i32_78 = arith.constant 2 : i32
    %252 = arith.muli %251, %c2_i32_78 : i32
    %253 = arith.index_cast %252 : i32 to index
    %c32_79 = arith.constant 32 : index
    %254 = vector.load %arg10[%253, %c32_79] : memref<16x64xf32, #tpu.memory_space<vmem>>, vector<2x32xf32>
    tpu.vector_store %arg10[%253, %c32_79], %250 {strides = array<i32>} : memref<16x64xf32, #tpu.memory_space<vmem>>, vector<2x32xf32>,
    %c7_i32_80 = arith.constant 7 : i32
    %c2_i32_81 = arith.constant 2 : i32
    %255 = arith.muli %c7_i32_80, %c2_i32_81 : i32
    %256 = arith.index_cast %255 : i32 to index
    %c0_82 = arith.constant 0 : index
    %257 = vector.load %arg9[%256, %c0_82] : memref<16x192xf32, #tpu.memory_space<vmem>>, vector<2x192xf32>
    %cst_83 = arith.constant dense<0.000000e+00> : vector<2x192xf32>
    %258 = tpu.matmul %245, %7, %cst_83 {dimension_numbers = #tpu.dot_dimension_numbers<[1], [0], [0], [1], [0, 0, 1, 1], [], []>} : vector<2x64xf32>, vector<64x192xf32>, vector<2x192xf32> -> vector<2x192xf32>
    %259 = vector.extract_strided_slice %257 {offsets = [0, 0], sizes = [2, 128], strides = [1, 1]} : vector<2x192xf32> to vector<2x128xf32>
    %260 = vector.extract_strided_slice %258 {offsets = [0, 0], sizes = [2, 128], strides = [1, 1]} : vector<2x192xf32> to vector<2x128xf32>
    %261 = arith.addf %259, %260 : vector<2x128xf32>
    %262 = arith.negf %261 : vector<2x128xf32>
    %263 = math.exp %262 : vector<2x128xf32>
    %cst_84 = arith.constant 1.000000e+00 : f32
    %264 = vector.broadcast %cst_84 : f32 to vector<2x128xf32>
    %265 = arith.addf %264, %263 : vector<2x128xf32>
    %266 = arith.divf %264, %265 : vector<2x128xf32>
    %267 = vector.extract_strided_slice %266 {offsets = [0, 0], sizes = [2, 64], strides = [1, 1]} : vector<2x128xf32> to vector<2x64xf32>
    %268 = vector.extract_strided_slice %266 {offsets = [0, 64], sizes = [2, 64], strides = [1, 1]} : vector<2x128xf32> to vector<2x64xf32>
    %269 = vector.extract_strided_slice %257 {offsets = [0, 128], sizes = [2, 64], strides = [1, 1]} : vector<2x192xf32> to vector<2x64xf32>
    %270 = vector.extract_strided_slice %258 {offsets = [0, 128], sizes = [2, 64], strides = [1, 1]} : vector<2x192xf32> to vector<2x64xf32>
    %271 = vector.broadcast %8 : vector<1x64xf32> to vector<2x64xf32>
    %272 = arith.addf %270, %271 : vector<2x64xf32>
    %273 = arith.mulf %267, %272 : vector<2x64xf32>
    %274 = arith.addf %269, %273 : vector<2x64xf32>
    %275 = math.tanh %274 : vector<2x64xf32>
    %cst_85 = arith.constant 1.000000e+00 : f32
    %276 = vector.broadcast %cst_85 : f32 to vector<2x64xf32>
    %277 = arith.subf %276, %268 : vector<2x64xf32>
    %278 = arith.mulf %277, %275 : vector<2x64xf32>
    %279 = arith.mulf %268, %245 : vector<2x64xf32>
    %280 = arith.addf %278, %279 : vector<2x64xf32>
    %281 = vector.extract_strided_slice %280 {offsets = [0, 0], sizes = [2, 32], strides = [1, 1]} : vector<2x64xf32> to vector<2x32xf32>
    %c2_i32_86 = arith.constant 2 : i32
    %282 = arith.muli %c7_i32_80, %c2_i32_86 : i32
    %283 = arith.index_cast %282 : i32 to index
    %c0_87 = arith.constant 0 : index
    %284 = vector.load %arg10[%283, %c0_87] : memref<16x64xf32, #tpu.memory_space<vmem>>, vector<2x32xf32>
    tpu.vector_store %arg10[%283, %c0_87], %281 {strides = array<i32>} : memref<16x64xf32, #tpu.memory_space<vmem>>, vector<2x32xf32>,
    %285 = vector.extract_strided_slice %280 {offsets = [0, 32], sizes = [2, 32], strides = [1, 1]} : vector<2x64xf32> to vector<2x32xf32>
    %c7_i32_88 = arith.constant 7 : i32
    %286 = arith.subi %c7_i32_88, %c7_i32_80 : i32
    %c2_i32_89 = arith.constant 2 : i32
    %287 = arith.muli %286, %c2_i32_89 : i32
    %288 = arith.index_cast %287 : i32 to index
    %c32_90 = arith.constant 32 : index
    %289 = vector.load %arg10[%288, %c32_90] : memref<16x64xf32, #tpu.memory_space<vmem>>, vector<2x32xf32>
    tpu.vector_store %arg10[%288, %c32_90], %285 {strides = array<i32>} : memref<16x64xf32, #tpu.memory_space<vmem>>, vector<2x32xf32>,
    %c8_i32 = arith.constant 8 : i32
    %c0_91 = arith.constant 0 : index
    %c0_92 = arith.constant 0 : index
    %290 = vector.load %arg10[%c0_91, %c0_92] : memref<16x64xf32, #tpu.memory_space<vmem>>, vector<16x64xf32>
    %cst_93 = arith.constant 0.000000e+00 : f32
    %291 = vector.broadcast %cst_93 : f32 to vector<16x64xf32>
    %292 = arith.cmpf oge, %290, %291 : vector<16x64xf32>
    %cst_94 = arith.constant 1.000000e-01 : f32
    %293 = vector.broadcast %cst_94 : f32 to vector<16x64xf32>
    %294 = arith.mulf %293, %290 : vector<16x64xf32>
    %295 = arith.select %292, %290, %294 : vector<16x64xi1>, vector<16x64xf32>
    %c0_95 = arith.constant 0 : index
    %c0_96 = arith.constant 0 : index
    %296 = vector.load %arg6[%c0_95, %c0_96] : memref<64x16xf32, #tpu.memory_space<vmem>>, vector<64x16xf32>
    %cst_97 = arith.constant dense<0.000000e+00> : vector<16x16xf32>
    %297 = tpu.matmul %295, %296, %cst_97 {dimension_numbers = #tpu.dot_dimension_numbers<[1], [0], [0], [1], [0, 0, 1, 1], [], []>} : vector<16x64xf32>, vector<64x16xf32>, vector<16x16xf32> -> vector<16x16xf32>
    %c0_98 = arith.constant 0 : index
    %c0_99 = arith.constant 0 : index
    %298 = vector.load %arg7[%c0_98, %c0_99] : memref<1x16xf32, #tpu.memory_space<vmem>>, vector<1x16xf32>
    %299 = vector.broadcast %298 : vector<1x16xf32> to vector<16x16xf32>
    %300 = arith.addf %297, %299 : vector<16x16xf32>
    %cst_100 = arith.constant 0.000000e+00 : f32
    %301 = vector.broadcast %cst_100 : f32 to vector<16x16xf32>
    %302 = arith.cmpf oge, %300, %301 : vector<16x16xf32>
    %cst_101 = arith.constant 1.000000e-01 : f32
    %303 = vector.broadcast %cst_101 : f32 to vector<16x16xf32>
    %304 = arith.mulf %303, %300 : vector<16x16xf32>
    %305 = arith.select %302, %300, %304 : vector<16x16xi1>, vector<16x16xf32>
    %c0_102 = arith.constant 0 : index
    %c0_103 = arith.constant 0 : index
    %306 = vector.load %arg8[%c0_102, %c0_103] : memref<16x16xf32, #tpu.memory_space<vmem>>, vector<16x16xf32>
    tpu.vector_store %arg8[%c0_102, %c0_103], %305 {strides = array<i32>} : memref<16x16xf32, #tpu.memory_space<vmem>>, vector<16x16xf32>,
    return
  }
  func.func @transform_0(%arg0: i32) -> (i32, i32) {
    %c0_i32 = arith.constant 0 : i32
    %c0_i32_0 = arith.constant 0 : i32
    %c0_i32_1 = arith.constant 0 : i32
    return %c0_i32, %c0_i32_0 : i32, i32
  }
  func.func @transform_1(%arg0: i32) -> (i32, i32) {
    %c0_i32 = arith.constant 0 : i32
    %c0_i32_0 = arith.constant 0 : i32
    %c0_i32_1 = arith.constant 0 : i32
    return %c0_i32, %c0_i32_0 : i32, i32
  }
  func.func @transform_2(%arg0: i32) -> (i32, i32) {
    %c0_i32 = arith.constant 0 : i32
    %c0_i32_0 = arith.constant 0 : i32
    %c0_i32_1 = arith.constant 0 : i32
    return %c0_i32, %c0_i32_0 : i32, i32
  }
  func.func @transform_3(%arg0: i32) -> (i32, i32) {
    %c0_i32 = arith.constant 0 : i32
    %c0_i32_0 = arith.constant 0 : i32
    %c0_i32_1 = arith.constant 0 : i32
    return %c0_i32, %c0_i32_0 : i32, i32
  }
  func.func @transform_4(%arg0: i32) -> (i32, i32) {
    %c0_i32 = arith.constant 0 : i32
    %c0_i32_0 = arith.constant 0 : i32
    %c0_i32_1 = arith.constant 0 : i32
    return %c0_i32, %c0_i32_0 : i32, i32
  }
  func.func @transform_5(%arg0: i32) -> (i32, i32) {
    %c0_i32 = arith.constant 0 : i32
    %c0_i32_0 = arith.constant 0 : i32
    %c0_i32_1 = arith.constant 0 : i32
    return %c0_i32, %c0_i32_0 : i32, i32
  }
  func.func @transform_6(%arg0: i32) -> (i32, i32) {
    %c0_i32 = arith.constant 0 : i32
    %c0_i32_0 = arith.constant 0 : i32
    %c0_i32_1 = arith.constant 0 : i32
    return %c0_i32, %c0_i32_0 : i32, i32
  }
  func.func @transform_7(%arg0: i32) -> (i32, i32) {
    %c0_i32 = arith.constant 0 : i32
    %c0_i32_0 = arith.constant 0 : i32
    %c0_i32_1 = arith.constant 0 : i32
    return %c0_i32, %c0_i32_0 : i32, i32
  }
}

</mosaic_0001>

<llo_original>
// kernel: temporal_lstm_forward.2
$region0: #{temporal_lstm_forward.2}
  #allocation0 [shape = 'u32[]', space=smem, size = 0x4, offset = 0x4, fixed_abs, tag = 'smem constant byte address 0x4 - core index']
  #allocation1 [shape = 'u32[144,128]{1,0:T(1,128)}', space=vmem, size = 0x12000, scoped, tag = 'internal scratch']
  #allocation2 [shape = 'f32[16,192]{1,0:T(8,128)}', space=vmem, size = 0x4000, scoped, tag = 'scratch operand']
  %s0 = inlined_call_operand.vmem [shape: f32[16,32], index: 0, kind: input, shape index: {}]
  %s1 = inlined_call_operand.vmem [shape: f32[32,192], index: 1, kind: input, shape index: {}]
  %s2 = inlined_call_operand.vmem [shape: f32[1,192], index: 2, kind: input, shape index: {}]
  %s3 = inlined_call_operand.vmem [shape: f32[64,192], index: 3, kind: input, shape index: {}]
  %s4 = inlined_call_operand.vmem [shape: f32[1,64], index: 4, kind: input, shape index: {}]
  %s5 = inlined_call_operand.vmem [shape: f32[16,64], index: 5, kind: output, shape index: {}]
  %s6 = sld [smem:[#allocation0]]
  $region30: #{temporal_lstm_forward.2} parent=0
    _
  %s8 = ssub.s32 1, %s6
  %s9 = scalar_select 0, %s8, %s6
  // Predicated region
  $region2: #{temporal_lstm_forward.2} parent=0 // pred_check
    _
  $region3: #{temporal_lstm_forward.2} parent=0 // pred_check_branch
    %11 = sbr.rel (0) target = $region5
  $region4: #{temporal_lstm_forward.2} parent=0 // pred_region
    _
  $region5: #{temporal_lstm_forward.2} parent=0 // pred_fallthru
    _
  // Predicated region
  $region6: #{temporal_lstm_forward.2} parent=0 // pred_check
    _
  $region7: #{temporal_lstm_forward.2} parent=0 // pred_check_branch
    %13 = sbr.rel (0) target = $region9
  $region8: #{temporal_lstm_forward.2} parent=0 // pred_region
    _
  $region9: #{temporal_lstm_forward.2} parent=0 // pred_fallthru
    _
  // Predicated region
  $region10: #{temporal_lstm_forward.2} parent=0 // pred_check
    _
  $region11: #{temporal_lstm_forward.2} parent=0 // pred_check_branch
    %15 = sbr.rel (0) target = $region13
  $region12: #{temporal_lstm_forward.2} parent=0 // pred_region
    _
  $region13: #{temporal_lstm_forward.2} parent=0 // pred_fallthru
    _
  // Predicated region
  $region14: #{temporal_lstm_forward.2} parent=0 // pred_check
    _
  $region15: #{temporal_lstm_forward.2} parent=0 // pred_check_branch
    %17 = sbr.rel (0) target = $region17
  $region16: #{temporal_lstm_forward.2} parent=0 // pred_region
    _
  $region17: #{temporal_lstm_forward.2} parent=0 // pred_fallthru
    _
  // Predicated region
  $region18: #{temporal_lstm_forward.2} parent=0 // pred_check
    _
  $region19: #{temporal_lstm_forward.2} parent=0 // pred_check_branch
    %19 = sbr.rel (0) target = $region21
  $region20: #{temporal_lstm_forward.2} parent=0 // pred_region
    _
  $region21: #{temporal_lstm_forward.2} parent=0 // pred_fallthru
    _
  %v20 = vld [vmem:[%s0] sm:$0xff]
  %v21 = vld [vmem:[%s0 + $0x8] sm:$0xff]
  %v22 = vld [vmem:[%s1] sm:$0xff]
  %v23 = vld [vmem:[%s1 + $0x8] sm:$0xff]
  %v24 = vld [vmem:[%s1 + $0x10] sm:$0xff]
  %v25 = vld [vmem:[%s1 + $0x18] sm:$0xff]
  %v26 = vld [vmem:[%s1 + $0x20] sm:$0xff]
  %v27 = vld [vmem:[%s1 + $0x28] sm:$0xff]
  %v28 = vld [vmem:[%s1 + $0x30] sm:$0xff]
  %v29 = vld [vmem:[%s1 + $0x38] sm:$0xff]
  %v30 = vld [vmem:[%s2] sm:$0x3]
  %v32 = vlaneseq
  %v33 = vshrl.u32 %v32, 7
  %v34 = vsub.s32 0, %v33
  %v35 = vrot.slane %v30, %v34
  %v36 = vlaneseq
  %v37 = vshrl.u32 %v36, 7
  %v38 = vsub.s32 1, %v37
  %v39 = vrot.slane %v30, %v38
  %vm42 = vcmask 261120
  %v44 = vsel %vm42, %v20, 0
  %v47 = vsel %vm42, %v21, 0
  %49 = vmatprep.subr.mxu0 0.0
  %50 = vmatpush1.msra.mxu0 0.0
  %51 = vmatprep.subr.mxu0 0.0
  %52 = vmatpush1.msra.mxu0 0.0
  %53 = vmatprep.subr.mxu0 0.0
  %54 = vmatpush1.msra.mxu0 0.0
  %55 = vmatprep.subr.mxu0 0.0
  %56 = vmatpush1.msra.mxu0 0.0
  %57 = vmatprep.subr.mxu0 0.0
  %58 = vmatpush1.msra.mxu0 0.0
  %59 = vmatprep.subr.mxu0 0.0
  %60 = vmatpush1.msra.mxu0 0.0
  %61 = vmatprep.subr.mxu0 0.0
  %62 = vmatpush1.msra.mxu0 0.0
  %63 = vmatprep.subr.mxu0 0.0
  %64 = vmatpush1.msra.mxu0 0.0
  %65 = vmatprep.subr.mxu0 0.0
  %66 = vmatpush1.msra.mxu0 0.0
  %67 = vmatprep.subr.mxu0 0.0
  %68 = vmatpush1.msra.mxu0 0.0
  %69 = vmatprep.subr.mxu0 0.0
  %70 = vmatpush1.msra.mxu0 0.0
  %71 = vmatprep.subr.mxu0 0.0
  %72 = vmatpush1.msra.mxu0 0.0
  %73 = vmatprep.subr.mxu0 %v29
  %74 = vmatpush1.msra.mxu0 %v28
  %75 = vmatprep.subr.mxu0 %v27
  %76 = vmatpush1.msra.mxu0 %v26
  %77 = vmatprep.subr.mxu0 %v25
  %78 = vmatpush1.msra.mxu0 %v24
  %79 = vmatprep.subr.mxu0 %v23
  %80 = vmatpush1.msra.mxu0 %v22
  %81 = vmatprep.subr.mxu0 0.0
  %82 = vmatpush2.msra.mxu0 0.0
  %83 = vmatprep.subr.mxu0 0.0
  %84 = vmatpush2.msra.mxu0 0.0
  %85 = vmatprep.subr.mxu0 0.0
  %86 = vmatpush2.msra.mxu0 0.0
  %87 = vmatprep.subr.mxu0 0.0
  %88 = vmatpush2.msra.mxu0 0.0
  %89 = vmatprep.subr.mxu0 0.0
  %90 = vmatpush2.msra.mxu0 0.0
  %91 = vmatprep.subr.mxu0 0.0
  %92 = vmatpush2.msra.mxu0 0.0
  %93 = vmatprep.subr.mxu0 0.0
  %94 = vmatpush2.msra.mxu0 0.0
  %95 = vmatprep.subr.mxu0 0.0
  %96 = vmatpush2.msra.mxu0 0.0
  %97 = vmatprep.subr.mxu0 0.0
  %98 = vmatpush2.msra.mxu0 0.0
  %99 = vmatprep.subr.mxu0 0.0
  %100 = vmatpush2.msra.mxu0 0.0
  %101 = vmatprep.subr.mxu0 0.0
  %102 = vmatpush2.msra.mxu0 0.0
  %103 = vmatprep.subr.mxu0 0.0
  %104 = vmatpush2.msra.mxu0 0.0
  %105 = vmatprep.subr.mxu0 0.0
  %106 = vmatpush2.msra.mxu0 0.0
  %107 = vmatprep.subr.mxu0 0.0
  %108 = vmatpush2.msra.mxu0 0.0
  %109 = vmatprep.subr.mxu0 0.0
  %110 = vmatpush2.msra.mxu0 0.0
  %111 = vmatprep.subr.mxu0 0.0
  %112 = vmatpush2.msra.mxu0 0.0
  %113 = vmatprep.mubr.f32.mxu0 0.0
  %114 = vmatmul.mubr.f32.gmra.mxu0 %v44
  %v115 = vpop.f32.mrf.mxu0
  %v116 = vadd.f32 %v35, %v115
  %v117 = vpop.f32.mrf.mxu0
  %v118 = vadd.f32 %v39, %v117
  %119 = vmatprep.mubr.f32.mxu0 0.0
  %120 = vmatmul.mubr.f32.gmra.mxu0 %v47
  %v121 = vpop.f32.mrf.mxu0
  %v122 = vadd.f32 %v35, %v121
  %v123 = vpop.f32.mrf.mxu0
  %v124 = vadd.f32 %v39, %v123
  %125 = vdwg.mxu0
  %126 = vst [vmem:[#allocation2] sm:$0xff] %v116
  %vm127 = vcmask 523264
  %128 = vst.msk [vmem:[#allocation2 + $0x8] sm:$0xff] %vm127, %v118
  %129 = vst [vmem:[#allocation2 + $0x10] sm:$0xff] %v122
  %130 = vst.msk [vmem:[#allocation2 + $0x18] sm:$0xff] %vm127, %v124
  %v131 = vld [vmem:[%s3] sm:$0xff]
  %v132 = vld [vmem:[%s3 + $0x8] sm:$0xff]
  %v133 = vld [vmem:[%s3 + $0x10] sm:$0xff]
  %v134 = vld [vmem:[%s3 + $0x18] sm:$0xff]
  %v135 = vld [vmem:[%s3 + $0x20] sm:$0xff]
  %v136 = vld [vmem:[%s3 + $0x28] sm:$0xff]
  %v137 = vld [vmem:[%s3 + $0x30] sm:$0xff]
  %v138 = vld [vmem:[%s3 + $0x38] sm:$0xff]
  %v139 = vld [vmem:[%s3 + $0x40] sm:$0xff]
  %v140 = vld [vmem:[%s3 + $0x48] sm:$0xff]
  %v141 = vld [vmem:[%s3 + $0x50] sm:$0xff]
  %v142 = vld [vmem:[%s3 + $0x58] sm:$0xff]
  %v143 = vld [vmem:[%s3 + $0x60] sm:$0xff]
  %v144 = vld [vmem:[%s3 + $0x68] sm:$0xff]
  %v145 = vld [vmem:[%s3 + $0x70] sm:$0xff]
  %v146 = vld [vmem:[%s3 + $0x78] sm:$0xff]
  %v147 = vld [vmem:[%s4] sm:$0x1]
  %v148 = vld [vmem:[#allocation2] sm:$0x3]
  %v149 = vld [vmem:[#allocation2 + $0x8] sm:$0x3]
  %v151 = vsel %vm127, 0.0, 0
  %153 = vmatprep.subr.mxu0 0.0
  %154 = vmatpush1.msra.mxu0 0.0
  %155 = vmatprep.subr.mxu0 0.0
  %156 = vmatpush1.msra.mxu0 0.0
  %157 = vmatprep.subr.mxu0 0.0
  %158 = vmatpush1.msra.mxu0 0.0
  %159 = vmatprep.subr.mxu0 0.0
  %160 = vmatpush1.msra.mxu0 0.0
  %161 = vmatprep.subr.mxu0 0.0
  %162 = vmatpush1.msra.mxu0 0.0
  %163 = vmatprep.subr.mxu0 0.0
  %164 = vmatpush1.msra.mxu0 0.0
  %165 = vmatprep.subr.mxu0 0.0
  %166 = vmatpush1.msra.mxu0 0.0
  %167 = vmatprep.subr.mxu0 0.0
  %168 = vmatpush1.msra.mxu0 0.0
  %169 = vmatprep.subr.mxu0 %v146
  %170 = vmatpush1.msra.mxu0 %v145
  %171 = vmatprep.subr.mxu0 %v144
  %172 = vmatpush1.msra.mxu0 %v143
  %173 = vmatprep.subr.mxu0 %v142
  %174 = vmatpush1.msra.mxu0 %v141
  %175 = vmatprep.subr.mxu0 %v140
  %176 = vmatpush1.msra.mxu0 %v139
  %177 = vmatprep.subr.mxu0 %v138
  %178 = vmatpush1.msra.mxu0 %v137
  %179 = vmatprep.subr.mxu0 %v136
  %180 = vmatpush1.msra.mxu0 %v135
  %181 = vmatprep.subr.mxu0 %v134
  %182 = vmatpush1.msra.mxu0 %v133
  %183 = vmatprep.subr.mxu0 %v132
  %184 = vmatpush1.msra.mxu0 %v131
  %185 = vmatprep.subr.mxu0 0.0
  %186 = vmatpush2.msra.mxu0 0.0
  %187 = vmatprep.subr.mxu0 0.0
  %188 = vmatpush2.msra.mxu0 0.0
  %189 = vmatprep.subr.mxu0 0.0
  %190 = vmatpush2.msra.mxu0 0.0
  %191 = vmatprep.subr.mxu0 0.0
  %192 = vmatpush2.msra.mxu0 0.0
  %193 = vmatprep.subr.mxu0 0.0
  %194 = vmatpush2.msra.mxu0 0.0
  %195 = vmatprep.subr.mxu0 0.0
  %196 = vmatpush2.msra.mxu0 0.0
  %197 = vmatprep.subr.mxu0 0.0
  %198 = vmatpush2.msra.mxu0 0.0
  %199 = vmatprep.subr.mxu0 0.0
  %200 = vmatpush2.msra.mxu0 0.0
  %201 = vmatprep.subr.mxu0 0.0
  %202 = vmatpush2.msra.mxu0 0.0
  %203 = vmatprep.subr.mxu0 0.0
  %204 = vmatpush2.msra.mxu0 0.0
  %205 = vmatprep.subr.mxu0 0.0
  %206 = vmatpush2.msra.mxu0 0.0
  %207 = vmatprep.subr.mxu0 0.0
  %208 = vmatpush2.msra.mxu0 0.0
  %209 = vmatprep.subr.mxu0 0.0
  %210 = vmatpush2.msra.mxu0 0.0
  %211 = vmatprep.subr.mxu0 0.0
  %212 = vmatpush2.msra.mxu0 0.0
  %213 = vmatprep.subr.mxu0 0.0
  %214 = vmatpush2.msra.mxu0 0.0
  %215 = vmatprep.subr.mxu0 0.0
  %216 = vmatpush2.msra.mxu0 0.0
  %217 = vmatprep.mubr.f32.mxu0 0.0
  %218 = vmatmul.mubr.f32.gmra.mxu0 %v151
  %v219 = vpop.f32.mrf.mxu0
  %v220 = vadd.f32 0.0, %v219
  %v221 = vpop.f32.mrf.mxu0
  %v222 = vadd.f32 0.0, %v221
  %223 = vdwg.mxu0
  %v224 = vadd.f32 %v148, %v220
  %v225 = vxor.u32 %v224, 2147483648
  %v226 = vmul.f32 %v225, 1.442695
  %v227 = vpow.pop %v226
  %v228 = vadd.f32 %v227, 1.0
  %v229 = vrcp.pop %v228
  %v230 = vmul.f32 1.0, %v229
  %v232 = vlaneseq
  %v233 = vshrl.u32 %v232, 7
  %v234 = vsub.s32 0, %v233
  %v235 = vrot.slane %v147, %v234
  %v237 = vadd.f32 %v222, %v235
  %v238 = vmul.f32 %v230, %v237
  %v239 = vadd.f32 %v149, %v238
  %v240 = vtanh.pop %v239
  %v241 = vsub.f32 1.0, %v230
  %243 = vrot.lane.b32.xlu0 %v240, 64
  %v244 = vpop.permute.xlu0 %243
  %v246 = vmul.f32 %v241, %v244
  %v247 = vmul.f32 %v230, 0.0
  %v248 = vadd.f32 %v246, %v247
  %250 = vrot.lane.b32.xlu0 %v248, 64
  %v251 = vpop.permute.xlu0 %250
  %vm253 = vcmask 254976
  %254 = vst.msk [vmem:[%s5] sm:$0x3] %vm253, %v251
  %vm255 = vcmask 517376
  %256 = vst.msk [vmem:[%s5 + $0xe] sm:$0x3] %vm255, %v251
  %v257 = vld [vmem:[#allocation2] sm:$0xc]
  %v258 = vld [vmem:[#allocation2 + $0x8] sm:$0xc]
  %v259 = vsel %vm127, %v251, 0
  %261 = vmatprep.subr.mxu0 0.0
  %262 = vmatpush1.msra.mxu0 0.0
  %263 = vmatprep.subr.mxu0 0.0
  %264 = vmatpush1.msra.mxu0 0.0
  %265 = vmatprep.subr.mxu0 0.0
  %266 = vmatpush1.msra.mxu0 0.0
  %267 = vmatprep.subr.mxu0 0.0
  %268 = vmatpush1.msra.mxu0 0.0
  %269 = vmatprep.subr.mxu0 0.0
  %270 = vmatpush1.msra.mxu0 0.0
  %271 = vmatprep.subr.mxu0 0.0
  %272 = vmatpush1.msra.mxu0 0.0
  %273 = vmatprep.subr.mxu0 0.0
  %274 = vmatpush1.msra.mxu0 0.0
  %275 = vmatprep.subr.mxu0 0.0
  %276 = vmatpush1.msra.mxu0 0.0
  %277 = vmatprep.subr.mxu0 %v146
  %278 = vmatpush1.msra.mxu0 %v145
  %279 = vmatprep.subr.mxu0 %v144
  %280 = vmatpush1.msra.mxu0 %v143
  %281 = vmatprep.subr.mxu0 %v142
  %282 = vmatpush1.msra.mxu0 %v141
  %283 = vmatprep.subr.mxu0 %v140
  %284 = vmatpush1.msra.mxu0 %v139
  %285 = vmatprep.subr.mxu0 %v138
  %286 = vmatpush1.msra.mxu0 %v137
  %287 = vmatprep.subr.mxu0 %v136
  %288 = vmatpush1.msra.mxu0 %v135
  %289 = vmatprep.subr.mxu0 %v134
  %290 = vmatpush1.msra.mxu0 %v133
  %291 = vmatprep.subr.mxu0 %v132
  %292 = vmatpush1.msra.mxu0 %v131
  %293 = vmatprep.subr.mxu0 0.0
  %294 = vmatpush2.msra.mxu0 0.0
  %295 = vmatprep.subr.mxu0 0.0
  %296 = vmatpush2.msra.mxu0 0.0
  %297 = vmatprep.subr.mxu0 0.0
  %298 = vmatpush2.msra.mxu0 0.0
  %299 = vmatprep.subr.mxu0 0.0
  %300 = vmatpush2.msra.mxu0 0.0
  %301 = vmatprep.subr.mxu0 0.0
  %302 = vmatpush2.msra.mxu0 0.0
  %303 = vmatprep.subr.mxu0 0.0
  %304 = vmatpush2.msra.mxu0 0.0
  %305 = vmatprep.subr.mxu0 0.0
  %306 = vmatpush2.msra.mxu0 0.0
  %307 = vmatprep.subr.mxu0 0.0
  %308 = vmatpush2.msra.mxu0 0.0
  %309 = vmatprep.subr.mxu0 0.0
  %310 = vmatpush2.msra.mxu0 0.0
  %311 = vmatprep.subr.mxu0 0.0
  %312 = vmatpush2.msra.mxu0 0.0
  %313 = vmatprep.subr.mxu0 0.0
  %314 = vmatpush2.msra.mxu0 0.0
  %315 = vmatprep.subr.mxu0 0.0
  %316 = vmatpush2.msra.mxu0 0.0
  %317 = vmatprep.subr.mxu0 0.0
  %318 = vmatpush2.msra.mxu0 0.0
  %319 = vmatprep.subr.mxu0 0.0
  %320 = vmatpush2.msra.mxu0 0.0
  %321 = vmatprep.subr.mxu0 0.0
  %322 = vmatpush2.msra.mxu0 0.0
  %323 = vmatprep.subr.mxu0 0.0
  %324 = vmatpush2.msra.mxu0 0.0
  %325 = vmatprep.mubr.f32.mxu0 0.0
  %326 = vmatmul.mubr.f32.gmra.mxu0 %v259
  %v327 = vpop.f32.mrf.mxu0
  %v328 = vadd.f32 0.0, %v327
  %v329 = vpop.f32.mrf.mxu0
  %v330 = vadd.f32 0.0, %v329
  %331 = vdwg.mxu0
  %v333 = vrot.slane %v328, 6
  %v335 = vadd.f32 %v257, %v333
  %v336 = vxor.u32 %v335, 2147483648
  %v337 = vmul.f32 %v336, 1.442695
  %v338 = vpow.pop %v337
  %v339 = vadd.f32 %v338, 1.0
  %v340 = vrcp.pop %v339
  %v341 = vmul.f32 1.0, %v340
  %v342 = vadd.f32 %v330, %v235
  %v344 = vrot.slane %v342, 6
  %v346 = vmul.f32 %v341, %v344
  %v347 = vadd.f32 %v258, %v346
  %v348 = vtanh.pop %v347
  %v349 = vsub.f32 1.0, %v341
  %351 = vrot.lane.b32.xlu0 %v348, 64
  %v352 = vpop.permute.xlu0 %351
  %v354 = vmul.f32 %v349, %v352
  %v355 = vrot.slane %v248, 6
  %v357 = vmul.f32 %v341, %v355
  %v358 = vadd.f32 %v354, %v357
  %360 = vrot.lane.b32.xlu0 %v358, 64
  %v361 = vpop.permute.xlu0 %360
  %vm363 = vcmask 257026
  %364 = vst.msk [vmem:[%s5] sm:$0xc] %vm363, %v361
  %vm365 = vcmask 519426
  %366 = vst.msk [vmem:[%s5 + $0xa] sm:$0xc] %vm365, %v361
  %v367 = vld [vmem:[#allocation2] sm:$0x30]
  %v368 = vld [vmem:[#allocation2 + $0x8] sm:$0x30]
  %v369 = vrot.slane %v358, 2
  %370 = vrot.lane.b32.xlu0 %v369, 64
  %v371 = vpop.permute.xlu0 %370
  %v372 = vsel %vm127, %v371, 0
  %374 = vmatprep.subr.mxu0 0.0
  %375 = vmatpush1.msra.mxu0 0.0
  %376 = vmatprep.subr.mxu0 0.0
  %377 = vmatpush1.msra.mxu0 0.0
  %378 = vmatprep.subr.mxu0 0.0
  %379 = vmatpush1.msra.mxu0 0.0
  %380 = vmatprep.subr.mxu0 0.0
  %381 = vmatpush1.msra.mxu0 0.0
  %382 = vmatprep.subr.mxu0 0.0
  %383 = vmatpush1.msra.mxu0 0.0
  %384 = vmatprep.subr.mxu0 0.0
  %385 = vmatpush1.msra.mxu0 0.0
  %386 = vmatprep.subr.mxu0 0.0
  %387 = vmatpush1.msra.mxu0 0.0
  %388 = vmatprep.subr.mxu0 0.0
  %389 = vmatpush1.msra.mxu0 0.0
  %390 = vmatprep.subr.mxu0 %v146
  %391 = vmatpush1.msra.mxu0 %v145
  %392 = vmatprep.subr.mxu0 %v144
  %393 = vmatpush1.msra.mxu0 %v143
  %394 = vmatprep.subr.mxu0 %v142
  %395 = vmatpush1.msra.mxu0 %v141
  %396 = vmatprep.subr.mxu0 %v140
  %397 = vmatpush1.msra.mxu0 %v139
  %398 = vmatprep.subr.mxu0 %v138
  %399 = vmatpush1.msra.mxu0 %v137
  %400 = vmatprep.subr.mxu0 %v136
  %401 = vmatpush1.msra.mxu0 %v135
  %402 = vmatprep.subr.mxu0 %v134
  %403 = vmatpush1.msra.mxu0 %v133
  %404 = vmatprep.subr.mxu0 %v132
  %405 = vmatpush1.msra.mxu0 %v131
  %406 = vmatprep.subr.mxu0 0.0
  %407 = vmatpush2.msra.mxu0 0.0
  %408 = vmatprep.subr.mxu0 0.0
  %409 = vmatpush2.msra.mxu0 0.0
  %410 = vmatprep.subr.mxu0 0.0
  %411 = vmatpush2.msra.mxu0 0.0
  %412 = vmatprep.subr.mxu0 0.0
  %413 = vmatpush2.msra.mxu0 0.0
  %414 = vmatprep.subr.mxu0 0.0
  %415 = vmatpush2.msra.mxu0 0.0
  %416 = vmatprep.subr.mxu0 0.0
  %417 = vmatpush2.msra.mxu0 0.0
  %418 = vmatprep.subr.mxu0 0.0
  %419 = vmatpush2.msra.mxu0 0.0
  %420 = vmatprep.subr.mxu0 0.0
  %421 = vmatpush2.msra.mxu0 0.0
  %422 = vmatprep.subr.mxu0 0.0
  %423 = vmatpush2.msra.mxu0 0.0
  %424 = vmatprep.subr.mxu0 0.0
  %425 = vmatpush2.msra.mxu0 0.0
  %426 = vmatprep.subr.mxu0 0.0
  %427 = vmatpush2.msra.mxu0 0.0
  %428 = vmatprep.subr.mxu0 0.0
  %429 = vmatpush2.msra.mxu0 0.0
  %430 = vmatprep.subr.mxu0 0.0
  %431 = vmatpush2.msra.mxu0 0.0
  %432 = vmatprep.subr.mxu0 0.0
  %433 = vmatpush2.msra.mxu0 0.0
  %434 = vmatprep.subr.mxu0 0.0
  %435 = vmatpush2.msra.mxu0 0.0
  %436 = vmatprep.subr.mxu0 0.0
  %437 = vmatpush2.msra.mxu0 0.0
  %438 = vmatprep.mubr.f32.mxu0 0.0
  %439 = vmatmul.mubr.f32.gmra.mxu0 %v372
  %v440 = vpop.f32.mrf.mxu0
  %v441 = vadd.f32 0.0, %v440
  %v442 = vpop.f32.mrf.mxu0
  %v443 = vadd.f32 0.0, %v442
  %444 = vdwg.mxu0
  %v446 = vrot.slane %v441, 4
  %v448 = vadd.f32 %v367, %v446
  %v449 = vxor.u32 %v448, 2147483648
  %v450 = vmul.f32 %v449, 1.442695
  %v451 = vpow.pop %v450
  %v452 = vadd.f32 %v451, 1.0
  %v453 = vrcp.pop %v452
  %v454 = vmul.f32 1.0, %v453
  %v455 = vadd.f32 %v443, %v235
  %v457 = vrot.slane %v455, 4
  %v459 = vmul.f32 %v454, %v457
  %v460 = vadd.f32 %v368, %v459
  %v461 = vtanh.pop %v460
  %v462 = vsub.f32 1.0, %v454
  %464 = vrot.lane.b32.xlu0 %v461, 64
  %v465 = vpop.permute.xlu0 %464
  %v467 = vmul.f32 %v462, %v465
  %v468 = vrot.slane %v358, 6
  %v470 = vmul.f32 %v454, %v468
  %v471 = vadd.f32 %v467, %v470
  %473 = vrot.lane.b32.xlu0 %v471, 64
  %v474 = vpop.permute.xlu0 %473
  %vm476 = vcmask 259076
  %477 = vst.msk [vmem:[%s5] sm:$0x30] %vm476, %v474
  %vm478 = vcmask 521476
  %479 = vst.msk [vmem:[%s5 + $0x6] sm:$0x30] %vm478, %v474
  %v480 = vld [vmem:[#allocation2] sm:$0xc0]
  %v481 = vld [vmem:[#allocation2 + $0x8] sm:$0xc0]
  %v482 = vrot.slane %v471, 4
  %483 = vrot.lane.b32.xlu0 %v482, 64
  %v484 = vpop.permute.xlu0 %483
  %v485 = vsel %vm127, %v484, 0
  %487 = vmatprep.subr.mxu0 0.0
  %488 = vmatpush1.msra.mxu0 0.0
  %489 = vmatprep.subr.mxu0 0.0
  %490 = vmatpush1.msra.mxu0 0.0
  %491 = vmatprep.subr.mxu0 0.0
  %492 = vmatpush1.msra.mxu0 0.0
  %493 = vmatprep.subr.mxu0 0.0
  %494 = vmatpush1.msra.mxu0 0.0
  %495 = vmatprep.subr.mxu0 0.0
  %496 = vmatpush1.msra.mxu0 0.0
  %497 = vmatprep.subr.mxu0 0.0
  %498 = vmatpush1.msra.mxu0 0.0
  %499 = vmatprep.subr.mxu0 0.0
  %500 = vmatpush1.msra.mxu0 0.0
  %501 = vmatprep.subr.mxu0 0.0
  %502 = vmatpush1.msra.mxu0 0.0
  %503 = vmatprep.subr.mxu0 %v146
  %504 = vmatpush1.msra.mxu0 %v145
  %505 = vmatprep.subr.mxu0 %v144
  %506 = vmatpush1.msra.mxu0 %v143
  %507 = vmatprep.subr.mxu0 %v142
  %508 = vmatpush1.msra.mxu0 %v141
  %509 = vmatprep.subr.mxu0 %v140
  %510 = vmatpush1.msra.mxu0 %v139
  %511 = vmatprep.subr.mxu0 %v138
  %512 = vmatpush1.msra.mxu0 %v137
  %513 = vmatprep.subr.mxu0 %v136
  %514 = vmatpush1.msra.mxu0 %v135
  %515 = vmatprep.subr.mxu0 %v134
  %516 = vmatpush1.msra.mxu0 %v133
  %517 = vmatprep.subr.mxu0 %v132
  %518 = vmatpush1.msra.mxu0 %v131
  %519 = vmatprep.subr.mxu0 0.0
  %520 = vmatpush2.msra.mxu0 0.0
  %521 = vmatprep.subr.mxu0 0.0
  %522 = vmatpush2.msra.mxu0 0.0
  %523 = vmatprep.subr.mxu0 0.0
  %524 = vmatpush2.msra.mxu0 0.0
  %525 = vmatprep.subr.mxu0 0.0
  %526 = vmatpush2.msra.mxu0 0.0
  %527 = vmatprep.subr.mxu0 0.0
  %528 = vmatpush2.msra.mxu0 0.0
  %529 = vmatprep.subr.mxu0 0.0
  %530 = vmatpush2.msra.mxu0 0.0
  %531 = vmatprep.subr.mxu0 0.0
  %532 = vmatpush2.msra.mxu0 0.0
  %533 = vmatprep.subr.mxu0 0.0
  %534 = vmatpush2.msra.mxu0 0.0
  %535 = vmatprep.subr.mxu0 0.0
  %536 = vmatpush2.msra.mxu0 0.0
  %537 = vmatprep.subr.mxu0 0.0
  %538 = vmatpush2.msra.mxu0 0.0
  %539 = vmatprep.subr.mxu0 0.0
  %540 = vmatpush2.msra.mxu0 0.0
  %541 = vmatprep.subr.mxu0 0.0
  %542 = vmatpush2.msra.mxu0 0.0
  %543 = vmatprep.subr.mxu0 0.0
  %544 = vmatpush2.msra.mxu0 0.0
  %545 = vmatprep.subr.mxu0 0.0
  %546 = vmatpush2.msra.mxu0 0.0
  %547 = vmatprep.subr.mxu0 0.0
  %548 = vmatpush2.msra.mxu0 0.0
  %549 = vmatprep.subr.mxu0 0.0
  %550 = vmatpush2.msra.mxu0 0.0
  %551 = vmatprep.mubr.f32.mxu0 0.0
  %552 = vmatmul.mubr.f32.gmra.mxu0 %v485
  %v553 = vpop.f32.mrf.mxu0
  %v554 = vadd.f32 0.0, %v553
  %v555 = vpop.f32.mrf.mxu0
  %v556 = vadd.f32 0.0, %v555
  %557 = vdwg.mxu0
  %v559 = vrot.slane %v554, 2
  %v561 = vadd.f32 %v480, %v559
  %v562 = vxor.u32 %v561, 2147483648
  %v563 = vmul.f32 %v562, 1.442695
  %v564 = vpow.pop %v563
  %v565 = vadd.f32 %v564, 1.0
  %v566 = vrcp.pop %v565
  %v567 = vmul.f32 1.0, %v566
  %v568 = vadd.f32 %v556, %v235
  %v570 = vrot.slane %v568, 2
  %v572 = vmul.f32 %v567, %v570
  %v573 = vadd.f32 %v481, %v572
  %v574 = vtanh.pop %v573
  %v575 = vsub.f32 1.0, %v567
  %577 = vrot.lane.b32.xlu0 %v574, 64
  %v578 = vpop.permute.xlu0 %577
  %v580 = vmul.f32 %v575, %v578
  %v581 = vrot.slane %v471, 6
  %v583 = vmul.f32 %v567, %v581
  %v584 = vadd.f32 %v580, %v583
  %586 = vrot.lane.b32.xlu0 %v584, 64
  %v587 = vpop.permute.xlu0 %586
  %vm589 = vcmask 261126
  %590 = vst.msk [vmem:[%s5] sm:$0xc0] %vm589, %v587
  %vm591 = vcmask 523526
  %592 = vst.msk [vmem:[%s5 + $0x2] sm:$0xc0] %vm591, %v587
  %v593 = vld [vmem:[#allocation2 + $0x10] sm:$0x3]
  %v594 = vld [vmem:[#allocation2 + $0x18] sm:$0x3]
  %v595 = vrot.slane %v584, 6
  %596 = vrot.lane.b32.xlu0 %v595, 64
  %v597 = vpop.permute.xlu0 %596
  %v598 = vsel %vm127, %v597, 0
  %600 = vmatprep.subr.mxu0 0.0
  %601 = vmatpush1.msra.mxu0 0.0
  %602 = vmatprep.subr.mxu0 0.0
  %603 = vmatpush1.msra.mxu0 0.0
  %604 = vmatprep.subr.mxu0 0.0
  %605 = vmatpush1.msra.mxu0 0.0
  %606 = vmatprep.subr.mxu0 0.0
  %607 = vmatpush1.msra.mxu0 0.0
  %608 = vmatprep.subr.mxu0 0.0
  %609 = vmatpush1.msra.mxu0 0.0
  %610 = vmatprep.subr.mxu0 0.0
  %611 = vmatpush1.msra.mxu0 0.0
  %612 = vmatprep.subr.mxu0 0.0
  %613 = vmatpush1.msra.mxu0 0.0
  %614 = vmatprep.subr.mxu0 0.0
  %615 = vmatpush1.msra.mxu0 0.0
  %616 = vmatprep.subr.mxu0 %v146
  %617 = vmatpush1.msra.mxu0 %v145
  %618 = vmatprep.subr.mxu0 %v144
  %619 = vmatpush1.msra.mxu0 %v143
  %620 = vmatprep.subr.mxu0 %v142
  %621 = vmatpush1.msra.mxu0 %v141
  %622 = vmatprep.subr.mxu0 %v140
  %623 = vmatpush1.msra.mxu0 %v139
  %624 = vmatprep.subr.mxu0 %v138
  %625 = vmatpush1.msra.mxu0 %v137
  %626 = vmatprep.subr.mxu0 %v136
  %627 = vmatpush1.msra.mxu0 %v135
  %628 = vmatprep.subr.mxu0 %v134
  %629 = vmatpush1.msra.mxu0 %v133
  %630 = vmatprep.subr.mxu0 %v132
  %631 = vmatpush1.msra.mxu0 %v131
  %632 = vmatprep.subr.mxu0 0.0
  %633 = vmatpush2.msra.mxu0 0.0
  %634 = vmatprep.subr.mxu0 0.0
  %635 = vmatpush2.msra.mxu0 0.0
  %636 = vmatprep.subr.mxu0 0.0
  %637 = vmatpush2.msra.mxu0 0.0
  %638 = vmatprep.subr.mxu0 0.0
  %639 = vmatpush2.msra.mxu0 0.0
  %640 = vmatprep.subr.mxu0 0.0
  %641 = vmatpush2.msra.mxu0 0.0
  %642 = vmatprep.subr.mxu0 0.0
  %643 = vmatpush2.msra.mxu0 0.0
  %644 = vmatprep.subr.mxu0 0.0
  %645 = vmatpush2.msra.mxu0 0.0
  %646 = vmatprep.subr.mxu0 0.0
  %647 = vmatpush2.msra.mxu0 0.0
  %648 = vmatprep.subr.mxu0 0.0
  %649 = vmatpush2.msra.mxu0 0.0
  %650 = vmatprep.subr.mxu0 0.0
  %651 = vmatpush2.msra.mxu0 0.0
  %652 = vmatprep.subr.mxu0 0.0
  %653 = vmatpush2.msra.mxu0 0.0
  %654 = vmatprep.subr.mxu0 0.0
  %655 = vmatpush2.msra.mxu0 0.0
  %656 = vmatprep.subr.mxu0 0.0
  %657 = vmatpush2.msra.mxu0 0.0
  %658 = vmatprep.subr.mxu0 0.0
  %659 = vmatpush2.msra.mxu0 0.0
  %660 = vmatprep.subr.mxu0 0.0
  %661 = vmatpush2.msra.mxu0 0.0
  %662 = vmatprep.subr.mxu0 0.0
  %663 = vmatpush2.msra.mxu0 0.0
  %664 = vmatprep.mubr.f32.mxu0 0.0
  %665 = vmatmul.mubr.f32.gmra.mxu0 %v598
  %v666 = vpop.f32.mrf.mxu0
  %v667 = vadd.f32 0.0, %v666
  %v668 = vpop.f32.mrf.mxu0
  %v669 = vadd.f32 0.0, %v668
  %670 = vdwg.mxu0
  %v671 = vadd.f32 %v593, %v667
  %v672 = vxor.u32 %v671, 2147483648
  %v673 = vmul.f32 %v672, 1.442695
  %v674 = vpow.pop %v673
  %v675 = vadd.f32 %v674, 1.0
  %v676 = vrcp.pop %v675
  %v677 = vmul.f32 1.0, %v676
  %v678 = vadd.f32 %v669, %v235
  %v679 = vmul.f32 %v677, %v678
  %v680 = vadd.f32 %v594, %v679
  %v681 = vtanh.pop %v680
  %v682 = vsub.f32 1.0, %v677
  %684 = vrot.lane.b32.xlu0 %v681, 64
  %v685 = vpop.permute.xlu0 %684
  %v687 = vmul.f32 %v682, %v685
  %v689 = vmul.f32 %v677, %v595
  %v690 = vadd.f32 %v687, %v689
  %692 = vrot.lane.b32.xlu0 %v690, 64
  %v693 = vpop.permute.xlu0 %692
  %695 = vst.msk [vmem:[%s5 + $0x8] sm:$0x3] %vm253, %v693
  %696 = vst.msk [vmem:[%s5 + $0x6] sm:$0x3] %vm255, %v693
  %v697 = vld [vmem:[#allocation2 + $0x10] sm:$0xc]
  %v698 = vld [vmem:[#allocation2 + $0x18] sm:$0xc]
  %v699 = vsel %vm127, %v693, 0
  %701 = vmatprep.subr.mxu0 0.0
  %702 = vmatpush1.msra.mxu0 0.0
  %703 = vmatprep.subr.mxu0 0.0
  %704 = vmatpush1.msra.mxu0 0.0
  %705 = vmatprep.subr.mxu0 0.0
  %706 = vmatpush1.msra.mxu0 0.0
  %707 = vmatprep.subr.mxu0 0.0
  %708 = vmatpush1.msra.mxu0 0.0
  %709 = vmatprep.subr.mxu0 0.0
  %710 = vmatpush1.msra.mxu0 0.0
  %711 = vmatprep.subr.mxu0 0.0
  %712 = vmatpush1.msra.mxu0 0.0
  %713 = vmatprep.subr.mxu0 0.0
  %714 = vmatpush1.msra.mxu0 0.0
  %715 = vmatprep.subr.mxu0 0.0
  %716 = vmatpush1.msra.mxu0 0.0
  %717 = vmatprep.subr.mxu0 %v146
  %718 = vmatpush1.msra.mxu0 %v145
  %719 = vmatprep.subr.mxu0 %v144
  %720 = vmatpush1.msra.mxu0 %v143
  %721 = vmatprep.subr.mxu0 %v142
  %722 = vmatpush1.msra.mxu0 %v141
  %723 = vmatprep.subr.mxu0 %v140
  %724 = vmatpush1.msra.mxu0 %v139
  %725 = vmatprep.subr.mxu0 %v138
  %726 = vmatpush1.msra.mxu0 %v137
  %727 = vmatprep.subr.mxu0 %v136
  %728 = vmatpush1.msra.mxu0 %v135
  %729 = vmatprep.subr.mxu0 %v134
  %730 = vmatpush1.msra.mxu0 %v133
  %731 = vmatprep.subr.mxu0 %v132
  %732 = vmatpush1.msra.mxu0 %v131
  %733 = vmatprep.subr.mxu0 0.0
  %734 = vmatpush2.msra.mxu0 0.0
  %735 = vmatprep.subr.mxu0 0.0
  %736 = vmatpush2.msra.mxu0 0.0
  %737 = vmatprep.subr.mxu0 0.0
  %738 = vmatpush2.msra.mxu0 0.0
  %739 = vmatprep.subr.mxu0 0.0
  %740 = vmatpush2.msra.mxu0 0.0
  %741 = vmatprep.subr.mxu0 0.0
  %742 = vmatpush2.msra.mxu0 0.0
  %743 = vmatprep.subr.mxu0 0.0
  %744 = vmatpush2.msra.mxu0 0.0
  %745 = vmatprep.subr.mxu0 0.0
  %746 = vmatpush2.msra.mxu0 0.0
  %747 = vmatprep.subr.mxu0 0.0
  %748 = vmatpush2.msra.mxu0 0.0
  %749 = vmatprep.subr.mxu0 0.0
  %750 = vmatpush2.msra.mxu0 0.0
  %751 = vmatprep.subr.mxu0 0.0
  %752 = vmatpush2.msra.mxu0 0.0
  %753 = vmatprep.subr.mxu0 0.0
  %754 = vmatpush2.msra.mxu0 0.0
  %755 = vmatprep.subr.mxu0 0.0
  %756 = vmatpush2.msra.mxu0 0.0
  %757 = vmatprep.subr.mxu0 0.0
  %758 = vmatpush2.msra.mxu0 0.0
  %759 = vmatprep.subr.mxu0 0.0
  %760 = vmatpush2.msra.mxu0 0.0
  %761 = vmatprep.subr.mxu0 0.0
  %762 = vmatpush2.msra.mxu0 0.0
  %763 = vmatprep.subr.mxu0 0.0
  %764 = vmatpush2.msra.mxu0 0.0
  %765 = vmatprep.mubr.f32.mxu0 0.0
  %766 = vmatmul.mubr.f32.gmra.mxu0 %v699
  %v767 = vpop.f32.mrf.mxu0
  %v768 = vadd.f32 0.0, %v767
  %v769 = vpop.f32.mrf.mxu0
  %v770 = vadd.f32 0.0, %v769
  %771 = vdwg.mxu0
  %v773 = vrot.slane %v768, 6
  %v775 = vadd.f32 %v697, %v773
  %v776 = vxor.u32 %v775, 2147483648
  %v777 = vmul.f32 %v776, 1.442695
  %v778 = vpow.pop %v777
  %v779 = vadd.f32 %v778, 1.0
  %v780 = vrcp.pop %v779
  %v781 = vmul.f32 1.0, %v780
  %v782 = vadd.f32 %v770, %v235
  %v784 = vrot.slane %v782, 6
  %v786 = vmul.f32 %v781, %v784
  %v787 = vadd.f32 %v698, %v786
  %v788 = vtanh.pop %v787
  %v789 = vsub.f32 1.0, %v781
  %791 = vrot.lane.b32.xlu0 %v788, 64
  %v792 = vpop.permute.xlu0 %791
  %v794 = vmul.f32 %v789, %v792
  %v795 = vrot.slane %v690, 6
  %v797 = vmul.f32 %v781, %v795
  %v798 = vadd.f32 %v794, %v797
  %800 = vrot.lane.b32.xlu0 %v798, 64
  %v801 = vpop.permute.xlu0 %800
  %803 = vst.msk [vmem:[%s5 + $0x8] sm:$0xc] %vm363, %v801
  %804 = vst.msk [vmem:[%s5 + $0x2] sm:$0xc] %vm365, %v801
  %v805 = vld [vmem:[#allocation2 + $0x10] sm:$0x30]
  %v806 = vld [vmem:[#allocation2 + $0x18] sm:$0x30]
  %v807 = vrot.slane %v798, 2
  %808 = vrot.lane.b32.xlu0 %v807, 64
  %v809 = vpop.permute.xlu0 %808
  %v810 = vsel %vm127, %v809, 0
  %812 = vmatprep.subr.mxu0 0.0
  %813 = vmatpush1.msra.mxu0 0.0
  %814 = vmatprep.subr.mxu0 0.0
  %815 = vmatpush1.msra.mxu0 0.0
  %816 = vmatprep.subr.mxu0 0.0
  %817 = vmatpush1.msra.mxu0 0.0
  %818 = vmatprep.subr.mxu0 0.0
  %819 = vmatpush1.msra.mxu0 0.0
  %820 = vmatprep.subr.mxu0 0.0
  %821 = vmatpush1.msra.mxu0 0.0
  %822 = vmatprep.subr.mxu0 0.0
  %823 = vmatpush1.msra.mxu0 0.0
  %824 = vmatprep.subr.mxu0 0.0
  %825 = vmatpush1.msra.mxu0 0.0
  %826 = vmatprep.subr.mxu0 0.0
  %827 = vmatpush1.msra.mxu0 0.0
  %828 = vmatprep.subr.mxu0 %v146
  %829 = vmatpush1.msra.mxu0 %v145
  %830 = vmatprep.subr.mxu0 %v144
  %831 = vmatpush1.msra.mxu0 %v143
  %832 = vmatprep.subr.mxu0 %v142
  %833 = vmatpush1.msra.mxu0 %v141
  %834 = vmatprep.subr.mxu0 %v140
  %835 = vmatpush1.msra.mxu0 %v139
  %836 = vmatprep.subr.mxu0 %v138
  %837 = vmatpush1.msra.mxu0 %v137
  %838 = vmatprep.subr.mxu0 %v136
  %839 = vmatpush1.msra.mxu0 %v135
  %840 = vmatprep.subr.mxu0 %v134
  %841 = vmatpush1.msra.mxu0 %v133
  %842 = vmatprep.subr.mxu0 %v132
  %843 = vmatpush1.msra.mxu0 %v131
  %844 = vmatprep.subr.mxu0 0.0
  %845 = vmatpush2.msra.mxu0 0.0
  %846 = vmatprep.subr.mxu0 0.0
  %847 = vmatpush2.msra.mxu0 0.0
  %848 = vmatprep.subr.mxu0 0.0
  %849 = vmatpush2.msra.mxu0 0.0
  %850 = vmatprep.subr.mxu0 0.0
  %851 = vmatpush2.msra.mxu0 0.0
  %852 = vmatprep.subr.mxu0 0.0
  %853 = vmatpush2.msra.mxu0 0.0
  %854 = vmatprep.subr.mxu0 0.0
  %855 = vmatpush2.msra.mxu0 0.0
  %856 = vmatprep.subr.mxu0 0.0
  %857 = vmatpush2.msra.mxu0 0.0
  %858 = vmatprep.subr.mxu0 0.0
  %859 = vmatpush2.msra.mxu0 0.0
  %860 = vmatprep.subr.mxu0 0.0
  %861 = vmatpush2.msra.mxu0 0.0
  %862 = vmatprep.subr.mxu0 0.0
  %863 = vmatpush2.msra.mxu0 0.0
  %864 = vmatprep.subr.mxu0 0.0
  %865 = vmatpush2.msra.mxu0 0.0
  %866 = vmatprep.subr.mxu0 0.0
  %867 = vmatpush2.msra.mxu0 0.0
  %868 = vmatprep.subr.mxu0 0.0
  %869 = vmatpush2.msra.mxu0 0.0
  %870 = vmatprep.subr.mxu0 0.0
  %871 = vmatpush2.msra.mxu0 0.0
  %872 = vmatprep.subr.mxu0 0.0
  %873 = vmatpush2.msra.mxu0 0.0
  %874 = vmatprep.subr.mxu0 0.0
  %875 = vmatpush2.msra.mxu0 0.0
  %876 = vmatprep.mubr.f32.mxu0 0.0
  %877 = vmatmul.mubr.f32.gmra.mxu0 %v810
  %v878 = vpop.f32.mrf.mxu0
  %v879 = vadd.f32 0.0, %v878
  %v880 = vpop.f32.mrf.mxu0
  %v881 = vadd.f32 0.0, %v880
  %882 = vdwg.mxu0
  %v884 = vrot.slane %v879, 4
  %v886 = vadd.f32 %v805, %v884
  %v887 = vxor.u32 %v886, 2147483648
  %v888 = vmul.f32 %v887, 1.442695
  %v889 = vpow.pop %v888
  %v890 = vadd.f32 %v889, 1.0
  %v891 = vrcp.pop %v890
  %v892 = vmul.f32 1.0, %v891
  %v893 = vadd.f32 %v881, %v235
  %v895 = vrot.slane %v893, 4
  %v897 = vmul.f32 %v892, %v895
  %v898 = vadd.f32 %v806, %v897
  %v899 = vtanh.pop %v898
  %v900 = vsub.f32 1.0, %v892
  %902 = vrot.lane.b32.xlu0 %v899, 64
  %v903 = vpop.permute.xlu0 %902
  %v905 = vmul.f32 %v900, %v903
  %v906 = vrot.slane %v798, 6
  %v908 = vmul.f32 %v892, %v906
  %v909 = vadd.f32 %v905, %v908
  %911 = vrot.lane.b32.xlu0 %v909, 64
  %v912 = vpop.permute.xlu0 %911
  %914 = vst.msk [vmem:[%s5 + $0x8] sm:$0x30] %vm476, %v912
  %915 = vst.msk [vmem:[%s5 - $0x2] sm:$0x30] %vm478, %v912
  %v916 = vld [vmem:[#allocation2 + $0x10] sm:$0xc0]
  %v917 = vld [vmem:[#allocation2 + $0x18] sm:$0xc0]
  %v918 = vrot.slane %v909, 4
  %919 = vrot.lane.b32.xlu0 %v918, 64
  %v920 = vpop.permute.xlu0 %919
  %v921 = vsel %vm127, %v920, 0
  %923 = vmatprep.subr.mxu0 0.0
  %924 = vmatpush1.msra.mxu0 0.0
  %925 = vmatprep.subr.mxu0 0.0
  %926 = vmatpush1.msra.mxu0 0.0
  %927 = vmatprep.subr.mxu0 0.0
  %928 = vmatpush1.msra.mxu0 0.0
  %929 = vmatprep.subr.mxu0 0.0
  %930 = vmatpush1.msra.mxu0 0.0
  %931 = vmatprep.subr.mxu0 0.0
  %932 = vmatpush1.msra.mxu0 0.0
  %933 = vmatprep.subr.mxu0 0.0
  %934 = vmatpush1.msra.mxu0 0.0
  %935 = vmatprep.subr.mxu0 0.0
  %936 = vmatpush1.msra.mxu0 0.0
  %937 = vmatprep.subr.mxu0 0.0
  %938 = vmatpush1.msra.mxu0 0.0
  %939 = vmatprep.subr.mxu0 %v146
  %940 = vmatpush1.msra.mxu0 %v145
  %941 = vmatprep.subr.mxu0 %v144
  %942 = vmatpush1.msra.mxu0 %v143
  %943 = vmatprep.subr.mxu0 %v142
  %944 = vmatpush1.msra.mxu0 %v141
  %945 = vmatprep.subr.mxu0 %v140
  %946 = vmatpush1.msra.mxu0 %v139
  %947 = vmatprep.subr.mxu0 %v138
  %948 = vmatpush1.msra.mxu0 %v137
  %949 = vmatprep.subr.mxu0 %v136
  %950 = vmatpush1.msra.mxu0 %v135
  %951 = vmatprep.subr.mxu0 %v134
  %952 = vmatpush1.msra.mxu0 %v133
  %953 = vmatprep.subr.mxu0 %v132
  %954 = vmatpush1.msra.mxu0 %v131
  %955 = vmatprep.subr.mxu0 0.0
  %956 = vmatpush2.msra.mxu0 0.0
  %957 = vmatprep.subr.mxu0 0.0
  %958 = vmatpush2.msra.mxu0 0.0
  %959 = vmatprep.subr.mxu0 0.0
  %960 = vmatpush2.msra.mxu0 0.0
  %961 = vmatprep.subr.mxu0 0.0
  %962 = vmatpush2.msra.mxu0 0.0
  %963 = vmatprep.subr.mxu0 0.0
  %964 = vmatpush2.msra.mxu0 0.0
  %965 = vmatprep.subr.mxu0 0.0
  %966 = vmatpush2.msra.mxu0 0.0
  %967 = vmatprep.subr.mxu0 0.0
  %968 = vmatpush2.msra.mxu0 0.0
  %969 = vmatprep.subr.mxu0 0.0
  %970 = vmatpush2.msra.mxu0 0.0
  %971 = vmatprep.subr.mxu0 0.0
  %972 = vmatpush2.msra.mxu0 0.0
  %973 = vmatprep.subr.mxu0 0.0
  %974 = vmatpush2.msra.mxu0 0.0
  %975 = vmatprep.subr.mxu0 0.0
  %976 = vmatpush2.msra.mxu0 0.0
  %977 = vmatprep.subr.mxu0 0.0
  %978 = vmatpush2.msra.mxu0 0.0
  %979 = vmatprep.subr.mxu0 0.0
  %980 = vmatpush2.msra.mxu0 0.0
  %981 = vmatprep.subr.mxu0 0.0
  %982 = vmatpush2.msra.mxu0 0.0
  %983 = vmatprep.subr.mxu0 0.0
  %984 = vmatpush2.msra.mxu0 0.0
  %985 = vmatprep.subr.mxu0 0.0
  %986 = vmatpush2.msra.mxu0 0.0
  %987 = vmatprep.mubr.f32.mxu0 0.0
  %988 = vmatmul.mubr.f32.gmra.mxu0 %v921
  %v989 = vpop.f32.mrf.mxu0
  %v990 = vadd.f32 0.0, %v989
  %v991 = vpop.f32.mrf.mxu0
  %v992 = vadd.f32 0.0, %v991
  %993 = vdwg.mxu0
  %v995 = vrot.slane %v990, 2
  %v997 = vadd.f32 %v916, %v995
  %v998 = vxor.u32 %v997, 2147483648
  %v999 = vmul.f32 %v998, 1.442695
  %v1000 = vpow.pop %v999
  %v1001 = vadd.f32 %v1000, 1.0
  %v1002 = vrcp.pop %v1001
  %v1003 = vmul.f32 1.0, %v1002
  %v1004 = vadd.f32 %v992, %v235
  %v1006 = vrot.slane %v1004, 2
  %v1008 = vmul.f32 %v1003, %v1006
  %v1009 = vadd.f32 %v917, %v1008
  %v1010 = vtanh.pop %v1009
  %v1011 = vsub.f32 1.0, %v1003
  %1013 = vrot.lane.b32.xlu0 %v1010, 64
  %v1014 = vpop.permute.xlu0 %1013
  %v1016 = vmul.f32 %v1011, %v1014
  %v1017 = vrot.slane %v909, 6
  %v1019 = vmul.f32 %v1003, %v1017
  %v1020 = vadd.f32 %v1016, %v1019
  %1022 = vrot.lane.b32.xlu0 %v1020, 64
  %v1023 = vpop.permute.xlu0 %1022
  %1025 = vst.msk [vmem:[%s5 + $0x8] sm:$0xc0] %vm589, %v1023
  %1026 = vst.msk [vmem:[%s5 - $0x6] sm:$0xc0] %vm591, %v1023
  // Predicated region
  $region22: #{temporal_lstm_forward.2} parent=0 // pred_check
    _
  $region23: #{temporal_lstm_forward.2} parent=0 // pred_check_branch
    %1028 = sbr.rel (0) target = $region25
  $region24: #{temporal_lstm_forward.2} parent=0 // pred_region
    _
  $region25: #{temporal_lstm_forward.2} parent=0 // pred_fallthru
    _
  // Predicated region
  $region26: #{temporal_lstm_forward.2} parent=0 // pred_check
    _
  $region27: #{temporal_lstm_forward.2} parent=0 // pred_check_branch
    %1030 = sbr.rel (0) target = $region29
  $region28: #{temporal_lstm_forward.2} parent=0 // pred_region
    _
  $region29: #{temporal_lstm_forward.2} parent=0 // pred_fallthru
    _

// kernel: temporal_lstm_forward.3
$region0: #{temporal_lstm_forward.3}
  #allocation0 [shape = 'u32[]', space=smem, size = 0x4, offset = 0x4, fixed_abs, tag = 'smem constant byte address 0x4 - core index']
  #allocation1 [shape = 'u32[144,128]{1,0:T(1,128)}', space=vmem, size = 0x12000, scoped, tag = 'internal scratch']
  #allocation2 [shape = 'f32[16,192]{1,0:T(8,128)}', space=vmem, size = 0x4000, scoped, tag = 'scratch operand']
  #allocation3 [shape = 'f32[16,64]{1,0:T(8,128)}', space=vmem, size = 0x2000, scoped, tag = 'scratch operand']
  %s0 = inlined_call_operand.vmem [shape: f32[16,128], index: 0, kind: input, shape index: {}]
  %s1 = inlined_call_operand.vmem [shape: f32[128,192], index: 1, kind: input, shape index: {}]
  %s2 = inlined_call_operand.vmem [shape: f32[1,192], index: 2, kind: input, shape index: {}]
  %s3 = inlined_call_operand.vmem [shape: f32[64,192], index: 3, kind: input, shape index: {}]
  %s4 = inlined_call_operand.vmem [shape: f32[1,64], index: 4, kind: input, shape index: {}]
  %s5 = inlined_call_operand.vmem [shape: f32[64,16], index: 5, kind: input, shape index: {}]
  %s6 = inlined_call_operand.vmem [shape: f32[1,16], index: 6, kind: input, shape index: {}]
  %s7 = inlined_call_operand.hbm [shape: f32[16,16], index: 7, kind: output, shape index: {}]
  %s8 = sld [smem:[#allocation0]]
  $region38: #{temporal_lstm_forward.3} parent=0
    _
  %s10 = ssub.s32 1, %s8
  %s11 = scalar_select 0, %s10, %s8
  $region1: #{temporal_lstm_forward.3} parent=0
    #allocation4 [shape = 'u8[8192]{0}', space=vmem, size = 0x2000, scoped, tag = 'output window, operand 0, single buffered']
    #allocation5 [shape = 's32[1]{0}', space=sflag, size = 0x4, scoped, tag = 'scoped memory for temporal_lstm_forward.3']
    %12 = vsyncpa [#allocation5], 0
    // Predicated region
    $region2: #{temporal_lstm_forward.3} parent=1 // pred_check
      _
    $region3: #{temporal_lstm_forward.3} parent=1 // pred_check_branch
      %14 = sbr.rel (0) target = $region5
    $region4: #{temporal_lstm_forward.3} parent=1 // pred_region
      _
    $region5: #{temporal_lstm_forward.3} parent=1 // pred_fallthru
      _
    // Predicated region
    $region6: #{temporal_lstm_forward.3} parent=1 // pred_check
      _
    $region7: #{temporal_lstm_forward.3} parent=1 // pred_check_branch
      %16 = sbr.rel (0) target = $region9
    $region8: #{temporal_lstm_forward.3} parent=1 // pred_region
      _
    $region9: #{temporal_lstm_forward.3} parent=1 // pred_fallthru
      _
    // Predicated region
    $region10: #{temporal_lstm_forward.3} parent=1 // pred_check
      _
    $region11: #{temporal_lstm_forward.3} parent=1 // pred_check_branch
      %18 = sbr.rel (0) target = $region13
    $region12: #{temporal_lstm_forward.3} parent=1 // pred_region
      _
    $region13: #{temporal_lstm_forward.3} parent=1 // pred_fallthru
      _
    // Predicated region
    $region14: #{temporal_lstm_forward.3} parent=1 // pred_check
      _
    $region15: #{temporal_lstm_forward.3} parent=1 // pred_check_branch
      %20 = sbr.rel (0) target = $region17
    $region16: #{temporal_lstm_forward.3} parent=1 // pred_region
      _
    $region17: #{temporal_lstm_forward.3} parent=1 // pred_fallthru
      _
    // Predicated region
    $region18: #{temporal_lstm_forward.3} parent=1 // pred_check
      _
    $region19: #{temporal_lstm_forward.3} parent=1 // pred_check_branch
      %22 = sbr.rel (0) target = $region21
    $region20: #{temporal_lstm_forward.3} parent=1 // pred_region
      _
    $region21: #{temporal_lstm_forward.3} parent=1 // pred_fallthru
      _
    // Predicated region
    $region22: #{temporal_lstm_forward.3} parent=1 // pred_check
      _
    $region23: #{temporal_lstm_forward.3} parent=1 // pred_check_branch
      %24 = sbr.rel (0) target = $region25
    $region24: #{temporal_lstm_forward.3} parent=1 // pred_region
      _
    $region25: #{temporal_lstm_forward.3} parent=1 // pred_fallthru
      _
    // Predicated region
    $region26: #{temporal_lstm_forward.3} parent=1 // pred_check
      _
    $region27: #{temporal_lstm_forward.3} parent=1 // pred_check_branch
      %26 = sbr.rel (0) target = $region29
    $region28: #{temporal_lstm_forward.3} parent=1 // pred_region
      _
    $region29: #{temporal_lstm_forward.3} parent=1 // pred_fallthru
      _
    %v27 = vld [vmem:[%s0] sm:$0xff]
    %v28 = vld [vmem:[%s0 + $0x8] sm:$0xff]
    %v29 = vld [vmem:[%s1] sm:$0xff]
    %v30 = vld [vmem:[%s1 + $0x8] sm:$0xff]
    %v31 = vld [vmem:[%s1 + $0x10] sm:$0xff]
    %v32 = vld [vmem:[%s1 + $0x18] sm:$0xff]
    %v33 = vld [vmem:[%s1 + $0x20] sm:$0xff]
    %v34 = vld [vmem:[%s1 + $0x28] sm:$0xff]
    %v35 = vld [vmem:[%s1 + $0x30] sm:$0xff]
    %v36 = vld [vmem:[%s1 + $0x38] sm:$0xff]
    %v37 = vld [vmem:[%s1 + $0x40] sm:$0xff]
    %v38 = vld [vmem:[%s1 + $0x48] sm:$0xff]
    %v39 = vld [vmem:[%s1 + $0x50] sm:$0xff]
    %v40 = vld [vmem:[%s1 + $0x58] sm:$0xff]
    %v41 = vld [vmem:[%s1 + $0x60] sm:$0xff]
    %v42 = vld [vmem:[%s1 + $0x68] sm:$0xff]
    %v43 = vld [vmem:[%s1 + $0x70] sm:$0xff]
    %v44 = vld [vmem:[%s1 + $0x78] sm:$0xff]
    %v45 = vld [vmem:[%s1 + $0x80] sm:$0xff]
    %v46 = vld [vmem:[%s1 + $0x88] sm:$0xff]
    %v47 = vld [vmem:[%s1 + $0x90] sm:$0xff]
    %v48 = vld [vmem:[%s1 + $0x98] sm:$0xff]
    %v49 = vld [vmem:[%s1 + $0xa0] sm:$0xff]
    %v50 = vld [vmem:[%s1 + $0xa8] sm:$0xff]
    %v51 = vld [vmem:[%s1 + $0xb0] sm:$0xff]
    %v52 = vld [vmem:[%s1 + $0xb8] sm:$0xff]
    %v53 = vld [vmem:[%s1 + $0xc0] sm:$0xff]
    %v54 = vld [vmem:[%s1 + $0xc8] sm:$0xff]
    %v55 = vld [vmem:[%s1 + $0xd0] sm:$0xff]
    %v56 = vld [vmem:[%s1 + $0xd8] sm:$0xff]
    %v57 = vld [vmem:[%s1 + $0xe0] sm:$0xff]
    %v58 = vld [vmem:[%s1 + $0xe8] sm:$0xff]
    %v59 = vld [vmem:[%s1 + $0xf0] sm:$0xff]
    %v60 = vld [vmem:[%s1 + $0xf8] sm:$0xff]
    %v61 = vld [vmem:[%s2] sm:$0x3]
    %v63 = vlaneseq
    %v64 = vshrl.u32 %v63, 7
    %v65 = vsub.s32 0, %v64
    %v66 = vrot.slane %v61, %v65
    %v67 = vlaneseq
    %v68 = vshrl.u32 %v67, 7
    %v69 = vsub.s32 1, %v68
    %v70 = vrot.slane %v61, %v69
    %73 = vmatprep.subr.mxu0 %v60
    %74 = vmatpush1.msra.mxu0 %v59
    %75 = vmatprep.subr.mxu0 %v58
    %76 = vmatpush1.msra.mxu0 %v57
    %77 = vmatprep.subr.mxu0 %v56
    %78 = vmatpush1.msra.mxu0 %v55
    %79 = vmatprep.subr.mxu0 %v54
    %80 = vmatpush1.msra.mxu0 %v53
    %81 = vmatprep.subr.mxu0 %v52
    %82 = vmatpush1.msra.mxu0 %v51
    %83 = vmatprep.subr.mxu0 %v50
    %84 = vmatpush1.msra.mxu0 %v49
    %85 = vmatprep.subr.mxu0 %v48
    %86 = vmatpush1.msra.mxu0 %v47
    %87 = vmatprep.subr.mxu0 %v46
    %88 = vmatpush1.msra.mxu0 %v45
    %89 = vmatprep.subr.mxu0 %v44
    %90 = vmatpush1.msra.mxu0 %v43
    %91 = vmatprep.subr.mxu0 %v42
    %92 = vmatpush1.msra.mxu0 %v41
    %93 = vmatprep.subr.mxu0 %v40
    %94 = vmatpush1.msra.mxu0 %v39
    %95 = vmatprep.subr.mxu0 %v38
    %96 = vmatpush1.msra.mxu0 %v37
    %97 = vmatprep.subr.mxu0 %v36
    %98 = vmatpush1.msra.mxu0 %v35
    %99 = vmatprep.subr.mxu0 %v34
    %100 = vmatpush1.msra.mxu0 %v33
    %101 = vmatprep.subr.mxu0 %v32
    %102 = vmatpush1.msra.mxu0 %v31
    %103 = vmatprep.subr.mxu0 %v30
    %104 = vmatpush1.msra.mxu0 %v29
    %105 = vmatprep.subr.mxu0 0.0
    %106 = vmatpush2.msra.mxu0 0.0
    %107 = vmatprep.subr.mxu0 0.0
    %108 = vmatpush2.msra.mxu0 0.0
    %109 = vmatprep.subr.mxu0 0.0
    %110 = vmatpush2.msra.mxu0 0.0
    %111 = vmatprep.subr.mxu0 0.0
    %112 = vmatpush2.msra.mxu0 0.0
    %113 = vmatprep.subr.mxu0 0.0
    %114 = vmatpush2.msra.mxu0 0.0
    %115 = vmatprep.subr.mxu0 0.0
    %116 = vmatpush2.msra.mxu0 0.0
    %117 = vmatprep.subr.mxu0 0.0
    %118 = vmatpush2.msra.mxu0 0.0
    %119 = vmatprep.subr.mxu0 0.0
    %120 = vmatpush2.msra.mxu0 0.0
    %121 = vmatprep.subr.mxu0 0.0
    %122 = vmatpush2.msra.mxu0 0.0
    %123 = vmatprep.subr.mxu0 0.0
    %124 = vmatpush2.msra.mxu0 0.0
    %125 = vmatprep.subr.mxu0 0.0
    %126 = vmatpush2.msra.mxu0 0.0
    %127 = vmatprep.subr.mxu0 0.0
    %128 = vmatpush2.msra.mxu0 0.0
    %129 = vmatprep.subr.mxu0 0.0
    %130 = vmatpush2.msra.mxu0 0.0
    %131 = vmatprep.subr.mxu0 0.0
    %132 = vmatpush2.msra.mxu0 0.0
    %133 = vmatprep.subr.mxu0 0.0
    %134 = vmatpush2.msra.mxu0 0.0
    %135 = vmatprep.subr.mxu0 0.0
    %136 = vmatpush2.msra.mxu0 0.0
    %137 = vmatprep.mubr.f32.mxu0 0.0
    %138 = vmatmul.mubr.f32.gmra.mxu0 %v27
    %v139 = vpop.f32.mrf.mxu0
    %v140 = vadd.f32 %v66, %v139
    %v141 = vpop.f32.mrf.mxu0
    %v142 = vadd.f32 %v70, %v141
    %143 = vmatprep.mubr.f32.mxu0 0.0
    %144 = vmatmul.mubr.f32.gmra.mxu0 %v28
    %v145 = vpop.f32.mrf.mxu0
    %v146 = vadd.f32 %v66, %v145
    %v147 = vpop.f32.mrf.mxu0
    %v148 = vadd.f32 %v70, %v147
    %149 = vdwg.mxu0
    %150 = vst [vmem:[#allocation2] sm:$0xff] %v140
    %vm151 = vcmask 523264
    %152 = vst.msk [vmem:[#allocation2 + $0x8] sm:$0xff] %vm151, %v142
    %153 = vst [vmem:[#allocation2 + $0x10] sm:$0xff] %v146
    %154 = vst.msk [vmem:[#allocation2 + $0x18] sm:$0xff] %vm151, %v148
    %v155 = vld [vmem:[%s3] sm:$0xff]
    %v156 = vld [vmem:[%s3 + $0x8] sm:$0xff]
    %v157 = vld [vmem:[%s3 + $0x10] sm:$0xff]
    %v158 = vld [vmem:[%s3 + $0x18] sm:$0xff]
    %v159 = vld [vmem:[%s3 + $0x20] sm:$0xff]
    %v160 = vld [vmem:[%s3 + $0x28] sm:$0xff]
    %v161 = vld [vmem:[%s3 + $0x30] sm:$0xff]
    %v162 = vld [vmem:[%s3 + $0x38] sm:$0xff]
    %v163 = vld [vmem:[%s3 + $0x40] sm:$0xff]
    %v164 = vld [vmem:[%s3 + $0x48] sm:$0xff]
    %v165 = vld [vmem:[%s3 + $0x50] sm:$0xff]
    %v166 = vld [vmem:[%s3 + $0x58] sm:$0xff]
    %v167 = vld [vmem:[%s3 + $0x60] sm:$0xff]
    %v168 = vld [vmem:[%s3 + $0x68] sm:$0xff]
    %v169 = vld [vmem:[%s3 + $0x70] sm:$0xff]
    %v170 = vld [vmem:[%s3 + $0x78] sm:$0xff]
    %v171 = vld [vmem:[%s4] sm:$0x1]
    %v172 = vld [vmem:[#allocation2] sm:$0x3]
    %v173 = vld [vmem:[#allocation2 + $0x8] sm:$0x3]
    %v175 = vsel %vm151, 0.0, 0
    %177 = vmatprep.subr.mxu0 0.0
    %178 = vmatpush1.msra.mxu0 0.0
    %179 = vmatprep.subr.mxu0 0.0
    %180 = vmatpush1.msra.mxu0 0.0
    %181 = vmatprep.subr.mxu0 0.0
    %182 = vmatpush1.msra.mxu0 0.0
    %183 = vmatprep.subr.mxu0 0.0
    %184 = vmatpush1.msra.mxu0 0.0
    %185 = vmatprep.subr.mxu0 0.0
    %186 = vmatpush1.msra.mxu0 0.0
    %187 = vmatprep.subr.mxu0 0.0
    %188 = vmatpush1.msra.mxu0 0.0
    %189 = vmatprep.subr.mxu0 0.0
    %190 = vmatpush1.msra.mxu0 0.0
    %191 = vmatprep.subr.mxu0 0.0
    %192 = vmatpush1.msra.mxu0 0.0
    %193 = vmatprep.subr.mxu0 %v170
    %194 = vmatpush1.msra.mxu0 %v169
    %195 = vmatprep.subr.mxu0 %v168
    %196 = vmatpush1.msra.mxu0 %v167
    %197 = vmatprep.subr.mxu0 %v166
    %198 = vmatpush1.msra.mxu0 %v165
    %199 = vmatprep.subr.mxu0 %v164
    %200 = vmatpush1.msra.mxu0 %v163
    %201 = vmatprep.subr.mxu0 %v162
    %202 = vmatpush1.msra.mxu0 %v161
    %203 = vmatprep.subr.mxu0 %v160
    %204 = vmatpush1.msra.mxu0 %v159
    %205 = vmatprep.subr.mxu0 %v158
    %206 = vmatpush1.msra.mxu0 %v157
    %207 = vmatprep.subr.mxu0 %v156
    %208 = vmatpush1.msra.mxu0 %v155
    %209 = vmatprep.subr.mxu0 0.0
    %210 = vmatpush2.msra.mxu0 0.0
    %211 = vmatprep.subr.mxu0 0.0
    %212 = vmatpush2.msra.mxu0 0.0
    %213 = vmatprep.subr.mxu0 0.0
    %214 = vmatpush2.msra.mxu0 0.0
    %215 = vmatprep.subr.mxu0 0.0
    %216 = vmatpush2.msra.mxu0 0.0
    %217 = vmatprep.subr.mxu0 0.0
    %218 = vmatpush2.msra.mxu0 0.0
    %219 = vmatprep.subr.mxu0 0.0
    %220 = vmatpush2.msra.mxu0 0.0
    %221 = vmatprep.subr.mxu0 0.0
    %222 = vmatpush2.msra.mxu0 0.0
    %223 = vmatprep.subr.mxu0 0.0
    %224 = vmatpush2.msra.mxu0 0.0
    %225 = vmatprep.subr.mxu0 0.0
    %226 = vmatpush2.msra.mxu0 0.0
    %227 = vmatprep.subr.mxu0 0.0
    %228 = vmatpush2.msra.mxu0 0.0
    %229 = vmatprep.subr.mxu0 0.0
    %230 = vmatpush2.msra.mxu0 0.0
    %231 = vmatprep.subr.mxu0 0.0
    %232 = vmatpush2.msra.mxu0 0.0
    %233 = vmatprep.subr.mxu0 0.0
    %234 = vmatpush2.msra.mxu0 0.0
    %235 = vmatprep.subr.mxu0 0.0
    %236 = vmatpush2.msra.mxu0 0.0
    %237 = vmatprep.subr.mxu0 0.0
    %238 = vmatpush2.msra.mxu0 0.0
    %239 = vmatprep.subr.mxu0 0.0
    %240 = vmatpush2.msra.mxu0 0.0
    %241 = vmatprep.mubr.f32.mxu0 0.0
    %242 = vmatmul.mubr.f32.gmra.mxu0 %v175
    %v243 = vpop.f32.mrf.mxu0
    %v244 = vadd.f32 0.0, %v243
    %v245 = vpop.f32.mrf.mxu0
    %v246 = vadd.f32 0.0, %v245
    %247 = vdwg.mxu0
    %v248 = vadd.f32 %v172, %v244
    %v249 = vxor.u32 %v248, 2147483648
    %v250 = vmul.f32 %v249, 1.442695
    %v251 = vpow.pop %v250
    %v252 = vadd.f32 %v251, 1.0
    %v253 = vrcp.pop %v252
    %v254 = vmul.f32 1.0, %v253
    %v256 = vlaneseq
    %v257 = vshrl.u32 %v256, 7
    %v258 = vsub.s32 0, %v257
    %v259 = vrot.slane %v171, %v258
    %v261 = vadd.f32 %v246, %v259
    %v262 = vmul.f32 %v254, %v261
    %v263 = vadd.f32 %v173, %v262
    %v264 = vtanh.pop %v263
    %v265 = vsub.f32 1.0, %v254
    %267 = vrot.lane.b32.xlu0 %v264, 64
    %v268 = vpop.permute.xlu0 %267
    %v270 = vmul.f32 %v265, %v268
    %v271 = vmul.f32 %v254, 0.0
    %v272 = vadd.f32 %v270, %v271
    %274 = vrot.lane.b32.xlu0 %v272, 64
    %v275 = vpop.permute.xlu0 %274
    %vm277 = vcmask 254976
    %278 = vst.msk [vmem:[#allocation3] sm:$0x3] %vm277, %v275
    %vm279 = vcmask 517376
    %280 = vst.msk [vmem:[#allocation3 + $0xe] sm:$0x3] %vm279, %v275
    %v281 = vld [vmem:[#allocation2] sm:$0xc]
    %v282 = vld [vmem:[#allocation2 + $0x8] sm:$0xc]
    %v283 = vsel %vm151, %v275, 0
    %285 = vmatprep.subr.mxu0 0.0
    %286 = vmatpush1.msra.mxu0 0.0
    %287 = vmatprep.subr.mxu0 0.0
    %288 = vmatpush1.msra.mxu0 0.0
    %289 = vmatprep.subr.mxu0 0.0
    %290 = vmatpush1.msra.mxu0 0.0
    %291 = vmatprep.subr.mxu0 0.0
    %292 = vmatpush1.msra.mxu0 0.0
    %293 = vmatprep.subr.mxu0 0.0
    %294 = vmatpush1.msra.mxu0 0.0
    %295 = vmatprep.subr.mxu0 0.0
    %296 = vmatpush1.msra.mxu0 0.0
    %297 = vmatprep.subr.mxu0 0.0
    %298 = vmatpush1.msra.mxu0 0.0
    %299 = vmatprep.subr.mxu0 0.0
    %300 = vmatpush1.msra.mxu0 0.0
    %301 = vmatprep.subr.mxu0 %v170
    %302 = vmatpush1.msra.mxu0 %v169
    %303 = vmatprep.subr.mxu0 %v168
    %304 = vmatpush1.msra.mxu0 %v167
    %305 = vmatprep.subr.mxu0 %v166
    %306 = vmatpush1.msra.mxu0 %v165
    %307 = vmatprep.subr.mxu0 %v164
    %308 = vmatpush1.msra.mxu0 %v163
    %309 = vmatprep.subr.mxu0 %v162
    %310 = vmatpush1.msra.mxu0 %v161
    %311 = vmatprep.subr.mxu0 %v160
    %312 = vmatpush1.msra.mxu0 %v159
    %313 = vmatprep.subr.mxu0 %v158
    %314 = vmatpush1.msra.mxu0 %v157
    %315 = vmatprep.subr.mxu0 %v156
    %316 = vmatpush1.msra.mxu0 %v155
    %317 = vmatprep.subr.mxu0 0.0
    %318 = vmatpush2.msra.mxu0 0.0
    %319 = vmatprep.subr.mxu0 0.0
    %320 = vmatpush2.msra.mxu0 0.0
    %321 = vmatprep.subr.mxu0 0.0
    %322 = vmatpush2.msra.mxu0 0.0
    %323 = vmatprep.subr.mxu0 0.0
    %324 = vmatpush2.msra.mxu0 0.0
    %325 = vmatprep.subr.mxu0 0.0
    %326 = vmatpush2.msra.mxu0 0.0
    %327 = vmatprep.subr.mxu0 0.0
    %328 = vmatpush2.msra.mxu0 0.0
    %329 = vmatprep.subr.mxu0 0.0
    %330 = vmatpush2.msra.mxu0 0.0
    %331 = vmatprep.subr.mxu0 0.0
    %332 = vmatpush2.msra.mxu0 0.0
    %333 = vmatprep.subr.mxu0 0.0
    %334 = vmatpush2.msra.mxu0 0.0
    %335 = vmatprep.subr.mxu0 0.0
    %336 = vmatpush2.msra.mxu0 0.0
    %337 = vmatprep.subr.mxu0 0.0
    %338 = vmatpush2.msra.mxu0 0.0
    %339 = vmatprep.subr.mxu0 0.0
    %340 = vmatpush2.msra.mxu0 0.0
    %341 = vmatprep.subr.mxu0 0.0
    %342 = vmatpush2.msra.mxu0 0.0
    %343 = vmatprep.subr.mxu0 0.0
    %344 = vmatpush2.msra.mxu0 0.0
    %345 = vmatprep.subr.mxu0 0.0
    %346 = vmatpush2.msra.mxu0 0.0
    %347 = vmatprep.subr.mxu0 0.0
    %348 = vmatpush2.msra.mxu0 0.0
    %349 = vmatprep.mubr.f32.mxu0 0.0
    %350 = vmatmul.mubr.f32.gmra.mxu0 %v283
    %v351 = vpop.f32.mrf.mxu0
    %v352 = vadd.f32 0.0, %v351
    %v353 = vpop.f32.mrf.mxu0
    %v354 = vadd.f32 0.0, %v353
    %355 = vdwg.mxu0
    %v357 = vrot.slane %v352, 6
    %v359 = vadd.f32 %v281, %v357
    %v360 = vxor.u32 %v359, 2147483648
    %v361 = vmul.f32 %v360, 1.442695
    %v362 = vpow.pop %v361
    %v363 = vadd.f32 %v362, 1.0
    %v364 = vrcp.pop %v363
    %v365 = vmul.f32 1.0, %v364
    %v366 = vadd.f32 %v354, %v259
    %v368 = vrot.slane %v366, 6
    %v370 = vmul.f32 %v365, %v368
    %v371 = vadd.f32 %v282, %v370
    %v372 = vtanh.pop %v371
    %v373 = vsub.f32 1.0, %v365
    %375 = vrot.lane.b32.xlu0 %v372, 64
    %v376 = vpop.permute.xlu0 %375
    %v378 = vmul.f32 %v373, %v376
    %v379 = vrot.slane %v272, 6
    %v381 = vmul.f32 %v365, %v379
    %v382 = vadd.f32 %v378, %v381
    %384 = vrot.lane.b32.xlu0 %v382, 64
    %v385 = vpop.permute.xlu0 %384
    %vm387 = vcmask 257026
    %388 = vst.msk [vmem:[#allocation3] sm:$0xc] %vm387, %v385
    %vm389 = vcmask 519426
    %390 = vst.msk [vmem:[#allocation3 + $0xa] sm:$0xc] %vm389, %v385
    %v391 = vld [vmem:[#allocation2] sm:$0x30]
    %v392 = vld [vmem:[#allocation2 + $0x8] sm:$0x30]
    %v393 = vrot.slane %v382, 2
    %394 = vrot.lane.b32.xlu0 %v393, 64
    %v395 = vpop.permute.xlu0 %394
    %v396 = vsel %vm151, %v395, 0
    %398 = vmatprep.subr.mxu0 0.0
    %399 = vmatpush1.msra.mxu0 0.0
    %400 = vmatprep.subr.mxu0 0.0
    %401 = vmatpush1.msra.mxu0 0.0
    %402 = vmatprep.subr.mxu0 0.0
    %403 = vmatpush1.msra.mxu0 0.0
    %404 = vmatprep.subr.mxu0 0.0
    %405 = vmatpush1.msra.mxu0 0.0
    %406 = vmatprep.subr.mxu0 0.0
    %407 = vmatpush1.msra.mxu0 0.0
    %408 = vmatprep.subr.mxu0 0.0
    %409 = vmatpush1.msra.mxu0 0.0
    %410 = vmatprep.subr.mxu0 0.0
    %411 = vmatpush1.msra.mxu0 0.0
    %412 = vmatprep.subr.mxu0 0.0
    %413 = vmatpush1.msra.mxu0 0.0
    %414 = vmatprep.subr.mxu0 %v170
    %415 = vmatpush1.msra.mxu0 %v169
    %416 = vmatprep.subr.mxu0 %v168
    %417 = vmatpush1.msra.mxu0 %v167
    %418 = vmatprep.subr.mxu0 %v166
    %419 = vmatpush1.msra.mxu0 %v165
    %420 = vmatprep.subr.mxu0 %v164
    %421 = vmatpush1.msra.mxu0 %v163
    %422 = vmatprep.subr.mxu0 %v162
    %423 = vmatpush1.msra.mxu0 %v161
    %424 = vmatprep.subr.mxu0 %v160
    %425 = vmatpush1.msra.mxu0 %v159
    %426 = vmatprep.subr.mxu0 %v158
    %427 = vmatpush1.msra.mxu0 %v157
    %428 = vmatprep.subr.mxu0 %v156
    %429 = vmatpush1.msra.mxu0 %v155
    %430 = vmatprep.subr.mxu0 0.0
    %431 = vmatpush2.msra.mxu0 0.0
    %432 = vmatprep.subr.mxu0 0.0
    %433 = vmatpush2.msra.mxu0 0.0
    %434 = vmatprep.subr.mxu0 0.0
    %435 = vmatpush2.msra.mxu0 0.0
    %436 = vmatprep.subr.mxu0 0.0
    %437 = vmatpush2.msra.mxu0 0.0
    %438 = vmatprep.subr.mxu0 0.0
    %439 = vmatpush2.msra.mxu0 0.0
    %440 = vmatprep.subr.mxu0 0.0
    %441 = vmatpush2.msra.mxu0 0.0
    %442 = vmatprep.subr.mxu0 0.0
    %443 = vmatpush2.msra.mxu0 0.0
    %444 = vmatprep.subr.mxu0 0.0
    %445 = vmatpush2.msra.mxu0 0.0
    %446 = vmatprep.subr.mxu0 0.0
    %447 = vmatpush2.msra.mxu0 0.0
    %448 = vmatprep.subr.mxu0 0.0
    %449 = vmatpush2.msra.mxu0 0.0
    %450 = vmatprep.subr.mxu0 0.0
    %451 = vmatpush2.msra.mxu0 0.0
    %452 = vmatprep.subr.mxu0 0.0
    %453 = vmatpush2.msra.mxu0 0.0
    %454 = vmatprep.subr.mxu0 0.0
    %455 = vmatpush2.msra.mxu0 0.0
    %456 = vmatprep.subr.mxu0 0.0
    %457 = vmatpush2.msra.mxu0 0.0
    %458 = vmatprep.subr.mxu0 0.0
    %459 = vmatpush2.msra.mxu0 0.0
    %460 = vmatprep.subr.mxu0 0.0
    %461 = vmatpush2.msra.mxu0 0.0
    %462 = vmatprep.mubr.f32.mxu0 0.0
    %463 = vmatmul.mubr.f32.gmra.mxu0 %v396
    %v464 = vpop.f32.mrf.mxu0
    %v465 = vadd.f32 0.0, %v464
    %v466 = vpop.f32.mrf.mxu0
    %v467 = vadd.f32 0.0, %v466
    %468 = vdwg.mxu0
    %v470 = vrot.slane %v465, 4
    %v472 = vadd.f32 %v391, %v470
    %v473 = vxor.u32 %v472, 2147483648
    %v474 = vmul.f32 %v473, 1.442695
    %v475 = vpow.pop %v474
    %v476 = vadd.f32 %v475, 1.0
    %v477 = vrcp.pop %v476
    %v478 = vmul.f32 1.0, %v477
    %v479 = vadd.f32 %v467, %v259
    %v481 = vrot.slane %v479, 4
    %v483 = vmul.f32 %v478, %v481
    %v484 = vadd.f32 %v392, %v483
    %v485 = vtanh.pop %v484
    %v486 = vsub.f32 1.0, %v478
    %488 = vrot.lane.b32.xlu0 %v485, 64
    %v489 = vpop.permute.xlu0 %488
    %v491 = vmul.f32 %v486, %v489
    %v492 = vrot.slane %v382, 6
    %v494 = vmul.f32 %v478, %v492
    %v495 = vadd.f32 %v491, %v494
    %497 = vrot.lane.b32.xlu0 %v495, 64
    %v498 = vpop.permute.xlu0 %497
    %vm500 = vcmask 259076
    %501 = vst.msk [vmem:[#allocation3] sm:$0x30] %vm500, %v498
    %vm502 = vcmask 521476
    %503 = vst.msk [vmem:[#allocation3 + $0x6] sm:$0x30] %vm502, %v498
    %v504 = vld [vmem:[#allocation2] sm:$0xc0]
    %v505 = vld [vmem:[#allocation2 + $0x8] sm:$0xc0]
    %v506 = vrot.slane %v495, 4
    %507 = vrot.lane.b32.xlu0 %v506, 64
    %v508 = vpop.permute.xlu0 %507
    %v509 = vsel %vm151, %v508, 0
    %511 = vmatprep.subr.mxu0 0.0
    %512 = vmatpush1.msra.mxu0 0.0
    %513 = vmatprep.subr.mxu0 0.0
    %514 = vmatpush1.msra.mxu0 0.0
    %515 = vmatprep.subr.mxu0 0.0
    %516 = vmatpush1.msra.mxu0 0.0
    %517 = vmatprep.subr.mxu0 0.0
    %518 = vmatpush1.msra.mxu0 0.0
    %519 = vmatprep.subr.mxu0 0.0
    %520 = vmatpush1.msra.mxu0 0.0
    %521 = vmatprep.subr.mxu0 0.0
    %522 = vmatpush1.msra.mxu0 0.0
    %523 = vmatprep.subr.mxu0 0.0
    %524 = vmatpush1.msra.mxu0 0.0
    %525 = vmatprep.subr.mxu0 0.0
    %526 = vmatpush1.msra.mxu0 0.0
    %527 = vmatprep.subr.mxu0 %v170
    %528 = vmatpush1.msra.mxu0 %v169
    %529 = vmatprep.subr.mxu0 %v168
    %530 = vmatpush1.msra.mxu0 %v167
    %531 = vmatprep.subr.mxu0 %v166
    %532 = vmatpush1.msra.mxu0 %v165
    %533 = vmatprep.subr.mxu0 %v164
    %534 = vmatpush1.msra.mxu0 %v163
    %535 = vmatprep.subr.mxu0 %v162
    %536 = vmatpush1.msra.mxu0 %v161
    %537 = vmatprep.subr.mxu0 %v160
    %538 = vmatpush1.msra.mxu0 %v159
    %539 = vmatprep.subr.mxu0 %v158
    %540 = vmatpush1.msra.mxu0 %v157
    %541 = vmatprep.subr.mxu0 %v156
    %542 = vmatpush1.msra.mxu0 %v155
    %543 = vmatprep.subr.mxu0 0.0
    %544 = vmatpush2.msra.mxu0 0.0
    %545 = vmatprep.subr.mxu0 0.0
    %546 = vmatpush2.msra.mxu0 0.0
    %547 = vmatprep.subr.mxu0 0.0
    %548 = vmatpush2.msra.mxu0 0.0
    %549 = vmatprep.subr.mxu0 0.0
    %550 = vmatpush2.msra.mxu0 0.0
    %551 = vmatprep.subr.mxu0 0.0
    %552 = vmatpush2.msra.mxu0 0.0
    %553 = vmatprep.subr.mxu0 0.0
    %554 = vmatpush2.msra.mxu0 0.0
    %555 = vmatprep.subr.mxu0 0.0
    %556 = vmatpush2.msra.mxu0 0.0
    %557 = vmatprep.subr.mxu0 0.0
    %558 = vmatpush2.msra.mxu0 0.0
    %559 = vmatprep.subr.mxu0 0.0
    %560 = vmatpush2.msra.mxu0 0.0
    %561 = vmatprep.subr.mxu0 0.0
    %562 = vmatpush2.msra.mxu0 0.0
    %563 = vmatprep.subr.mxu0 0.0
    %564 = vmatpush2.msra.mxu0 0.0
    %565 = vmatprep.subr.mxu0 0.0
    %566 = vmatpush2.msra.mxu0 0.0
    %567 = vmatprep.subr.mxu0 0.0
    %568 = vmatpush2.msra.mxu0 0.0
    %569 = vmatprep.subr.mxu0 0.0
    %570 = vmatpush2.msra.mxu0 0.0
    %571 = vmatprep.subr.mxu0 0.0
    %572 = vmatpush2.msra.mxu0 0.0
    %573 = vmatprep.subr.mxu0 0.0
    %574 = vmatpush2.msra.mxu0 0.0
    %575 = vmatprep.mubr.f32.mxu0 0.0
    %576 = vmatmul.mubr.f32.gmra.mxu0 %v509
    %v577 = vpop.f32.mrf.mxu0
    %v578 = vadd.f32 0.0, %v577
    %v579 = vpop.f32.mrf.mxu0
    %v580 = vadd.f32 0.0, %v579
    %581 = vdwg.mxu0
    %v583 = vrot.slane %v578, 2
    %v585 = vadd.f32 %v504, %v583
    %v586 = vxor.u32 %v585, 2147483648
    %v587 = vmul.f32 %v586, 1.442695
    %v588 = vpow.pop %v587
    %v589 = vadd.f32 %v588, 1.0
    %v590 = vrcp.pop %v589
    %v591 = vmul.f32 1.0, %v590
    %v592 = vadd.f32 %v580, %v259
    %v594 = vrot.slane %v592, 2
    %v596 = vmul.f32 %v591, %v594
    %v597 = vadd.f32 %v505, %v596
    %v598 = vtanh.pop %v597
    %v599 = vsub.f32 1.0, %v591
    %601 = vrot.lane.b32.xlu0 %v598, 64
    %v602 = vpop.permute.xlu0 %601
    %v604 = vmul.f32 %v599, %v602
    %v605 = vrot.slane %v495, 6
    %v607 = vmul.f32 %v591, %v605
    %v608 = vadd.f32 %v604, %v607
    %610 = vrot.lane.b32.xlu0 %v608, 64
    %v611 = vpop.permute.xlu0 %610
    %vm613 = vcmask 261126
    %614 = vst.msk [vmem:[#allocation3] sm:$0xc0] %vm613, %v611
    %vm615 = vcmask 523526
    %616 = vst.msk [vmem:[#allocation3 + $0x2] sm:$0xc0] %vm615, %v611
    %v617 = vld [vmem:[#allocation2 + $0x10] sm:$0x3]
    %v618 = vld [vmem:[#allocation2 + $0x18] sm:$0x3]
    %v619 = vrot.slane %v608, 6
    %620 = vrot.lane.b32.xlu0 %v619, 64
    %v621 = vpop.permute.xlu0 %620
    %v622 = vsel %vm151, %v621, 0
    %624 = vmatprep.subr.mxu0 0.0
    %625 = vmatpush1.msra.mxu0 0.0
    %626 = vmatprep.subr.mxu0 0.0
    %627 = vmatpush1.msra.mxu0 0.0
    %628 = vmatprep.subr.mxu0 0.0
    %629 = vmatpush1.msra.mxu0 0.0
    %630 = vmatprep.subr.mxu0 0.0
    %631 = vmatpush1.msra.mxu0 0.0
    %632 = vmatprep.subr.mxu0 0.0
    %633 = vmatpush1.msra.mxu0 0.0
    %634 = vmatprep.subr.mxu0 0.0
    %635 = vmatpush1.msra.mxu0 0.0
    %636 = vmatprep.subr.mxu0 0.0
    %637 = vmatpush1.msra.mxu0 0.0
    %638 = vmatprep.subr.mxu0 0.0
    %639 = vmatpush1.msra.mxu0 0.0
    %640 = vmatprep.subr.mxu0 %v170
    %641 = vmatpush1.msra.mxu0 %v169
    %642 = vmatprep.subr.mxu0 %v168
    %643 = vmatpush1.msra.mxu0 %v167
    %644 = vmatprep.subr.mxu0 %v166
    %645 = vmatpush1.msra.mxu0 %v165
    %646 = vmatprep.subr.mxu0 %v164
    %647 = vmatpush1.msra.mxu0 %v163
    %648 = vmatprep.subr.mxu0 %v162
    %649 = vmatpush1.msra.mxu0 %v161
    %650 = vmatprep.subr.mxu0 %v160
    %651 = vmatpush1.msra.mxu0 %v159
    %652 = vmatprep.subr.mxu0 %v158
    %653 = vmatpush1.msra.mxu0 %v157
    %654 = vmatprep.subr.mxu0 %v156
    %655 = vmatpush1.msra.mxu0 %v155
    %656 = vmatprep.subr.mxu0 0.0
    %657 = vmatpush2.msra.mxu0 0.0
    %658 = vmatprep.subr.mxu0 0.0
    %659 = vmatpush2.msra.mxu0 0.0
    %660 = vmatprep.subr.mxu0 0.0
    %661 = vmatpush2.msra.mxu0 0.0
    %662 = vmatprep.subr.mxu0 0.0
    %663 = vmatpush2.msra.mxu0 0.0
    %664 = vmatprep.subr.mxu0 0.0
    %665 = vmatpush2.msra.mxu0 0.0
    %666 = vmatprep.subr.mxu0 0.0
    %667 = vmatpush2.msra.mxu0 0.0
    %668 = vmatprep.subr.mxu0 0.0
    %669 = vmatpush2.msra.mxu0 0.0
    %670 = vmatprep.subr.mxu0 0.0
    %671 = vmatpush2.msra.mxu0 0.0
    %672 = vmatprep.subr.mxu0 0.0
    %673 = vmatpush2.msra.mxu0 0.0
    %674 = vmatprep.subr.mxu0 0.0
    %675 = vmatpush2.msra.mxu0 0.0
    %676 = vmatprep.subr.mxu0 0.0
    %677 = vmatpush2.msra.mxu0 0.0
    %678 = vmatprep.subr.mxu0 0.0
    %679 = vmatpush2.msra.mxu0 0.0
    %680 = vmatprep.subr.mxu0 0.0
    %681 = vmatpush2.msra.mxu0 0.0
    %682 = vmatprep.subr.mxu0 0.0
    %683 = vmatpush2.msra.mxu0 0.0
    %684 = vmatprep.subr.mxu0 0.0
    %685 = vmatpush2.msra.mxu0 0.0
    %686 = vmatprep.subr.mxu0 0.0
    %687 = vmatpush2.msra.mxu0 0.0
    %688 = vmatprep.mubr.f32.mxu0 0.0
    %689 = vmatmul.mubr.f32.gmra.mxu0 %v622
    %v690 = vpop.f32.mrf.mxu0
    %v691 = vadd.f32 0.0, %v690
    %v692 = vpop.f32.mrf.mxu0
    %v693 = vadd.f32 0.0, %v692
    %694 = vdwg.mxu0
    %v695 = vadd.f32 %v617, %v691
    %v696 = vxor.u32 %v695, 2147483648
    %v697 = vmul.f32 %v696, 1.442695
    %v698 = vpow.pop %v697
    %v699 = vadd.f32 %v698, 1.0
    %v700 = vrcp.pop %v699
    %v701 = vmul.f32 1.0, %v700
    %v702 = vadd.f32 %v693, %v259
    %v703 = vmul.f32 %v701, %v702
    %v704 = vadd.f32 %v618, %v703
    %v705 = vtanh.pop %v704
    %v706 = vsub.f32 1.0, %v701
    %708 = vrot.lane.b32.xlu0 %v705, 64
    %v709 = vpop.permute.xlu0 %708
    %v711 = vmul.f32 %v706, %v709
    %v713 = vmul.f32 %v701, %v619
    %v714 = vadd.f32 %v711, %v713
    %716 = vrot.lane.b32.xlu0 %v714, 64
    %v717 = vpop.permute.xlu0 %716
    %719 = vst.msk [vmem:[#allocation3 + $0x8] sm:$0x3] %vm277, %v717
    %720 = vst.msk [vmem:[#allocation3 + $0x6] sm:$0x3] %vm279, %v717
    %v721 = vld [vmem:[#allocation2 + $0x10] sm:$0xc]
    %v722 = vld [vmem:[#allocation2 + $0x18] sm:$0xc]
    %v723 = vsel %vm151, %v717, 0
    %725 = vmatprep.subr.mxu0 0.0
    %726 = vmatpush1.msra.mxu0 0.0
    %727 = vmatprep.subr.mxu0 0.0
    %728 = vmatpush1.msra.mxu0 0.0
    %729 = vmatprep.subr.mxu0 0.0
    %730 = vmatpush1.msra.mxu0 0.0
    %731 = vmatprep.subr.mxu0 0.0
    %732 = vmatpush1.msra.mxu0 0.0
    %733 = vmatprep.subr.mxu0 0.0
    %734 = vmatpush1.msra.mxu0 0.0
    %735 = vmatprep.subr.mxu0 0.0
    %736 = vmatpush1.msra.mxu0 0.0
    %737 = vmatprep.subr.mxu0 0.0
    %738 = vmatpush1.msra.mxu0 0.0
    %739 = vmatprep.subr.mxu0 0.0
    %740 = vmatpush1.msra.mxu0 0.0
    %741 = vmatprep.subr.mxu0 %v170
    %742 = vmatpush1.msra.mxu0 %v169
    %743 = vmatprep.subr.mxu0 %v168
    %744 = vmatpush1.msra.mxu0 %v167
    %745 = vmatprep.subr.mxu0 %v166
    %746 = vmatpush1.msra.mxu0 %v165
    %747 = vmatprep.subr.mxu0 %v164
    %748 = vmatpush1.msra.mxu0 %v163
    %749 = vmatprep.subr.mxu0 %v162
    %750 = vmatpush1.msra.mxu0 %v161
    %751 = vmatprep.subr.mxu0 %v160
    %752 = vmatpush1.msra.mxu0 %v159
    %753 = vmatprep.subr.mxu0 %v158
    %754 = vmatpush1.msra.mxu0 %v157
    %755 = vmatprep.subr.mxu0 %v156
    %756 = vmatpush1.msra.mxu0 %v155
    %757 = vmatprep.subr.mxu0 0.0
    %758 = vmatpush2.msra.mxu0 0.0
    %759 = vmatprep.subr.mxu0 0.0
    %760 = vmatpush2.msra.mxu0 0.0
    %761 = vmatprep.subr.mxu0 0.0
    %762 = vmatpush2.msra.mxu0 0.0
    %763 = vmatprep.subr.mxu0 0.0
    %764 = vmatpush2.msra.mxu0 0.0
    %765 = vmatprep.subr.mxu0 0.0
    %766 = vmatpush2.msra.mxu0 0.0
    %767 = vmatprep.subr.mxu0 0.0
    %768 = vmatpush2.msra.mxu0 0.0
    %769 = vmatprep.subr.mxu0 0.0
    %770 = vmatpush2.msra.mxu0 0.0
    %771 = vmatprep.subr.mxu0 0.0
    %772 = vmatpush2.msra.mxu0 0.0
    %773 = vmatprep.subr.mxu0 0.0
    %774 = vmatpush2.msra.mxu0 0.0
    %775 = vmatprep.subr.mxu0 0.0
    %776 = vmatpush2.msra.mxu0 0.0
    %777 = vmatprep.subr.mxu0 0.0
    %778 = vmatpush2.msra.mxu0 0.0
    %779 = vmatprep.subr.mxu0 0.0
    %780 = vmatpush2.msra.mxu0 0.0
    %781 = vmatprep.subr.mxu0 0.0
    %782 = vmatpush2.msra.mxu0 0.0
    %783 = vmatprep.subr.mxu0 0.0
    %784 = vmatpush2.msra.mxu0 0.0
    %785 = vmatprep.subr.mxu0 0.0
    %786 = vmatpush2.msra.mxu0 0.0
    %787 = vmatprep.subr.mxu0 0.0
    %788 = vmatpush2.msra.mxu0 0.0
    %789 = vmatprep.mubr.f32.mxu0 0.0
    %790 = vmatmul.mubr.f32.gmra.mxu0 %v723
    %v791 = vpop.f32.mrf.mxu0
    %v792 = vadd.f32 0.0, %v791
    %v793 = vpop.f32.mrf.mxu0
    %v794 = vadd.f32 0.0, %v793
    %795 = vdwg.mxu0
    %v797 = vrot.slane %v792, 6
    %v799 = vadd.f32 %v721, %v797
    %v800 = vxor.u32 %v799, 2147483648
    %v801 = vmul.f32 %v800, 1.442695
    %v802 = vpow.pop %v801
    %v803 = vadd.f32 %v802, 1.0
    %v804 = vrcp.pop %v803
    %v805 = vmul.f32 1.0, %v804
    %v806 = vadd.f32 %v794, %v259
    %v808 = vrot.slane %v806, 6
    %v810 = vmul.f32 %v805, %v808
    %v811 = vadd.f32 %v722, %v810
    %v812 = vtanh.pop %v811
    %v813 = vsub.f32 1.0, %v805
    %815 = vrot.lane.b32.xlu0 %v812, 64
    %v816 = vpop.permute.xlu0 %815
    %v818 = vmul.f32 %v813, %v816
    %v819 = vrot.slane %v714, 6
    %v821 = vmul.f32 %v805, %v819
    %v822 = vadd.f32 %v818, %v821
    %824 = vrot.lane.b32.xlu0 %v822, 64
    %v825 = vpop.permute.xlu0 %824
    %827 = vst.msk [vmem:[#allocation3 + $0x8] sm:$0xc] %vm387, %v825
    %828 = vst.msk [vmem:[#allocation3 + $0x2] sm:$0xc] %vm389, %v825
    %v829 = vld [vmem:[#allocation2 + $0x10] sm:$0x30]
    %v830 = vld [vmem:[#allocation2 + $0x18] sm:$0x30]
    %v831 = vrot.slane %v822, 2
    %832 = vrot.lane.b32.xlu0 %v831, 64
    %v833 = vpop.permute.xlu0 %832
    %v834 = vsel %vm151, %v833, 0
    %836 = vmatprep.subr.mxu0 0.0
    %837 = vmatpush1.msra.mxu0 0.0
    %838 = vmatprep.subr.mxu0 0.0
    %839 = vmatpush1.msra.mxu0 0.0
    %840 = vmatprep.subr.mxu0 0.0
    %841 = vmatpush1.msra.mxu0 0.0
    %842 = vmatprep.subr.mxu0 0.0
    %843 = vmatpush1.msra.mxu0 0.0
    %844 = vmatprep.subr.mxu0 0.0
    %845 = vmatpush1.msra.mxu0 0.0
    %846 = vmatprep.subr.mxu0 0.0
    %847 = vmatpush1.msra.mxu0 0.0
    %848 = vmatprep.subr.mxu0 0.0
    %849 = vmatpush1.msra.mxu0 0.0
    %850 = vmatprep.subr.mxu0 0.0
    %851 = vmatpush1.msra.mxu0 0.0
    %852 = vmatprep.subr.mxu0 %v170
    %853 = vmatpush1.msra.mxu0 %v169
    %854 = vmatprep.subr.mxu0 %v168
    %855 = vmatpush1.msra.mxu0 %v167
    %856 = vmatprep.subr.mxu0 %v166
    %857 = vmatpush1.msra.mxu0 %v165
    %858 = vmatprep.subr.mxu0 %v164
    %859 = vmatpush1.msra.mxu0 %v163
    %860 = vmatprep.subr.mxu0 %v162
    %861 = vmatpush1.msra.mxu0 %v161
    %862 = vmatprep.subr.mxu0 %v160
    %863 = vmatpush1.msra.mxu0 %v159
    %864 = vmatprep.subr.mxu0 %v158
    %865 = vmatpush1.msra.mxu0 %v157
    %866 = vmatprep.subr.mxu0 %v156
    %867 = vmatpush1.msra.mxu0 %v155
    %868 = vmatprep.subr.mxu0 0.0
    %869 = vmatpush2.msra.mxu0 0.0
    %870 = vmatprep.subr.mxu0 0.0
    %871 = vmatpush2.msra.mxu0 0.0
    %872 = vmatprep.subr.mxu0 0.0
    %873 = vmatpush2.msra.mxu0 0.0
    %874 = vmatprep.subr.mxu0 0.0
    %875 = vmatpush2.msra.mxu0 0.0
    %876 = vmatprep.subr.mxu0 0.0
    %877 = vmatpush2.msra.mxu0 0.0
    %878 = vmatprep.subr.mxu0 0.0
    %879 = vmatpush2.msra.mxu0 0.0
    %880 = vmatprep.subr.mxu0 0.0
    %881 = vmatpush2.msra.mxu0 0.0
    %882 = vmatprep.subr.mxu0 0.0
    %883 = vmatpush2.msra.mxu0 0.0
    %884 = vmatprep.subr.mxu0 0.0
    %885 = vmatpush2.msra.mxu0 0.0
    %886 = vmatprep.subr.mxu0 0.0
    %887 = vmatpush2.msra.mxu0 0.0
    %888 = vmatprep.subr.mxu0 0.0
    %889 = vmatpush2.msra.mxu0 0.0
    %890 = vmatprep.subr.mxu0 0.0
    %891 = vmatpush2.msra.mxu0 0.0
    %892 = vmatprep.subr.mxu0 0.0
    %893 = vmatpush2.msra.mxu0 0.0
    %894 = vmatprep.subr.mxu0 0.0
    %895 = vmatpush2.msra.mxu0 0.0
    %896 = vmatprep.subr.mxu0 0.0
    %897 = vmatpush2.msra.mxu0 0.0
    %898 = vmatprep.subr.mxu0 0.0
    %899 = vmatpush2.msra.mxu0 0.0
    %900 = vmatprep.mubr.f32.mxu0 0.0
    %901 = vmatmul.mubr.f32.gmra.mxu0 %v834
    %v902 = vpop.f32.mrf.mxu0
    %v903 = vadd.f32 0.0, %v902
    %v904 = vpop.f32.mrf.mxu0
    %v905 = vadd.f32 0.0, %v904
    %906 = vdwg.mxu0
    %v908 = vrot.slane %v903, 4
    %v910 = vadd.f32 %v829, %v908
    %v911 = vxor.u32 %v910, 2147483648
    %v912 = vmul.f32 %v911, 1.442695
    %v913 = vpow.pop %v912
    %v914 = vadd.f32 %v913, 1.0
    %v915 = vrcp.pop %v914
    %v916 = vmul.f32 1.0, %v915
    %v917 = vadd.f32 %v905, %v259
    %v919 = vrot.slane %v917, 4
    %v921 = vmul.f32 %v916, %v919
    %v922 = vadd.f32 %v830, %v921
    %v923 = vtanh.pop %v922
    %v924 = vsub.f32 1.0, %v916
    %926 = vrot.lane.b32.xlu0 %v923, 64
    %v927 = vpop.permute.xlu0 %926
    %v929 = vmul.f32 %v924, %v927
    %v930 = vrot.slane %v822, 6
    %v932 = vmul.f32 %v916, %v930
    %v933 = vadd.f32 %v929, %v932
    %935 = vrot.lane.b32.xlu0 %v933, 64
    %v936 = vpop.permute.xlu0 %935
    %938 = vst.msk [vmem:[#allocation3 + $0x8] sm:$0x30] %vm500, %v936
    %939 = vst.msk [vmem:[#allocation3 - $0x2] sm:$0x30] %vm502, %v936
    %v940 = vld [vmem:[#allocation2 + $0x10] sm:$0xc0]
    %v941 = vld [vmem:[#allocation2 + $0x18] sm:$0xc0]
    %v942 = vrot.slane %v933, 4
    %943 = vrot.lane.b32.xlu0 %v942, 64
    %v944 = vpop.permute.xlu0 %943
    %v945 = vsel %vm151, %v944, 0
    %947 = vmatprep.subr.mxu0 0.0
    %948 = vmatpush1.msra.mxu0 0.0
    %949 = vmatprep.subr.mxu0 0.0
    %950 = vmatpush1.msra.mxu0 0.0
    %951 = vmatprep.subr.mxu0 0.0
    %952 = vmatpush1.msra.mxu0 0.0
    %953 = vmatprep.subr.mxu0 0.0
    %954 = vmatpush1.msra.mxu0 0.0
    %955 = vmatprep.subr.mxu0 0.0
    %956 = vmatpush1.msra.mxu0 0.0
    %957 = vmatprep.subr.mxu0 0.0
    %958 = vmatpush1.msra.mxu0 0.0
    %959 = vmatprep.subr.mxu0 0.0
    %960 = vmatpush1.msra.mxu0 0.0
    %961 = vmatprep.subr.mxu0 0.0
    %962 = vmatpush1.msra.mxu0 0.0
    %963 = vmatprep.subr.mxu0 %v170
    %964 = vmatpush1.msra.mxu0 %v169
    %965 = vmatprep.subr.mxu0 %v168
    %966 = vmatpush1.msra.mxu0 %v167
    %967 = vmatprep.subr.mxu0 %v166
    %968 = vmatpush1.msra.mxu0 %v165
    %969 = vmatprep.subr.mxu0 %v164
    %970 = vmatpush1.msra.mxu0 %v163
    %971 = vmatprep.subr.mxu0 %v162
    %972 = vmatpush1.msra.mxu0 %v161
    %973 = vmatprep.subr.mxu0 %v160
    %974 = vmatpush1.msra.mxu0 %v159
    %975 = vmatprep.subr.mxu0 %v158
    %976 = vmatpush1.msra.mxu0 %v157
    %977 = vmatprep.subr.mxu0 %v156
    %978 = vmatpush1.msra.mxu0 %v155
    %979 = vmatprep.subr.mxu0 0.0
    %980 = vmatpush2.msra.mxu0 0.0
    %981 = vmatprep.subr.mxu0 0.0
    %982 = vmatpush2.msra.mxu0 0.0
    %983 = vmatprep.subr.mxu0 0.0
    %984 = vmatpush2.msra.mxu0 0.0
    %985 = vmatprep.subr.mxu0 0.0
    %986 = vmatpush2.msra.mxu0 0.0
    %987 = vmatprep.subr.mxu0 0.0
    %988 = vmatpush2.msra.mxu0 0.0
    %989 = vmatprep.subr.mxu0 0.0
    %990 = vmatpush2.msra.mxu0 0.0
    %991 = vmatprep.subr.mxu0 0.0
    %992 = vmatpush2.msra.mxu0 0.0
    %993 = vmatprep.subr.mxu0 0.0
    %994 = vmatpush2.msra.mxu0 0.0
    %995 = vmatprep.subr.mxu0 0.0
    %996 = vmatpush2.msra.mxu0 0.0
    %997 = vmatprep.subr.mxu0 0.0
    %998 = vmatpush2.msra.mxu0 0.0
    %999 = vmatprep.subr.mxu0 0.0
    %1000 = vmatpush2.msra.mxu0 0.0
    %1001 = vmatprep.subr.mxu0 0.0
    %1002 = vmatpush2.msra.mxu0 0.0
    %1003 = vmatprep.subr.mxu0 0.0
    %1004 = vmatpush2.msra.mxu0 0.0
    %1005 = vmatprep.subr.mxu0 0.0
    %1006 = vmatpush2.msra.mxu0 0.0
    %1007 = vmatprep.subr.mxu0 0.0
    %1008 = vmatpush2.msra.mxu0 0.0
    %1009 = vmatprep.subr.mxu0 0.0
    %1010 = vmatpush2.msra.mxu0 0.0
    %1011 = vmatprep.mubr.f32.mxu0 0.0
    %1012 = vmatmul.mubr.f32.gmra.mxu0 %v945
    %v1013 = vpop.f32.mrf.mxu0
    %v1014 = vadd.f32 0.0, %v1013
    %v1015 = vpop.f32.mrf.mxu0
    %v1016 = vadd.f32 0.0, %v1015
    %1017 = vdwg.mxu0
    %v1019 = vrot.slane %v1014, 2
    %v1021 = vadd.f32 %v940, %v1019
    %v1022 = vxor.u32 %v1021, 2147483648
    %v1023 = vmul.f32 %v1022, 1.442695
    %v1024 = vpow.pop %v1023
    %v1025 = vadd.f32 %v1024, 1.0
    %v1026 = vrcp.pop %v1025
    %v1027 = vmul.f32 1.0, %v1026
    %v1028 = vadd.f32 %v1016, %v259
    %v1030 = vrot.slane %v1028, 2
    %v1032 = vmul.f32 %v1027, %v1030
    %v1033 = vadd.f32 %v941, %v1032
    %v1034 = vtanh.pop %v1033
    %v1035 = vsub.f32 1.0, %v1027
    %1037 = vrot.lane.b32.xlu0 %v1034, 64
    %v1038 = vpop.permute.xlu0 %1037
    %v1040 = vmul.f32 %v1035, %v1038
    %v1041 = vrot.slane %v933, 6
    %v1043 = vmul.f32 %v1027, %v1041
    %v1044 = vadd.f32 %v1040, %v1043
    %1046 = vrot.lane.b32.xlu0 %v1044, 64
    %v1047 = vpop.permute.xlu0 %1046
    %1049 = vst.msk [vmem:[#allocation3 + $0x8] sm:$0xc0] %vm613, %v1047
    %1050 = vst.msk [vmem:[#allocation3 - $0x6] sm:$0xc0] %vm615, %v1047
    %v1051 = vld [vmem:[#allocation3] sm:$0xff]
    %v1052 = vld [vmem:[#allocation3 + $0x8] sm:$0xff]
    %vm1053 = vcmp.ge.f32.partialorder %v1051, 0.0
    %vm1054 = vcmp.ge.f32.partialorder %v1052, 0.0
    %v1055 = vmul.f32 %v1051, 0.1
    %v1056 = vmul.f32 %v1052, 0.1
    %v1057 = vsel %vm1053, %v1051, %v1055
    %v1058 = vsel %vm1054, %v1052, %v1056
    %v1059 = vld [vmem:[%s5] sm:$0xff]
    %v1060 = vld [vmem:[%s5 + $0x8] sm:$0xff]
    %v1061 = vld [vmem:[%s5 + $0x10] sm:$0xff]
    %v1062 = vld [vmem:[%s5 + $0x18] sm:$0xff]
    %v1063 = vld [vmem:[%s5 + $0x20] sm:$0xff]
    %v1064 = vld [vmem:[%s5 + $0x28] sm:$0xff]
    %v1065 = vld [vmem:[%s5 + $0x30] sm:$0xff]
    %v1066 = vld [vmem:[%s5 + $0x38] sm:$0xff]
    %v1067 = vld [vmem:[%s6] sm:$0x1]
    %v1069 = vlaneseq
    %v1070 = vshrl.u32 %v1069, 7
    %v1071 = vsub.s32 0, %v1070
    %v1072 = vrot.slane %v1067, %v1071
    %v1075 = vsel %vm151, %v1057, 0
    %v1078 = vsel %vm151, %v1058, 0
    %1080 = vmatprep.subr.mxu0 0.0
    %1081 = vmatpush1.msra.mxu0 0.0
    %1082 = vmatprep.subr.mxu0 0.0
    %1083 = vmatpush1.msra.mxu0 0.0
    %1084 = vmatprep.subr.mxu0 0.0
    %1085 = vmatpush1.msra.mxu0 0.0
    %1086 = vmatprep.subr.mxu0 0.0
    %1087 = vmatpush1.msra.mxu0 0.0
    %1088 = vmatprep.subr.mxu0 0.0
    %1089 = vmatpush1.msra.mxu0 0.0
    %1090 = vmatprep.subr.mxu0 0.0
    %1091 = vmatpush1.msra.mxu0 0.0
    %1092 = vmatprep.subr.mxu0 0.0
    %1093 = vmatpush1.msra.mxu0 0.0
    %1094 = vmatprep.subr.mxu0 0.0
    %1095 = vmatpush1.msra.mxu0 0.0
    %1096 = vmatprep.subr.mxu0 0.0
    %1097 = vmatpush1.msra.mxu0 %v1066
    %1098 = vmatprep.subr.mxu0 0.0
    %1099 = vmatpush1.msra.mxu0 %v1065
    %1100 = vmatprep.subr.mxu0 0.0
    %1101 = vmatpush1.msra.mxu0 %v1064
    %1102 = vmatprep.subr.mxu0 0.0
    %1103 = vmatpush1.msra.mxu0 %v1063
    %1104 = vmatprep.subr.mxu0 0.0
    %1105 = vmatpush1.msra.mxu0 %v1062
    %1106 = vmatprep.subr.mxu0 0.0
    %1107 = vmatpush1.msra.mxu0 %v1061
    %1108 = vmatprep.subr.mxu0 0.0
    %1109 = vmatpush1.msra.mxu0 %v1060
    %1110 = vmatprep.subr.mxu0 0.0
    %1111 = vmatpush1.msra.mxu0 %v1059
    %1112 = vmatprep.subr.mxu0 0.0
    %1113 = vmatpush2.msra.mxu0 0.0
    %1114 = vmatprep.subr.mxu0 0.0
    %1115 = vmatpush2.msra.mxu0 0.0
    %1116 = vmatprep.subr.mxu0 0.0
    %1117 = vmatpush2.msra.mxu0 0.0
    %1118 = vmatprep.subr.mxu0 0.0
    %1119 = vmatpush2.msra.mxu0 0.0
    %1120 = vmatprep.subr.mxu0 0.0
    %1121 = vmatpush2.msra.mxu0 0.0
    %1122 = vmatprep.subr.mxu0 0.0
    %1123 = vmatpush2.msra.mxu0 0.0
    %1124 = vmatprep.subr.mxu0 0.0
    %1125 = vmatpush2.msra.mxu0 0.0
    %1126 = vmatprep.subr.mxu0 0.0
    %1127 = vmatpush2.msra.mxu0 0.0
    %1128 = vmatprep.subr.mxu0 0.0
    %1129 = vmatpush2.msra.mxu0 0.0
    %1130 = vmatprep.subr.mxu0 0.0
    %1131 = vmatpush2.msra.mxu0 0.0
    %1132 = vmatprep.subr.mxu0 0.0
    %1133 = vmatpush2.msra.mxu0 0.0
    %1134 = vmatprep.subr.mxu0 0.0
    %1135 = vmatpush2.msra.mxu0 0.0
    %1136 = vmatprep.subr.mxu0 0.0
    %1137 = vmatpush2.msra.mxu0 0.0
    %1138 = vmatprep.subr.mxu0 0.0
    %1139 = vmatpush2.msra.mxu0 0.0
    %1140 = vmatprep.subr.mxu0 0.0
    %1141 = vmatpush2.msra.mxu0 0.0
    %1142 = vmatprep.subr.mxu0 0.0
    %1143 = vmatpush2.msra.mxu0 0.0
    %1144 = vmatprep.mubr.f32.mxu0 0.0
    %1145 = vmatmul.mubr.f32.gmra.mxu0 %v1075
    %v1146 = vpop.f32.mrf.mxu0
    %v1147 = vadd.f32 %v1072, %v1146
    %v1148 = vpop.f32.mrf.mxu0
    %1149 = vmatprep.mubr.f32.mxu0 0.0
    %1150 = vmatmul.mubr.f32.gmra.mxu0 %v1078
    %v1151 = vpop.f32.mrf.mxu0
    %v1152 = vadd.f32 %v1072, %v1151
    %v1153 = vpop.f32.mrf.mxu0
    %1154 = vdwg.mxu0
    %vm1155 = vcmp.ge.f32.partialorder %v1147, 0.0
    %vm1156 = vcmp.ge.f32.partialorder %v1152, 0.0
    %v1157 = vmul.f32 %v1147, 0.1
    %v1158 = vmul.f32 %v1152, 0.1
    %v1159 = vsel %vm1155, %v1147, %v1157
    %v1160 = vsel %vm1156, %v1152, %v1158
    %vm1161 = vcmask 130048
    %1162 = vst.msk [vmem:[#allocation4] sm:$0xff] %vm1161, %v1159
    %1163 = vst.msk [vmem:[#allocation4 + $0x8] sm:$0xff] %vm1161, %v1160
    // Predicated region
    $region30: #{temporal_lstm_forward.3} parent=1 // pred_check
      _
    $region31: #{temporal_lstm_forward.3} parent=1 // pred_check_branch
      %1165 = sbr.rel (0) target = $region33
    $region32: #{temporal_lstm_forward.3} parent=1 // pred_region
      %s1167 = ssub.s32 256, 256
      %1168 = vsyncadd [#allocation5], %s1167
      %s1169 = sshll.u32 [#allocation4], 4
      %s1170 = int_to_ptr.vmem [resolvable:$true] %s1169
      %1175 = dma.vmem_to_hbm [thread:$0]  %s1170, 256, %s7, [#allocation5], 128, 128, 8
    $region33: #{temporal_lstm_forward.3} parent=1 // pred_fallthru
      _
    // Predicated region
    $region34: #{temporal_lstm_forward.3} parent=1 // pred_check
      _
    $region35: #{temporal_lstm_forward.3} parent=1 // pred_check_branch
      %1177 = sbr.rel (0) target = $region37
    $region36: #{temporal_lstm_forward.3} parent=1 // pred_region
      %1178 = dma.done [#allocation5], 256
    $region37: #{temporal_lstm_forward.3} parent=1 // pred_fallthru
      _
    %1179 = vsyncpa [#allocation5], 1

</llo_original>
